<compile_context>
chip_gen: v5e
topology: v5e:2x2
jax: 0.10.0
libtpu: 0.0.40
codegen_flags: <defaults>
</compile_context>

<pallas_src>
import jax
import jax.numpy as jnp
from jax.experimental import pallas as pl
from jax.experimental.pallas import tpu as pltpu

LEAKY_SLOPE = 0.2
BN_EPS = 1e-5
TARGET_TILE_M = 1024                  # lane-dense M tile (multiple of 128)
VMEM_LIMIT = 48 * 1024 * 1024         # < 64 MiB physical on v7x, > v5e default


def _pick_tile_m(m, target=TARGET_TILE_M):
    """Largest 128-multiple tile <= target that divides M, else the full M."""
    if m <= target:
        return m
    t = (target // 128) * 128
    while t >= 128:
        if m % t == 0:
            return t
        t -= 128
    return m


# ----------------------------------------------------------------------------
# Kernels.  Layout: w (Cout, K), a (K, tile_M), out (Cout, tile_M);
# M = N*OH*OW is the lane axis.
# ----------------------------------------------------------------------------
def _gemm_lrelu_kernel(w_ref, a_ref, o_ref):
    y = jnp.dot(w_ref[...], a_ref[...], preferred_element_type=jnp.float32)
    o_ref[...] = jnp.where(y > 0, y, LEAKY_SLOPE * y).astype(o_ref.dtype)


def _gemm_sigmoid_kernel(w_ref, a_ref, o_ref):
    y = jnp.dot(w_ref[...], a_ref[...], preferred_element_type=jnp.float32)
    o_ref[...] = (1.0 / (1.0 + jnp.exp(-y))).astype(o_ref.dtype)


def _gemm_stats_kernel(w_ref, a_ref, y_ref, s_ref, ss_ref):
    # GEMM + one-pass per-channel sum / sum-of-squares accumulation across the
    # M-tile grid (s_ref/ss_ref have a constant block index -> VMEM-resident
    # accumulators, init on step 0, written back once at the end).
    @pl.when(pl.program_id(0) == 0)
    def _():
        s_ref[...] = jnp.zeros_like(s_ref)
        ss_ref[...] = jnp.zeros_like(ss_ref)

    y = jnp.dot(w_ref[...], a_ref[...], preferred_element_type=jnp.float32)
    y_ref[...] = y.astype(y_ref.dtype)
    s_ref[...] += jnp.sum(y, axis=1, keepdims=True)
    ss_ref[...] += jnp.sum(y * y, axis=1, keepdims=True)


def _bn_lrelu_kernel(y_ref, scale_ref, shift_ref, o_ref):
    y = y_ref[...].astype(jnp.float32) * scale_ref[...] + shift_ref[...]
    o_ref[...] = jnp.where(y > 0, y, LEAKY_SLOPE * y).astype(o_ref.dtype)


# ----------------------------------------------------------------------------
# pallas_call wrappers (gridded over M, weight block resident).
# ----------------------------------------------------------------------------
def _conv_gemm_act(wmat, aT, *, kernel, out_dtype):
    cout, k = wmat.shape
    m = aT.shape[1]
    tm = _pick_tile_m(m)
    return pl.pallas_call(
        kernel,
        grid=(m // tm,),
        in_specs=[pl.BlockSpec((cout, k), lambda i: (0, 0)),   # resident weight
                  pl.BlockSpec((k, tm), lambda i: (0, i))],
        out_specs=pl.BlockSpec((cout, tm), lambda i: (0, i)),
        out_shape=jax.ShapeDtypeStruct((cout, m), out_dtype),
        compiler_params=pltpu.CompilerParams(
            dimension_semantics=("parallel",),
            vmem_limit_bytes=VMEM_LIMIT),
    )(wmat, aT)


def _conv_gemm_stats(wmat, aT):
    cout, k = wmat.shape
    m = aT.shape[1]
    tm = _pick_tile_m(m)
    return pl.pallas_call(
        _gemm_stats_kernel,
        grid=(m // tm,),
        in_specs=[pl.BlockSpec((cout, k), lambda i: (0, 0)),   # resident weight
                  pl.BlockSpec((k, tm), lambda i: (0, i))],
        out_specs=(pl.BlockSpec((cout, tm), lambda i: (0, i)),
                   pl.BlockSpec((cout, 1), lambda i: (0, 0)),  # sum accum
                   pl.BlockSpec((cout, 1), lambda i: (0, 0))), # sumsq accum
        out_shape=(jax.ShapeDtypeStruct((cout, m), jnp.bfloat16),
                   jax.ShapeDtypeStruct((cout, 1), jnp.float32),
                   jax.ShapeDtypeStruct((cout, 1), jnp.float32)),
        compiler_params=pltpu.CompilerParams(
            dimension_semantics=("arbitrary",),   # stats reduce across M tiles
            vmem_limit_bytes=VMEM_LIMIT),
    )(wmat, aT)


def _bn_lrelu_apply(y, scale, shift):
    cout, m = y.shape
    tm = _pick_tile_m(m)
    return pl.pallas_call(
        _bn_lrelu_kernel,
        grid=(m // tm,),
        in_specs=[pl.BlockSpec((cout, tm), lambda i: (0, i)),
                  pl.BlockSpec((cout, 1), lambda i: (0, 0)),
                  pl.BlockSpec((cout, 1), lambda i: (0, 0))],
        out_specs=pl.BlockSpec((cout, tm), lambda i: (0, i)),
        out_shape=jax.ShapeDtypeStruct((cout, m), jnp.bfloat16),
        compiler_params=pltpu.CompilerParams(
            dimension_semantics=("parallel",),
            vmem_limit_bytes=VMEM_LIMIT),
    )(y, scale, shift)


# ----------------------------------------------------------------------------
# Plain-JAX glue: transposed (lane-dense) im2col.
# ----------------------------------------------------------------------------
def _im2col_T(x_cnhw, kh, kw, stride, pad):
    """x (Cin, N, H, W) -> A^T (Cin*KH*KW, N*OH*OW), plus (OH, OW).

    Row order is (ci, i, j), matching PyTorch Conv2d weights
    (Cout, Cin, KH, KW).reshape(Cout, Cin*KH*KW).
    """
    cin, n, h, w = x_cnhw.shape
    if pad:
        x_cnhw = jnp.pad(x_cnhw, ((0, 0), (0, 0), (pad, pad), (pad, pad)))
    oh = (h + 2 * pad - kh) // stride + 1
    ow = (w + 2 * pad - kw) // stride + 1
    m = n * oh * ow
    cols = []
    for i in range(kh):
        for j in range(kw):
            win = jax.lax.slice(
                x_cnhw,
                (0, 0, i, j),
                (cin, n, i + stride * (oh - 1) + 1, j + stride * (ow - 1) + 1),
                (1, 1, stride, stride))                  # (Cin, N, OH, OW)
            cols.append(win.reshape(cin, m))
    aT = jnp.stack(cols, axis=1).reshape(cin * kh * kw, m)
    return aT, oh, ow


# ----------------------------------------------------------------------------
# Discriminator:  nc -> ndf -> 2ndf -> 4ndf -> 8ndf -> 1
# ----------------------------------------------------------------------------
def init_discriminator_params(key, ndf, nc):
    chans = [nc, ndf, ndf * 2, ndf * 4, ndf * 8, 1]
    keys = jax.random.split(key, 5)
    convs, bns = [], []
    for i in range(5):
        cin, cout = chans[i], chans[i + 1]
        # DCGAN-style N(0, 0.02) init; pre-flatten to the (Cout, Cin*KH*KW)
        # GEMM layout and cast to bf16 for the MXU.
        w = 0.02 * jax.random.normal(keys[i], (cout, cin, 4, 4), jnp.float32)
        convs.append(w.reshape(cout, cin * 16).astype(jnp.bfloat16))
        if 1 <= i <= 3:                      # BatchNorm on layers 2..4 only
            bns.append((jnp.ones((cout, 1), jnp.float32),     # gamma
                        jnp.zeros((cout, 1), jnp.float32)))   # beta
    return {"convs": convs, "bn": bns}


@jax.jit
def discriminator_forward(x_nchw, params):
    # NCHW at the boundary (PyTorch convention); channels-first (C, N, H, W)
    # inside so the flattened batch*spatial axis is always the lane axis.
    n = x_nchw.shape[0]
    x = jnp.transpose(x_nchw, (1, 0, 2, 3)).astype(jnp.bfloat16)

    layer_cfg = [
        (2, 1, "lrelu"),    # Conv(nc   -> ndf)    + LeakyReLU
        (2, 1, "bn"),       # Conv(ndf  -> 2ndf)   + BN + LeakyReLU
        (2, 1, "bn"),       # Conv(2ndf -> 4ndf)   + BN + LeakyReLU
        (2, 1, "bn"),       # Conv(4ndf -> 8ndf)   + BN + LeakyReLU
        (1, 0, "sigmoid"),  # Conv(8ndf -> 1)      + Flatten + Sigmoid
    ]
    bn_idx = 0
    for li, (stride, pad, epi) in enumerate(layer_cfg):
        aT, oh, ow = _im2col_T(x, 4, 4, stride, pad)
        wmat = params["convs"][li]
        cout = wmat.shape[0]
        m = aT.shape[1]
        if epi == "bn":
            # Pass A: GEMM tiles + exact cross-tile batch statistics.
            y, s, ss = _conv_gemm_stats(wmat, aT)
            gamma, beta = params["bn"][bn_idx]
            bn_idx += 1
            inv_m = 1.0 / m
            mean = s * inv_m
            var = jnp.maximum(ss * inv_m - mean * mean, 0.0)  # biased var
            scale = gamma * jax.lax.rsqrt(var + BN_EPS)
            shift = beta - mean * scale
            # Pass B: cheap tile-wise normalize + LeakyReLU over y (bf16).
            out = _bn_lrelu_apply(y, scale, shift)
        elif epi == "lrelu":
            out = _conv_gemm_act(wmat, aT, kernel=_gemm_lrelu_kernel,
                                 out_dtype=jnp.bfloat16)
        else:
            out = _conv_gemm_act(wmat, aT, kernel=_gemm_sigmoid_kernel,
                                 out_dtype=jnp.float32)
        x = out.reshape(cout, n, oh, ow)      # stay channels-first

    # x is (1, N, 1, 1)  ->  PyTorch Flatten + Sigmoid output shape (N, 1).
    return x.reshape(1, n).T


if __name__ == "__main__":
    ndf, nc, batch = 8, 3, 2
    key = jax.random.PRNGKey(0)
    k_x, k_p = jax.random.split(key)

    # 64x64 images (required by the 4x stride-2 convs + final 4x4 valid conv).
    x = jax.random.normal(k_x, (batch, nc, 64, 64), jnp.float32)
    params = init_discriminator_params(k_p, ndf, nc)

    out = discriminator_forward(x, params)
    out = jax.block_until_ready(out)
    assert out.shape == (batch, 1), out.shape
    assert bool(jnp.all(jnp.isfinite(out)))
    assert bool(jnp.all((out >= 0.0) & (out <= 1.0)))
    print("KERNEL_OK")
</pallas_src>

<mosaic_0001>
module attributes {stable_mosaic.version = 11 : i64} {
  func.func @_gemm_lrelu_kernel(%arg0: i32, %arg1: memref<8x48xbf16, #tpu.memory_space<vmem>>, %arg2: memref<48x1024xbf16, #tpu.memory_space<vmem>>, %arg3: memref<8x1024xbf16, #tpu.memory_space<vmem>>) attributes {dimension_semantics = [#tpu.dimension_semantics<parallel>], iteration_bounds = array<i64: 2>, scalar_prefetch = 0 : i64, scratch_operands = 0 : i64, tpu.core_type = #tpu.core_type<tc>, window_params = [{pipeline_mode = #tpu.pipeline_mode<synchronous>, transform_indices = @transform_0, window_bounds = array<i64: 8, 48>}, {transform_indices = @transform_1, window_bounds = array<i64: 48, 1024>}, {transform_indices = @transform_2, window_bounds = array<i64: 8, 1024>}]} {
    %c0 = arith.constant 0 : index
    %c0_0 = arith.constant 0 : index
    %0 = vector.load %arg1[%c0, %c0_0] : memref<8x48xbf16, #tpu.memory_space<vmem>>, vector<8x48xbf16>
    %c0_1 = arith.constant 0 : index
    %c0_2 = arith.constant 0 : index
    %1 = vector.load %arg2[%c0_1, %c0_2] : memref<48x1024xbf16, #tpu.memory_space<vmem>>, vector<48x1024xbf16>
    %cst = arith.constant dense<0.000000e+00> : vector<8x1024xf32>
    %2 = tpu.matmul %0, %1, %cst {dimension_numbers = #tpu.dot_dimension_numbers<[1], [0], [0], [1], [0, 0, 1, 1], [], []>} : vector<8x48xbf16>, vector<48x1024xbf16>, vector<8x1024xf32> -> vector<8x1024xf32>
    %cst_3 = arith.constant 0.000000e+00 : f32
    %3 = vector.broadcast %cst_3 : f32 to vector<8x1024xf32>
    %4 = arith.cmpf ogt, %2, %3 : vector<8x1024xf32>
    %cst_4 = arith.constant 2.000000e-01 : f32
    %5 = vector.broadcast %cst_4 : f32 to vector<8x1024xf32>
    %6 = arith.mulf %5, %2 : vector<8x1024xf32>
    %7 = arith.select %4, %2, %6 : vector<8x1024xi1>, vector<8x1024xf32>
    %8 = arith.truncf %7 : vector<8x1024xf32> to vector<8x1024xbf16>
    %c0_5 = arith.constant 0 : index
    %c0_6 = arith.constant 0 : index
    %9 = vector.load %arg3[%c0_5, %c0_6] : memref<8x1024xbf16, #tpu.memory_space<vmem>>, vector<8x1024xbf16>
    tpu.vector_store %arg3[%c0_5, %c0_6], %8 {strides = array<i32>} : memref<8x1024xbf16, #tpu.memory_space<vmem>>, vector<8x1024xbf16>,
    return
  }
  func.func @transform_0(%arg0: i32) -> (i32, i32) {
    %c0_i32 = arith.constant 0 : i32
    %c0_i32_0 = arith.constant 0 : i32
    %c0_i32_1 = arith.constant 0 : i32
    return %c0_i32, %c0_i32_0 : i32, i32
  }
  func.func @transform_1(%arg0: i32) -> (i32, i32) {
    %c0_i32 = arith.constant 0 : i32
    %c0_i32_0 = arith.constant 0 : i32
    return %c0_i32, %arg0 : i32, i32
  }
  func.func @transform_2(%arg0: i32) -> (i32, i32) {
    %c0_i32 = arith.constant 0 : i32
    %c0_i32_0 = arith.constant 0 : i32
    return %c0_i32, %arg0 : i32, i32
  }
}

module attributes {stable_mosaic.version = 11 : i64} {
  func.func @_gemm_stats_kernel(%arg0: i32, %arg1: memref<16x128xbf16, #tpu.memory_space<vmem>>, %arg2: memref<128x512xbf16, #tpu.memory_space<vmem>>, %arg3: memref<16x512xbf16, #tpu.memory_space<vmem>>, %arg4: memref<16x1xf32, #tpu.memory_space<vmem>>, %arg5: memref<16x1xf32, #tpu.memory_space<vmem>>) attributes {dimension_semantics = [#tpu.dimension_semantics<arbitrary>], iteration_bounds = array<i64: 1>, scalar_prefetch = 0 : i64, scratch_operands = 0 : i64, tpu.core_type = #tpu.core_type<tc>, window_params = [{pipeline_mode = #tpu.pipeline_mode<synchronous>, transform_indices = @transform_0, window_bounds = array<i64: 16, 128>}, {transform_indices = @transform_1, window_bounds = array<i64: 128, 512>}, {transform_indices = @transform_2, window_bounds = array<i64: 16, 512>}, {pipeline_mode = #tpu.pipeline_mode<synchronous>, transform_indices = @transform_3, window_bounds = array<i64: 16, 1>}, {pipeline_mode = #tpu.pipeline_mode<synchronous>, transform_indices = @transform_4, window_bounds = array<i64: 16, 1>}]} {
    %c0_i32 = arith.constant 0 : i32
    %0 = arith.cmpi eq, %arg0, %c0_i32 : i32
    %1 = arith.extui %0 : i1 to i32
    %c0_i32_0 = arith.constant 0 : i32
    %2 = arith.cmpi ne, %1, %c0_i32_0 : i32
    scf.if %2 {
      %cst_16 = arith.constant 0.000000e+00 : f32
      %19 = vector.broadcast %cst_16 : f32 to vector<16x1xf32>
      %c0_17 = arith.constant 0 : index
      %c0_18 = arith.constant 0 : index
      %20 = vector.load %arg4[%c0_17, %c0_18] : memref<16x1xf32, #tpu.memory_space<vmem>>, vector<16x1xf32>
      tpu.vector_store %arg4[%c0_17, %c0_18], %19 {strides = array<i32>} : memref<16x1xf32, #tpu.memory_space<vmem>>, vector<16x1xf32>,
      %cst_19 = arith.constant 0.000000e+00 : f32
      %21 = vector.broadcast %cst_19 : f32 to vector<16x1xf32>
      %c0_20 = arith.constant 0 : index
      %c0_21 = arith.constant 0 : index
      %22 = vector.load %arg5[%c0_20, %c0_21] : memref<16x1xf32, #tpu.memory_space<vmem>>, vector<16x1xf32>
      tpu.vector_store %arg5[%c0_20, %c0_21], %21 {strides = array<i32>} : memref<16x1xf32, #tpu.memory_space<vmem>>, vector<16x1xf32>,
    } else {
    }
    %c0 = arith.constant 0 : index
    %c0_1 = arith.constant 0 : index
    %3 = vector.load %arg1[%c0, %c0_1] : memref<16x128xbf16, #tpu.memory_space<vmem>>, vector<16x128xbf16>
    %c0_2 = arith.constant 0 : index
    %c0_3 = arith.constant 0 : index
    %4 = vector.load %arg2[%c0_2, %c0_3] : memref<128x512xbf16, #tpu.memory_space<vmem>>, vector<128x512xbf16>
    %cst = arith.constant dense<0.000000e+00> : vector<16x512xf32>
    %5 = tpu.matmul %3, %4, %cst {dimension_numbers = #tpu.dot_dimension_numbers<[1], [0], [0], [1], [0, 0, 1, 1], [], []>} : vector<16x128xbf16>, vector<128x512xbf16>, vector<16x512xf32> -> vector<16x512xf32>
    %6 = arith.truncf %5 : vector<16x512xf32> to vector<16x512xbf16>
    %c0_4 = arith.constant 0 : index
    %c0_5 = arith.constant 0 : index
    %7 = vector.load %arg3[%c0_4, %c0_5] : memref<16x512xbf16, #tpu.memory_space<vmem>>, vector<16x512xbf16>
    tpu.vector_store %arg3[%c0_4, %c0_5], %6 {strides = array<i32>} : memref<16x512xbf16, #tpu.memory_space<vmem>>, vector<16x512xbf16>,
    %c0_6 = arith.constant 0 : index
    %c0_7 = arith.constant 0 : index
    %8 = vector.load %arg4[%c0_6, %c0_7] : memref<16x1xf32, #tpu.memory_space<vmem>>, vector<16x1xf32>
    %cst_8 = arith.constant dense<0.000000e+00> : vector<16xf32>
    %9 = vector.multi_reduction <add>, %5, %cst_8 [1] : vector<16x512xf32> to vector<16xf32>
    %10 = vector.shape_cast %9 : vector<16xf32> to vector<16x1xf32>
    %11 = arith.addf %8, %10 : vector<16x1xf32>
    %c0_9 = arith.constant 0 : index
    %c0_10 = arith.constant 0 : index
    %12 = vector.load %arg4[%c0_9, %c0_10] : memref<16x1xf32, #tpu.memory_space<vmem>>, vector<16x1xf32>
    tpu.vector_store %arg4[%c0_9, %c0_10], %11 {strides = array<i32>} : memref<16x1xf32, #tpu.memory_space<vmem>>, vector<16x1xf32>,
    %c0_11 = arith.constant 0 : index
    %c0_12 = arith.constant 0 : index
    %13 = vector.load %arg5[%c0_11, %c0_12] : memref<16x1xf32, #tpu.memory_space<vmem>>, vector<16x1xf32>
    %14 = arith.mulf %5, %5 : vector<16x512xf32>
    %cst_13 = arith.constant dense<0.000000e+00> : vector<16xf32>
    %15 = vector.multi_reduction <add>, %14, %cst_13 [1] : vector<16x512xf32> to vector<16xf32>
    %16 = vector.shape_cast %15 : vector<16xf32> to vector<16x1xf32>
    %17 = arith.addf %13, %16 : vector<16x1xf32>
    %c0_14 = arith.constant 0 : index
    %c0_15 = arith.constant 0 : index
    %18 = vector.load %arg5[%c0_14, %c0_15] : memref<16x1xf32, #tpu.memory_space<vmem>>, vector<16x1xf32>
    tpu.vector_store %arg5[%c0_14, %c0_15], %17 {strides = array<i32>} : memref<16x1xf32, #tpu.memory_space<vmem>>, vector<16x1xf32>,
    return
  }
  func.func @transform_0(%arg0: i32) -> (i32, i32) {
    %c0_i32 = arith.constant 0 : i32
    %c0_i32_0 = arith.constant 0 : i32
    %c0_i32_1 = arith.constant 0 : i32
    return %c0_i32, %c0_i32_0 : i32, i32
  }
  func.func @transform_1(%arg0: i32) -> (i32, i32) {
    %c0_i32 = arith.constant 0 : i32
    %c0_i32_0 = arith.constant 0 : i32
    return %c0_i32, %arg0 : i32, i32
  }
  func.func @transform_2(%arg0: i32) -> (i32, i32) {
    %c0_i32 = arith.constant 0 : i32
    %c0_i32_0 = arith.constant 0 : i32
    return %c0_i32, %arg0 : i32, i32
  }
  func.func @transform_3(%arg0: i32) -> (i32, i32) {
    %c0_i32 = arith.constant 0 : i32
    %c0_i32_0 = arith.constant 0 : i32
    %c0_i32_1 = arith.constant 0 : i32
    return %c0_i32, %c0_i32_0 : i32, i32
  }
  func.func @transform_4(%arg0: i32) -> (i32, i32) {
    %c0_i32 = arith.constant 0 : i32
    %c0_i32_0 = arith.constant 0 : i32
    %c0_i32_1 = arith.constant 0 : i32
    return %c0_i32, %c0_i32_0 : i32, i32
  }
}

module attributes {stable_mosaic.version = 11 : i64} {
  func.func @_bn_lrelu_kernel(%arg0: i32, %arg1: memref<16x512xbf16, #tpu.memory_space<vmem>>, %arg2: memref<16x1xf32, #tpu.memory_space<vmem>>, %arg3: memref<16x1xf32, #tpu.memory_space<vmem>>, %arg4: memref<16x512xbf16, #tpu.memory_space<vmem>>) attributes {dimension_semantics = [#tpu.dimension_semantics<parallel>], iteration_bounds = array<i64: 1>, scalar_prefetch = 0 : i64, scratch_operands = 0 : i64, tpu.core_type = #tpu.core_type<tc>, window_params = [{transform_indices = @transform_0, window_bounds = array<i64: 16, 512>}, {pipeline_mode = #tpu.pipeline_mode<synchronous>, transform_indices = @transform_1, window_bounds = array<i64: 16, 1>}, {pipeline_mode = #tpu.pipeline_mode<synchronous>, transform_indices = @transform_2, window_bounds = array<i64: 16, 1>}, {transform_indices = @transform_3, window_bounds = array<i64: 16, 512>}]} {
    %c0 = arith.constant 0 : index
    %c0_0 = arith.constant 0 : index
    %0 = vector.load %arg1[%c0, %c0_0] : memref<16x512xbf16, #tpu.memory_space<vmem>>, vector<16x512xbf16>
    %1 = arith.extf %0 : vector<16x512xbf16> to vector<16x512xf32>
    %c0_1 = arith.constant 0 : index
    %c0_2 = arith.constant 0 : index
    %2 = vector.load %arg2[%c0_1, %c0_2] : memref<16x1xf32, #tpu.memory_space<vmem>>, vector<16x1xf32>
    %3 = vector.broadcast %2 : vector<16x1xf32> to vector<16x512xf32>
    %4 = arith.mulf %1, %3 : vector<16x512xf32>
    %c0_3 = arith.constant 0 : index
    %c0_4 = arith.constant 0 : index
    %5 = vector.load %arg3[%c0_3, %c0_4] : memref<16x1xf32, #tpu.memory_space<vmem>>, vector<16x1xf32>
    %6 = vector.broadcast %5 : vector<16x1xf32> to vector<16x512xf32>
    %7 = arith.addf %4, %6 : vector<16x512xf32>
    %cst = arith.constant 0.000000e+00 : f32
    %8 = vector.broadcast %cst : f32 to vector<16x512xf32>
    %9 = arith.cmpf ogt, %7, %8 : vector<16x512xf32>
    %cst_5 = arith.constant 2.000000e-01 : f32
    %10 = vector.broadcast %cst_5 : f32 to vector<16x512xf32>
    %11 = arith.mulf %10, %7 : vector<16x512xf32>
    %12 = arith.select %9, %7, %11 : vector<16x512xi1>, vector<16x512xf32>
    %13 = arith.truncf %12 : vector<16x512xf32> to vector<16x512xbf16>
    %c0_6 = arith.constant 0 : index
    %c0_7 = arith.constant 0 : index
    %14 = vector.load %arg4[%c0_6, %c0_7] : memref<16x512xbf16, #tpu.memory_space<vmem>>, vector<16x512xbf16>
    tpu.vector_store %arg4[%c0_6, %c0_7], %13 {strides = array<i32>} : memref<16x512xbf16, #tpu.memory_space<vmem>>, vector<16x512xbf16>,
    return
  }
  func.func @transform_0(%arg0: i32) -> (i32, i32) {
    %c0_i32 = arith.constant 0 : i32
    %c0_i32_0 = arith.constant 0 : i32
    return %c0_i32, %arg0 : i32, i32
  }
  func.func @transform_1(%arg0: i32) -> (i32, i32) {
    %c0_i32 = arith.constant 0 : i32
    %c0_i32_0 = arith.constant 0 : i32
    %c0_i32_1 = arith.constant 0 : i32
    return %c0_i32, %c0_i32_0 : i32, i32
  }
  func.func @transform_2(%arg0: i32) -> (i32, i32) {
    %c0_i32 = arith.constant 0 : i32
    %c0_i32_0 = arith.constant 0 : i32
    %c0_i32_1 = arith.constant 0 : i32
    return %c0_i32, %c0_i32_0 : i32, i32
  }
  func.func @transform_3(%arg0: i32) -> (i32, i32) {
    %c0_i32 = arith.constant 0 : i32
    %c0_i32_0 = arith.constant 0 : i32
    return %c0_i32, %arg0 : i32, i32
  }
}

module attributes {stable_mosaic.version = 11 : i64} {
  func.func @_bn_lrelu_kernel(%arg0: i32, %arg1: memref<32x128xbf16, #tpu.memory_space<vmem>>, %arg2: memref<32x1xf32, #tpu.memory_space<vmem>>, %arg3: memref<32x1xf32, #tpu.memory_space<vmem>>, %arg4: memref<32x128xbf16, #tpu.memory_space<vmem>>) attributes {dimension_semantics = [#tpu.dimension_semantics<parallel>], iteration_bounds = array<i64: 1>, scalar_prefetch = 0 : i64, scratch_operands = 0 : i64, tpu.core_type = #tpu.core_type<tc>, window_params = [{transform_indices = @transform_0, window_bounds = array<i64: 32, 128>}, {pipeline_mode = #tpu.pipeline_mode<synchronous>, transform_indices = @transform_1, window_bounds = array<i64: 32, 1>}, {pipeline_mode = #tpu.pipeline_mode<synchronous>, transform_indices = @transform_2, window_bounds = array<i64: 32, 1>}, {transform_indices = @transform_3, window_bounds = array<i64: 32, 128>}]} {
    %c0 = arith.constant 0 : index
    %c0_0 = arith.constant 0 : index
    %0 = vector.load %arg1[%c0, %c0_0] : memref<32x128xbf16, #tpu.memory_space<vmem>>, vector<32x128xbf16>
    %1 = arith.extf %0 : vector<32x128xbf16> to vector<32x128xf32>
    %c0_1 = arith.constant 0 : index
    %c0_2 = arith.constant 0 : index
    %2 = vector.load %arg2[%c0_1, %c0_2] : memref<32x1xf32, #tpu.memory_space<vmem>>, vector<32x1xf32>
    %3 = vector.broadcast %2 : vector<32x1xf32> to vector<32x128xf32>
    %4 = arith.mulf %1, %3 : vector<32x128xf32>
    %c0_3 = arith.constant 0 : index
    %c0_4 = arith.constant 0 : index
    %5 = vector.load %arg3[%c0_3, %c0_4] : memref<32x1xf32, #tpu.memory_space<vmem>>, vector<32x1xf32>
    %6 = vector.broadcast %5 : vector<32x1xf32> to vector<32x128xf32>
    %7 = arith.addf %4, %6 : vector<32x128xf32>
    %cst = arith.constant 0.000000e+00 : f32
    %8 = vector.broadcast %cst : f32 to vector<32x128xf32>
    %9 = arith.cmpf ogt, %7, %8 : vector<32x128xf32>
    %cst_5 = arith.constant 2.000000e-01 : f32
    %10 = vector.broadcast %cst_5 : f32 to vector<32x128xf32>
    %11 = arith.mulf %10, %7 : vector<32x128xf32>
    %12 = arith.select %9, %7, %11 : vector<32x128xi1>, vector<32x128xf32>
    %13 = arith.truncf %12 : vector<32x128xf32> to vector<32x128xbf16>
    %c0_6 = arith.constant 0 : index
    %c0_7 = arith.constant 0 : index
    %14 = vector.load %arg4[%c0_6, %c0_7] : memref<32x128xbf16, #tpu.memory_space<vmem>>, vector<32x128xbf16>
    tpu.vector_store %arg4[%c0_6, %c0_7], %13 {strides = array<i32>} : memref<32x128xbf16, #tpu.memory_space<vmem>>, vector<32x128xbf16>,
    return
  }
  func.func @transform_0(%arg0: i32) -> (i32, i32) {
    %c0_i32 = arith.constant 0 : i32
    %c0_i32_0 = arith.constant 0 : i32
    return %c0_i32, %arg0 : i32, i32
  }
  func.func @transform_1(%arg0: i32) -> (i32, i32) {
    %c0_i32 = arith.constant 0 : i32
    %c0_i32_0 = arith.constant 0 : i32
    %c0_i32_1 = arith.constant 0 : i32
    return %c0_i32, %c0_i32_0 : i32, i32
  }
  func.func @transform_2(%arg0: i32) -> (i32, i32) {
    %c0_i32 = arith.constant 0 : i32
    %c0_i32_0 = arith.constant 0 : i32
    %c0_i32_1 = arith.constant 0 : i32
    return %c0_i32, %c0_i32_0 : i32, i32
  }
  func.func @transform_3(%arg0: i32) -> (i32, i32) {
    %c0_i32 = arith.constant 0 : i32
    %c0_i32_0 = arith.constant 0 : i32
    return %c0_i32, %arg0 : i32, i32
  }
}

module attributes {stable_mosaic.version = 11 : i64} {
  func.func @_gemm_stats_kernel(%arg0: i32, %arg1: memref<32x256xbf16, #tpu.memory_space<vmem>>, %arg2: memref<256x128xbf16, #tpu.memory_space<vmem>>, %arg3: memref<32x128xbf16, #tpu.memory_space<vmem>>, %arg4: memref<32x1xf32, #tpu.memory_space<vmem>>, %arg5: memref<32x1xf32, #tpu.memory_space<vmem>>) attributes {dimension_semantics = [#tpu.dimension_semantics<arbitrary>], iteration_bounds = array<i64: 1>, scalar_prefetch = 0 : i64, scratch_operands = 0 : i64, tpu.core_type = #tpu.core_type<tc>, window_params = [{pipeline_mode = #tpu.pipeline_mode<synchronous>, transform_indices = @transform_0, window_bounds = array<i64: 32, 256>}, {transform_indices = @transform_1, window_bounds = array<i64: 256, 128>}, {transform_indices = @transform_2, window_bounds = array<i64: 32, 128>}, {pipeline_mode = #tpu.pipeline_mode<synchronous>, transform_indices = @transform_3, window_bounds = array<i64: 32, 1>}, {pipeline_mode = #tpu.pipeline_mode<synchronous>, transform_indices = @transform_4, window_bounds = array<i64: 32, 1>}]} {
    %c0_i32 = arith.constant 0 : i32
    %0 = arith.cmpi eq, %arg0, %c0_i32 : i32
    %1 = arith.extui %0 : i1 to i32
    %c0_i32_0 = arith.constant 0 : i32
    %2 = arith.cmpi ne, %1, %c0_i32_0 : i32
    scf.if %2 {
      %cst_16 = arith.constant 0.000000e+00 : f32
      %19 = vector.broadcast %cst_16 : f32 to vector<32x1xf32>
      %c0_17 = arith.constant 0 : index
      %c0_18 = arith.constant 0 : index
      %20 = vector.load %arg4[%c0_17, %c0_18] : memref<32x1xf32, #tpu.memory_space<vmem>>, vector<32x1xf32>
      tpu.vector_store %arg4[%c0_17, %c0_18], %19 {strides = array<i32>} : memref<32x1xf32, #tpu.memory_space<vmem>>, vector<32x1xf32>,
      %cst_19 = arith.constant 0.000000e+00 : f32
      %21 = vector.broadcast %cst_19 : f32 to vector<32x1xf32>
      %c0_20 = arith.constant 0 : index
      %c0_21 = arith.constant 0 : index
      %22 = vector.load %arg5[%c0_20, %c0_21] : memref<32x1xf32, #tpu.memory_space<vmem>>, vector<32x1xf32>
      tpu.vector_store %arg5[%c0_20, %c0_21], %21 {strides = array<i32>} : memref<32x1xf32, #tpu.memory_space<vmem>>, vector<32x1xf32>,
    } else {
    }
    %c0 = arith.constant 0 : index
    %c0_1 = arith.constant 0 : index
    %3 = vector.load %arg1[%c0, %c0_1] : memref<32x256xbf16, #tpu.memory_space<vmem>>, vector<32x256xbf16>
    %c0_2 = arith.constant 0 : index
    %c0_3 = arith.constant 0 : index
    %4 = vector.load %arg2[%c0_2, %c0_3] : memref<256x128xbf16, #tpu.memory_space<vmem>>, vector<256x128xbf16>
    %cst = arith.constant dense<0.000000e+00> : vector<32x128xf32>
    %5 = tpu.matmul %3, %4, %cst {dimension_numbers = #tpu.dot_dimension_numbers<[1], [0], [0], [1], [0, 0, 1, 1], [], []>} : vector<32x256xbf16>, vector<256x128xbf16>, vector<32x128xf32> -> vector<32x128xf32>
    %6 = arith.truncf %5 : vector<32x128xf32> to vector<32x128xbf16>
    %c0_4 = arith.constant 0 : index
    %c0_5 = arith.constant 0 : index
    %7 = vector.load %arg3[%c0_4, %c0_5] : memref<32x128xbf16, #tpu.memory_space<vmem>>, vector<32x128xbf16>
    tpu.vector_store %arg3[%c0_4, %c0_5], %6 {strides = array<i32>} : memref<32x128xbf16, #tpu.memory_space<vmem>>, vector<32x128xbf16>,
    %c0_6 = arith.constant 0 : index
    %c0_7 = arith.constant 0 : index
    %8 = vector.load %arg4[%c0_6, %c0_7] : memref<32x1xf32, #tpu.memory_space<vmem>>, vector<32x1xf32>
    %cst_8 = arith.constant dense<0.000000e+00> : vector<32xf32>
    %9 = vector.multi_reduction <add>, %5, %cst_8 [1] : vector<32x128xf32> to vector<32xf32>
    %10 = vector.shape_cast %9 : vector<32xf32> to vector<32x1xf32>
    %11 = arith.addf %8, %10 : vector<32x1xf32>
    %c0_9 = arith.constant 0 : index
    %c0_10 = arith.constant 0 : index
    %12 = vector.load %arg4[%c0_9, %c0_10] : memref<32x1xf32, #tpu.memory_space<vmem>>, vector<32x1xf32>
    tpu.vector_store %arg4[%c0_9, %c0_10], %11 {strides = array<i32>} : memref<32x1xf32, #tpu.memory_space<vmem>>, vector<32x1xf32>,
    %c0_11 = arith.constant 0 : index
    %c0_12 = arith.constant 0 : index
    %13 = vector.load %arg5[%c0_11, %c0_12] : memref<32x1xf32, #tpu.memory_space<vmem>>, vector<32x1xf32>
    %14 = arith.mulf %5, %5 : vector<32x128xf32>
    %cst_13 = arith.constant dense<0.000000e+00> : vector<32xf32>
    %15 = vector.multi_reduction <add>, %14, %cst_13 [1] : vector<32x128xf32> to vector<32xf32>
    %16 = vector.shape_cast %15 : vector<32xf32> to vector<32x1xf32>
    %17 = arith.addf %13, %16 : vector<32x1xf32>
    %c0_14 = arith.constant 0 : index
    %c0_15 = arith.constant 0 : index
    %18 = vector.load %arg5[%c0_14, %c0_15] : memref<32x1xf32, #tpu.memory_space<vmem>>, vector<32x1xf32>
    tpu.vector_store %arg5[%c0_14, %c0_15], %17 {strides = array<i32>} : memref<32x1xf32, #tpu.memory_space<vmem>>, vector<32x1xf32>,
    return
  }
  func.func @transform_0(%arg0: i32) -> (i32, i32) {
    %c0_i32 = arith.constant 0 : i32
    %c0_i32_0 = arith.constant 0 : i32
    %c0_i32_1 = arith.constant 0 : i32
    return %c0_i32, %c0_i32_0 : i32, i32
  }
  func.func @transform_1(%arg0: i32) -> (i32, i32) {
    %c0_i32 = arith.constant 0 : i32
    %c0_i32_0 = arith.constant 0 : i32
    return %c0_i32, %arg0 : i32, i32
  }
  func.func @transform_2(%arg0: i32) -> (i32, i32) {
    %c0_i32 = arith.constant 0 : i32
    %c0_i32_0 = arith.constant 0 : i32
    return %c0_i32, %arg0 : i32, i32
  }
  func.func @transform_3(%arg0: i32) -> (i32, i32) {
    %c0_i32 = arith.constant 0 : i32
    %c0_i32_0 = arith.constant 0 : i32
    %c0_i32_1 = arith.constant 0 : i32
    return %c0_i32, %c0_i32_0 : i32, i32
  }
  func.func @transform_4(%arg0: i32) -> (i32, i32) {
    %c0_i32 = arith.constant 0 : i32
    %c0_i32_0 = arith.constant 0 : i32
    %c0_i32_1 = arith.constant 0 : i32
    return %c0_i32, %c0_i32_0 : i32, i32
  }
}

module attributes {stable_mosaic.version = 11 : i64} {
  func.func @_gemm_stats_kernel(%arg0: i32, %arg1: memref<64x512xbf16, #tpu.memory_space<vmem>>, %arg2: memref<512x32xbf16, #tpu.memory_space<vmem>>, %arg3: memref<64x32xbf16, #tpu.memory_space<vmem>>, %arg4: memref<64x1xf32, #tpu.memory_space<vmem>>, %arg5: memref<64x1xf32, #tpu.memory_space<vmem>>) attributes {dimension_semantics = [#tpu.dimension_semantics<arbitrary>], iteration_bounds = array<i64: 1>, scalar_prefetch = 0 : i64, scratch_operands = 0 : i64, tpu.core_type = #tpu.core_type<tc>, window_params = [{pipeline_mode = #tpu.pipeline_mode<synchronous>, transform_indices = @transform_0, window_bounds = array<i64: 64, 512>}, {transform_indices = @transform_1, window_bounds = array<i64: 512, 32>}, {transform_indices = @transform_2, window_bounds = array<i64: 64, 32>}, {pipeline_mode = #tpu.pipeline_mode<synchronous>, transform_indices = @transform_3, window_bounds = array<i64: 64, 1>}, {pipeline_mode = #tpu.pipeline_mode<synchronous>, transform_indices = @transform_4, window_bounds = array<i64: 64, 1>}]} {
    %c0_i32 = arith.constant 0 : i32
    %0 = arith.cmpi eq, %arg0, %c0_i32 : i32
    %1 = arith.extui %0 : i1 to i32
    %c0_i32_0 = arith.constant 0 : i32
    %2 = arith.cmpi ne, %1, %c0_i32_0 : i32
    scf.if %2 {
      %cst_16 = arith.constant 0.000000e+00 : f32
      %19 = vector.broadcast %cst_16 : f32 to vector<64x1xf32>
      %c0_17 = arith.constant 0 : index
      %c0_18 = arith.constant 0 : index
      %20 = vector.load %arg4[%c0_17, %c0_18] : memref<64x1xf32, #tpu.memory_space<vmem>>, vector<64x1xf32>
      tpu.vector_store %arg4[%c0_17, %c0_18], %19 {strides = array<i32>} : memref<64x1xf32, #tpu.memory_space<vmem>>, vector<64x1xf32>,
      %cst_19 = arith.constant 0.000000e+00 : f32
      %21 = vector.broadcast %cst_19 : f32 to vector<64x1xf32>
      %c0_20 = arith.constant 0 : index
      %c0_21 = arith.constant 0 : index
      %22 = vector.load %arg5[%c0_20, %c0_21] : memref<64x1xf32, #tpu.memory_space<vmem>>, vector<64x1xf32>
      tpu.vector_store %arg5[%c0_20, %c0_21], %21 {strides = array<i32>} : memref<64x1xf32, #tpu.memory_space<vmem>>, vector<64x1xf32>,
    } else {
    }
    %c0 = arith.constant 0 : index
    %c0_1 = arith.constant 0 : index
    %3 = vector.load %arg1[%c0, %c0_1] : memref<64x512xbf16, #tpu.memory_space<vmem>>, vector<64x512xbf16>
    %c0_2 = arith.constant 0 : index
    %c0_3 = arith.constant 0 : index
    %4 = vector.load %arg2[%c0_2, %c0_3] : memref<512x32xbf16, #tpu.memory_space<vmem>>, vector<512x32xbf16>
    %cst = arith.constant dense<0.000000e+00> : vector<64x32xf32>
    %5 = tpu.matmul %3, %4, %cst {dimension_numbers = #tpu.dot_dimension_numbers<[1], [0], [0], [1], [0, 0, 1, 1], [], []>} : vector<64x512xbf16>, vector<512x32xbf16>, vector<64x32xf32> -> vector<64x32xf32>
    %6 = arith.truncf %5 : vector<64x32xf32> to vector<64x32xbf16>
    %c0_4 = arith.constant 0 : index
    %c0_5 = arith.constant 0 : index
    %7 = vector.load %arg3[%c0_4, %c0_5] : memref<64x32xbf16, #tpu.memory_space<vmem>>, vector<64x32xbf16>
    tpu.vector_store %arg3[%c0_4, %c0_5], %6 {strides = array<i32>} : memref<64x32xbf16, #tpu.memory_space<vmem>>, vector<64x32xbf16>,
    %c0_6 = arith.constant 0 : index
    %c0_7 = arith.constant 0 : index
    %8 = vector.load %arg4[%c0_6, %c0_7] : memref<64x1xf32, #tpu.memory_space<vmem>>, vector<64x1xf32>
    %cst_8 = arith.constant dense<0.000000e+00> : vector<64xf32>
    %9 = vector.multi_reduction <add>, %5, %cst_8 [1] : vector<64x32xf32> to vector<64xf32>
    %10 = vector.shape_cast %9 : vector<64xf32> to vector<64x1xf32>
    %11 = arith.addf %8, %10 : vector<64x1xf32>
    %c0_9 = arith.constant 0 : index
    %c0_10 = arith.constant 0 : index
    %12 = vector.load %arg4[%c0_9, %c0_10] : memref<64x1xf32, #tpu.memory_space<vmem>>, vector<64x1xf32>
    tpu.vector_store %arg4[%c0_9, %c0_10], %11 {strides = array<i32>} : memref<64x1xf32, #tpu.memory_space<vmem>>, vector<64x1xf32>,
    %c0_11 = arith.constant 0 : index
    %c0_12 = arith.constant 0 : index
    %13 = vector.load %arg5[%c0_11, %c0_12] : memref<64x1xf32, #tpu.memory_space<vmem>>, vector<64x1xf32>
    %14 = arith.mulf %5, %5 : vector<64x32xf32>
    %cst_13 = arith.constant dense<0.000000e+00> : vector<64xf32>
    %15 = vector.multi_reduction <add>, %14, %cst_13 [1] : vector<64x32xf32> to vector<64xf32>
    %16 = vector.shape_cast %15 : vector<64xf32> to vector<64x1xf32>
    %17 = arith.addf %13, %16 : vector<64x1xf32>
    %c0_14 = arith.constant 0 : index
    %c0_15 = arith.constant 0 : index
    %18 = vector.load %arg5[%c0_14, %c0_15] : memref<64x1xf32, #tpu.memory_space<vmem>>, vector<64x1xf32>
    tpu.vector_store %arg5[%c0_14, %c0_15], %17 {strides = array<i32>} : memref<64x1xf32, #tpu.memory_space<vmem>>, vector<64x1xf32>,
    return
  }
  func.func @transform_0(%arg0: i32) -> (i32, i32) {
    %c0_i32 = arith.constant 0 : i32
    %c0_i32_0 = arith.constant 0 : i32
    %c0_i32_1 = arith.constant 0 : i32
    return %c0_i32, %c0_i32_0 : i32, i32
  }
  func.func @transform_1(%arg0: i32) -> (i32, i32) {
    %c0_i32 = arith.constant 0 : i32
    %c0_i32_0 = arith.constant 0 : i32
    return %c0_i32, %arg0 : i32, i32
  }
  func.func @transform_2(%arg0: i32) -> (i32, i32) {
    %c0_i32 = arith.constant 0 : i32
    %c0_i32_0 = arith.constant 0 : i32
    return %c0_i32, %arg0 : i32, i32
  }
  func.func @transform_3(%arg0: i32) -> (i32, i32) {
    %c0_i32 = arith.constant 0 : i32
    %c0_i32_0 = arith.constant 0 : i32
    %c0_i32_1 = arith.constant 0 : i32
    return %c0_i32, %c0_i32_0 : i32, i32
  }
  func.func @transform_4(%arg0: i32) -> (i32, i32) {
    %c0_i32 = arith.constant 0 : i32
    %c0_i32_0 = arith.constant 0 : i32
    %c0_i32_1 = arith.constant 0 : i32
    return %c0_i32, %c0_i32_0 : i32, i32
  }
}

module attributes {stable_mosaic.version = 11 : i64} {
  func.func @_bn_lrelu_kernel(%arg0: i32, %arg1: memref<64x32xbf16, #tpu.memory_space<vmem>>, %arg2: memref<64x1xf32, #tpu.memory_space<vmem>>, %arg3: memref<64x1xf32, #tpu.memory_space<vmem>>, %arg4: memref<64x32xbf16, #tpu.memory_space<vmem>>) attributes {dimension_semantics = [#tpu.dimension_semantics<parallel>], iteration_bounds = array<i64: 1>, scalar_prefetch = 0 : i64, scratch_operands = 0 : i64, tpu.core_type = #tpu.core_type<tc>, window_params = [{transform_indices = @transform_0, window_bounds = array<i64: 64, 32>}, {pipeline_mode = #tpu.pipeline_mode<synchronous>, transform_indices = @transform_1, window_bounds = array<i64: 64, 1>}, {pipeline_mode = #tpu.pipeline_mode<synchronous>, transform_indices = @transform_2, window_bounds = array<i64: 64, 1>}, {transform_indices = @transform_3, window_bounds = array<i64: 64, 32>}]} {
    %c0 = arith.constant 0 : index
    %c0_0 = arith.constant 0 : index
    %0 = vector.load %arg1[%c0, %c0_0] : memref<64x32xbf16, #tpu.memory_space<vmem>>, vector<64x32xbf16>
    %1 = arith.extf %0 : vector<64x32xbf16> to vector<64x32xf32>
    %c0_1 = arith.constant 0 : index
    %c0_2 = arith.constant 0 : index
    %2 = vector.load %arg2[%c0_1, %c0_2] : memref<64x1xf32, #tpu.memory_space<vmem>>, vector<64x1xf32>
    %3 = vector.broadcast %2 : vector<64x1xf32> to vector<64x32xf32>
    %4 = arith.mulf %1, %3 : vector<64x32xf32>
    %c0_3 = arith.constant 0 : index
    %c0_4 = arith.constant 0 : index
    %5 = vector.load %arg3[%c0_3, %c0_4] : memref<64x1xf32, #tpu.memory_space<vmem>>, vector<64x1xf32>
    %6 = vector.broadcast %5 : vector<64x1xf32> to vector<64x32xf32>
    %7 = arith.addf %4, %6 : vector<64x32xf32>
    %cst = arith.constant 0.000000e+00 : f32
    %8 = vector.broadcast %cst : f32 to vector<64x32xf32>
    %9 = arith.cmpf ogt, %7, %8 : vector<64x32xf32>
    %cst_5 = arith.constant 2.000000e-01 : f32
    %10 = vector.broadcast %cst_5 : f32 to vector<64x32xf32>
    %11 = arith.mulf %10, %7 : vector<64x32xf32>
    %12 = arith.select %9, %7, %11 : vector<64x32xi1>, vector<64x32xf32>
    %13 = arith.truncf %12 : vector<64x32xf32> to vector<64x32xbf16>
    %c0_6 = arith.constant 0 : index
    %c0_7 = arith.constant 0 : index
    %14 = vector.load %arg4[%c0_6, %c0_7] : memref<64x32xbf16, #tpu.memory_space<vmem>>, vector<64x32xbf16>
    tpu.vector_store %arg4[%c0_6, %c0_7], %13 {strides = array<i32>} : memref<64x32xbf16, #tpu.memory_space<vmem>>, vector<64x32xbf16>,
    return
  }
  func.func @transform_0(%arg0: i32) -> (i32, i32) {
    %c0_i32 = arith.constant 0 : i32
    %c0_i32_0 = arith.constant 0 : i32
    return %c0_i32, %arg0 : i32, i32
  }
  func.func @transform_1(%arg0: i32) -> (i32, i32) {
    %c0_i32 = arith.constant 0 : i32
    %c0_i32_0 = arith.constant 0 : i32
    %c0_i32_1 = arith.constant 0 : i32
    return %c0_i32, %c0_i32_0 : i32, i32
  }
  func.func @transform_2(%arg0: i32) -> (i32, i32) {
    %c0_i32 = arith.constant 0 : i32
    %c0_i32_0 = arith.constant 0 : i32
    %c0_i32_1 = arith.constant 0 : i32
    return %c0_i32, %c0_i32_0 : i32, i32
  }
  func.func @transform_3(%arg0: i32) -> (i32, i32) {
    %c0_i32 = arith.constant 0 : i32
    %c0_i32_0 = arith.constant 0 : i32
    return %c0_i32, %arg0 : i32, i32
  }
}

module attributes {stable_mosaic.version = 11 : i64} {
  func.func @_gemm_sigmoid_kernel(%arg0: i32, %arg1: memref<1x1024xbf16, #tpu.memory_space<vmem>>, %arg2: memref<1024x2xbf16, #tpu.memory_space<vmem>>, %arg3: memref<1x2xf32, #tpu.memory_space<vmem>>) attributes {dimension_semantics = [#tpu.dimension_semantics<parallel>], iteration_bounds = array<i64: 1>, scalar_prefetch = 0 : i64, scratch_operands = 0 : i64, tpu.core_type = #tpu.core_type<tc>, window_params = [{pipeline_mode = #tpu.pipeline_mode<synchronous>, transform_indices = @transform_0, window_bounds = array<i64: 1, 1024>}, {transform_indices = @transform_1, window_bounds = array<i64: 1024, 2>}, {transform_indices = @transform_2, window_bounds = array<i64: 1, 2>}]} {
    %c0 = arith.constant 0 : index
    %c0_0 = arith.constant 0 : index
    %0 = vector.load %arg1[%c0, %c0_0] : memref<1x1024xbf16, #tpu.memory_space<vmem>>, vector<1x1024xbf16>
    %c0_1 = arith.constant 0 : index
    %c0_2 = arith.constant 0 : index
    %1 = vector.load %arg2[%c0_1, %c0_2] : memref<1024x2xbf16, #tpu.memory_space<vmem>>, vector<1024x2xbf16>
    %cst = arith.constant dense<0.000000e+00> : vector<1x2xf32>
    %2 = tpu.matmul %0, %1, %cst {dimension_numbers = #tpu.dot_dimension_numbers<[1], [0], [0], [1], [0, 0, 1, 1], [], []>} : vector<1x1024xbf16>, vector<1024x2xbf16>, vector<1x2xf32> -> vector<1x2xf32>
    %cst_3 = arith.constant 0.000000e+00 : f32
    %3 = vector.broadcast %cst_3 : f32 to vector<1x2xf32>
    %4 = arith.subf %3, %2 : vector<1x2xf32>
    %5 = math.exp %4 : vector<1x2xf32>
    %cst_4 = arith.constant 1.000000e+00 : f32
    %6 = vector.broadcast %cst_4 : f32 to vector<1x2xf32>
    %7 = arith.addf %6, %5 : vector<1x2xf32>
    %cst_5 = arith.constant 1.000000e+00 : f32
    %8 = vector.broadcast %cst_5 : f32 to vector<1x2xf32>
    %9 = arith.divf %8, %7 : vector<1x2xf32>
    %c0_6 = arith.constant 0 : index
    %c0_7 = arith.constant 0 : index
    %10 = vector.load %arg3[%c0_6, %c0_7] : memref<1x2xf32, #tpu.memory_space<vmem>>, vector<1x2xf32>
    tpu.vector_store %arg3[%c0_6, %c0_7], %9 {strides = array<i32>} : memref<1x2xf32, #tpu.memory_space<vmem>>, vector<1x2xf32>,
    return
  }
  func.func @transform_0(%arg0: i32) -> (i32, i32) {
    %c0_i32 = arith.constant 0 : i32
    %c0_i32_0 = arith.constant 0 : i32
    %c0_i32_1 = arith.constant 0 : i32
    return %c0_i32, %c0_i32_0 : i32, i32
  }
  func.func @transform_1(%arg0: i32) -> (i32, i32) {
    %c0_i32 = arith.constant 0 : i32
    %c0_i32_0 = arith.constant 0 : i32
    return %c0_i32, %arg0 : i32, i32
  }
  func.func @transform_2(%arg0: i32) -> (i32, i32) {
    %c0_i32 = arith.constant 0 : i32
    %c0_i32_0 = arith.constant 0 : i32
    return %c0_i32, %arg0 : i32, i32
  }
}

</mosaic_0001>

<llo_original>
// kernel: discriminator_forward.8
$region0: #{discriminator_forward.8}
  #allocation0 [shape = 'u32[]', space=smem, size = 0x4, offset = 0x4, fixed_abs, tag = 'smem constant byte address 0x4 - core index']
  #allocation1 [shape = 'u32[72,128]{1,0:T(1,128)}', space=vmem, size = 0x9000, scoped, tag = 'internal scratch']
  %s0 = inlined_call_operand.vmem [shape: bf16[8,48], index: 0, kind: input, shape index: {}]
  %s1 = inlined_call_operand.vmem [shape: bf16[48,2048], index: 1, kind: input, shape index: {}]
  %s2 = inlined_call_operand.vmem [shape: bf16[8,2048], index: 2, kind: output, shape index: {}]
  %s3 = sld [smem:[#allocation0]]
  $region64: #{discriminator_forward.8} parent=0
    _
  %s5 = ssub.s32 1, %s3
  %s6 = scalar_select 0, %s5, %s3
  $region1: #{discriminator_forward.8} parent=0
    #allocation2 [shape = 'u8[196608]{0}', space=vmem, size = 0x30000, scoped, tag = 'input window, operand 1']
    loop: start=0, step=1, limit=4
    $region2: #{discriminator_forward.8} parent=1 // loop_pre_header
      _
    $region3: #{discriminator_forward.8} parent=1 // loop_header
      %s8 = sphi 0, %s12
      %p9 = scmp.ge.s32.totalorder %s8, 4
      %s16 = sphi 0, %s16
      %s18 = sphi 0, %s16
      %s19 = sphi 0, %s18
      %s33 = sphi 0, %s19
      %s39 = sphi 0, %s41
      %s42 = sphi 0, %s39
      %s43 = sphi 0, %s42
      %s59 = sphi 0, %s43
      %s65 = sphi 0, %s67
      %s68 = sphi 0, %s65
      %s69 = sphi 0, %s68
      %s85 = sphi 0, %s69
    $region4: #{discriminator_forward.8} parent=1 // loop_header_branch
      %11 = sbr.rel (%p9) target = $region8
    $region5: #{discriminator_forward.8} parent=1 // loop_body
      %s13 = ssub.s32 %s8, 1
      %s14 = ssub.s32 %s8, 2
      %s15 = sadd.s32 %s8, 1
      %s17 = sadd.s32 %s16, 1
      %p20 = scmp.eq.s32.totalorder %s8, 1
      %p21 = scmp.ne.s32.totalorder %s16, %s18
      %p22 = scmp.eq.s32.totalorder %s8, 0
      %p23 = por %p21, %p22
      %p24 = scmp.ne.s32.totalorder %s16, %s18
      %p25 = scmp.eq.s32.totalorder %s13, 1
      %p26 = por %p24, %p25
      %p27 = scmp.ne.s32.totalorder %s18, %s19
      %p28 = scmp.eq.s32.totalorder %s13, 0
      %p29 = por %p27, %p28
      %p30 = scmp.ne.s32.totalorder %s18, %s19
      %p31 = scmp.eq.s32.totalorder %s14, 1
      %p32 = por %p30, %p31
      %p34 = scmp.ne.s32.totalorder %s19, %s33
      %p35 = scmp.eq.s32.totalorder %s14, 0
      %p36 = por %p34, %p35
      %s37 = ssub.s32 %s8, %s15
      %p38 = scmp.eq.s32.totalorder %s37, 0
      %s40 = sadd.s32 %s39, 1
      %s41 = scalar_select %p38, %s39, %s40
      %p44 = pneg %p38
      %p45 = scmp.eq.s32.totalorder %s8, 1
      %p46 = por %p44, %p45
      %p47 = scmp.ne.s32.totalorder %s39, %s42
      %p48 = scmp.eq.s32.totalorder %s8, 0
      %p49 = por %p47, %p48
      %p50 = scmp.ne.s32.totalorder %s39, %s42
      %p51 = scmp.eq.s32.totalorder %s13, 1
      %p52 = por %p50, %p51
      %p53 = scmp.ne.s32.totalorder %s42, %s43
      %p54 = scmp.eq.s32.totalorder %s13, 0
      %p55 = por %p53, %p54
      %p56 = scmp.ne.s32.totalorder %s42, %s43
      %p57 = scmp.eq.s32.totalorder %s14, 1
      %p58 = por %p56, %p57
      %p60 = scmp.ne.s32.totalorder %s43, %s59
      %p61 = scmp.eq.s32.totalorder %s14, 0
      %p62 = por %p60, %p61
      %s63 = ssub.s32 %s8, %s15
      %p64 = scmp.eq.s32.totalorder %s63, 0
      %s66 = sadd.s32 %s65, 1
      %s67 = scalar_select %p64, %s65, %s66
      %p70 = pneg %p64
      %p71 = scmp.eq.s32.totalorder %s8, 1
      %p72 = por %p70, %p71
      %p73 = scmp.ne.s32.totalorder %s65, %s68
      %p74 = scmp.eq.s32.totalorder %s8, 0
      %p75 = por %p73, %p74
      %p76 = scmp.ne.s32.totalorder %s65, %s68
      %p77 = scmp.eq.s32.totalorder %s13, 1
      %p78 = por %p76, %p77
      %p79 = scmp.ne.s32.totalorder %s68, %s69
      %p80 = scmp.eq.s32.totalorder %s13, 0
      %p81 = por %p79, %p80
      %p82 = scmp.ne.s32.totalorder %s68, %s69
      %p83 = scmp.eq.s32.totalorder %s14, 1
      %p84 = por %p82, %p83
      %p86 = scmp.ne.s32.totalorder %s69, %s85
      %p87 = scmp.eq.s32.totalorder %s14, 0
      %p88 = por %p86, %p87
      %p89 = scmp.le.s32.totalorder 1, %s8
      %p90 = scmp.lt.s32.totalorder %s8, 3
      %p91 = pnand %p89, %p90
      %p92 = pneg %p91
      // Predicated region
      $region9: #{discriminator_forward.8} parent=5 // pred_check
        _
      $region10: #{discriminator_forward.8} parent=5 // pred_check_branch
        %94 = sbr.rel (%p91) target = $region12
      $region11: #{discriminator_forward.8} parent=5 // pred_region
        %s95 = ssub.s32 %s8, 1
        // Predicated region
        $region13: #{discriminator_forward.8} parent=11 // pred_check
          %p96 = pneg %p29
        $region14: #{discriminator_forward.8} parent=11 // pred_check_branch
          %98 = sbr.rel (%p96) target = $region16
        $region15: #{discriminator_forward.8} parent=11 // pred_region
          _
        $region16: #{discriminator_forward.8} parent=11 // pred_fallthru
          _
      $region12: #{discriminator_forward.8} parent=5 // pred_fallthru
        _
      %p99 = scmp.lt.s32.totalorder %s8, 2
      // Predicated region
      $region17: #{discriminator_forward.8} parent=5 // pred_check
        %p100 = pneg %p99
      $region18: #{discriminator_forward.8} parent=5 // pred_check_branch
        %102 = sbr.rel (%p100) target = $region20
      $region19: #{discriminator_forward.8} parent=5 // pred_region
        // Predicated region
        $region21: #{discriminator_forward.8} parent=19 // pred_check
          %p103 = pneg %p49
        $region22: #{discriminator_forward.8} parent=19 // pred_check_branch
          %105 = sbr.rel (%p103) target = $region24
        $region23: #{discriminator_forward.8} parent=19 // pred_region
          %s106 = sand.u32 %s39, 1
          %s107 = sand.u32 %s39, 1
          %s108 = smul.addr %s107, 192
          %s109 = scalar_lea.vmem [#allocation2], %s108
          %s110 = smul.u32 8, %s8
          %s111 = smul.addr %s110, 4
          %s112 = scalar_lea.vmem %s1, %s111
          // Predicated region
          $region25: #{discriminator_forward.8} parent=23 // pred_check
            _
          $region26: #{discriminator_forward.8} parent=23 // pred_check_branch
            %114 = sbr.rel (0) target = $region28
          $region27: #{discriminator_forward.8} parent=23 // pred_region
            // Predicated region
            $region29: #{discriminator_forward.8} parent=27 // pred_check
              _
            $region30: #{discriminator_forward.8} parent=27 // pred_check_branch
              %116 = sbr.rel (0) target = $region32
            $region31: #{discriminator_forward.8} parent=27 // pred_region
              loop: start=0, step=1, limit=1
              $region33: #{discriminator_forward.8} parent=31 // loop_pre_header
                _
              $region34: #{discriminator_forward.8} parent=31 // loop_header
                %s118 = sphi 0, %s122
                %p119 = scmp.ge.s32.totalorder %s118, 1
                %s123 = sphi %s112, %s112
                %s124 = sphi %s109, %s109
              $region35: #{discriminator_forward.8} parent=31 // loop_header_branch
                %121 = sbr.rel (%p119) target = $region39
              $region36: #{discriminator_forward.8} parent=31 // loop_body
                %v125 = vld [vmem:[%s123] sm:$0xff]
                %126 = vst [vmem:[%s124] sm:$0xff] %v125
                %v127 = vld [vmem:[%s123 + $0x8] sm:$0xff]
                %128 = vst [vmem:[%s124 + $0x8] sm:$0xff] %v127
                %v129 = vld [vmem:[%s123 + $0x10] sm:$0xff]
                %130 = vst [vmem:[%s124 + $0x10] sm:$0xff] %v129
                %v131 = vld [vmem:[%s123 + $0x18] sm:$0xff]
                %132 = vst [vmem:[%s124 + $0x18] sm:$0xff] %v131
                %v133 = vld [vmem:[%s123 + $0x40] sm:$0xff]
                %134 = vst [vmem:[%s124 + $0x20] sm:$0xff] %v133
                %v135 = vld [vmem:[%s123 + $0x48] sm:$0xff]
                %136 = vst [vmem:[%s124 + $0x28] sm:$0xff] %v135
                %v137 = vld [vmem:[%s123 + $0x50] sm:$0xff]
                %138 = vst [vmem:[%s124 + $0x30] sm:$0xff] %v137
                %v139 = vld [vmem:[%s123 + $0x58] sm:$0xff]
                %140 = vst [vmem:[%s124 + $0x38] sm:$0xff] %v139
                %v141 = vld [vmem:[%s123 + $0x80] sm:$0xff]
                %142 = vst [vmem:[%s124 + $0x40] sm:$0xff] %v141
                %v143 = vld [vmem:[%s123 + $0x88] sm:$0xff]
                %144 = vst [vmem:[%s124 + $0x48] sm:$0xff] %v143
                %v145 = vld [vmem:[%s123 + $0x90] sm:$0xff]
                %146 = vst [vmem:[%s124 + $0x50] sm:$0xff] %v145
                %v147 = vld [vmem:[%s123 + $0x98] sm:$0xff]
                %148 = vst [vmem:[%s124 + $0x58] sm:$0xff] %v147
                %v149 = vld [vmem:[%s123 + $0xc0] sm:$0xff]
                %150 = vst [vmem:[%s124 + $0x60] sm:$0xff] %v149
                %v151 = vld [vmem:[%s123 + $0xc8] sm:$0xff]
                %152 = vst [vmem:[%s124 + $0x68] sm:$0xff] %v151
                %v153 = vld [vmem:[%s123 + $0xd0] sm:$0xff]
                %154 = vst [vmem:[%s124 + $0x70] sm:$0xff] %v153
                %v155 = vld [vmem:[%s123 + $0xd8] sm:$0xff]
                %156 = vst [vmem:[%s124 + $0x78] sm:$0xff] %v155
                %v157 = vld [vmem:[%s123 + $0x100] sm:$0xff]
                %158 = vst [vmem:[%s124 + $0x80] sm:$0xff] %v157
                %v159 = vld [vmem:[%s123 + $0x108] sm:$0xff]
                %160 = vst [vmem:[%s124 + $0x88] sm:$0xff] %v159
                %v161 = vld [vmem:[%s123 + $0x110] sm:$0xff]
                %162 = vst [vmem:[%s124 + $0x90] sm:$0xff] %v161
                %v163 = vld [vmem:[%s123 + $0x118] sm:$0xff]
                %164 = vst [vmem:[%s124 + $0x98] sm:$0xff] %v163
                %v165 = vld [vmem:[%s123 + $0x140] sm:$0xff]
                %166 = vst [vmem:[%s124 + $0xa0] sm:$0xff] %v165
                %v167 = vld [vmem:[%s123 + $0x148] sm:$0xff]
                %168 = vst [vmem:[%s124 + $0xa8] sm:$0xff] %v167
                %v169 = vld [vmem:[%s123 + $0x150] sm:$0xff]
                %170 = vst [vmem:[%s124 + $0xb0] sm:$0xff] %v169
                %v171 = vld [vmem:[%s123 + $0x158] sm:$0xff]
                %172 = vst [vmem:[%s124 + $0xb8] sm:$0xff] %v171
              $region37: #{discriminator_forward.8} parent=31 // loop_footer
                %s122 = sadd.s32 1, %s118
              $region38: #{discriminator_forward.8} parent=31 // loop_footer_branch
                %117 = sbr.rel target = $region34
              $region39: #{discriminator_forward.8} parent=31 // loop_exit
                _
            $region32: #{discriminator_forward.8} parent=27 // pred_fallthru
              _
            // Predicated region
            $region40: #{discriminator_forward.8} parent=27 // pred_check
              _
            $region41: #{discriminator_forward.8} parent=27 // pred_check_branch
              %174 = sbr.rel target = $region43
            $region42: #{discriminator_forward.8} parent=27 // pred_region
              _
            $region43: #{discriminator_forward.8} parent=27 // pred_fallthru
              _
          $region28: #{discriminator_forward.8} parent=23 // pred_fallthru
            _
          %175 = vnop
        $region24: #{discriminator_forward.8} parent=19 // pred_fallthru
          _
      $region20: #{discriminator_forward.8} parent=5 // pred_fallthru
        _
      %p176 = scmp.le.s32.totalorder 1, %s8
      %p177 = scmp.lt.s32.totalorder %s8, 3
      %p178 = pnand %p176, %p177
      %p179 = pneg %p178
      // Predicated region
      $region44: #{discriminator_forward.8} parent=5 // pred_check
        _
      $region45: #{discriminator_forward.8} parent=5 // pred_check_branch
        %181 = sbr.rel (%p178) target = $region47
      $region46: #{discriminator_forward.8} parent=5 // pred_region
        %s182 = ssub.s32 %s8, 1
        %s183 = sand.u32 %s42, 1
        %s184 = sand.u32 %s42, 1
        %s185 = smul.addr %s184, 192
        %s186 = scalar_lea.vmem [#allocation2], %s185
        // Predicated region
        $region48: #{discriminator_forward.8} parent=46 // pred_check
          %p187 = pneg %p55
        $region49: #{discriminator_forward.8} parent=46 // pred_check_branch
          %189 = sbr.rel (%p187) target = $region51
        $region50: #{discriminator_forward.8} parent=46 // pred_region
          _
        $region51: #{discriminator_forward.8} parent=46 // pred_fallthru
          _
        %p190 = pneg %p29
        %p191 = pneg %p26
        %s192 = sand.u32 %s42, 1
        %s193 = sand.u32 %s42, 1
        %s194 = smul.addr %s193, 192
        %s195 = scalar_lea.vmem [#allocation2], %s194
        %p196 = pneg %p55
        %p197 = pneg %p52
        %p198 = pneg %p81
        %p199 = pneg %p78
        %s200 = smul.u32 8, %s13
        %p201 = scmp.lt.s32.totalorder %s200, 15
        %s202 = scalar_select %p201, %s200, 15
        %s203 = smul.addr %s202, 4
        %s204 = scalar_lea.vmem %s2, %s203
        %s205 = smul.u32 8, %s13
        %s206 = smul.u32 8, %s13
        %p207 = scmp.lt.s32.totalorder %s206, 15
        %s208 = scalar_select %p207, %s206, 15
        %s209 = smul.addr %s208, 4
        %s210 = scalar_lea.vmem %s2, %s209
        %s211 = smul.u32 8, %s13
        %v213 = vld [vmem:[%s0] sm:$0xf]
        %v214 = vld [vmem:[%s186] sm:$0xff]
        %v215 = vld [vmem:[%s186 + $0x8] sm:$0xff]
        %v216 = vld [vmem:[%s186 + $0x10] sm:$0xff]
        %v217 = vld [vmem:[%s186 + $0x18] sm:$0xff]
        %v218 = vld [vmem:[%s186 + $0x20] sm:$0xff]
        %v219 = vld [vmem:[%s186 + $0x28] sm:$0xff]
        %v220 = vld [vmem:[%s186 + $0x30] sm:$0xff]
        %v221 = vld [vmem:[%s186 + $0x38] sm:$0xff]
        %v222 = vld [vmem:[%s186 + $0x40] sm:$0xff]
        %v223 = vld [vmem:[%s186 + $0x48] sm:$0xff]
        %v224 = vld [vmem:[%s186 + $0x50] sm:$0xff]
        %v225 = vld [vmem:[%s186 + $0x58] sm:$0xff]
        %v226 = vld [vmem:[%s186 + $0x60] sm:$0xff]
        %v227 = vld [vmem:[%s186 + $0x68] sm:$0xff]
        %v228 = vld [vmem:[%s186 + $0x70] sm:$0xff]
        %v229 = vld [vmem:[%s186 + $0x78] sm:$0xff]
        %v230 = vld [vmem:[%s186 + $0x80] sm:$0xff]
        %v231 = vld [vmem:[%s186 + $0x88] sm:$0xff]
        %v232 = vld [vmem:[%s186 + $0x90] sm:$0xff]
        %v233 = vld [vmem:[%s186 + $0x98] sm:$0xff]
        %v234 = vld [vmem:[%s186 + $0xa0] sm:$0xff]
        %v235 = vld [vmem:[%s186 + $0xa8] sm:$0xff]
        %v236 = vld [vmem:[%s186 + $0xb0] sm:$0xff]
        %v237 = vld [vmem:[%s186 + $0xb8] sm:$0xff]
        %v262 = vunpack.c.l.b16 %v214
        %v263 = vunpack.c.h.b16 %v214
        %v264 = vunpack.c.l.b16 %v215
        %v265 = vunpack.c.h.b16 %v215
        %v266 = vunpack.c.l.b16 %v216
        %v267 = vunpack.c.h.b16 %v216
        %v268 = vunpack.c.l.b16 %v217
        %v269 = vunpack.c.h.b16 %v217
        %v270 = vunpack.c.l.b16 %v218
        %v271 = vunpack.c.h.b16 %v218
        %v272 = vunpack.c.l.b16 %v219
        %v273 = vunpack.c.h.b16 %v219
        %v274 = vunpack.c.l.b16 %v220
        %v275 = vunpack.c.h.b16 %v220
        %v276 = vunpack.c.l.b16 %v221
        %v277 = vunpack.c.h.b16 %v221
        %v278 = vunpack.c.l.b16 %v222
        %v279 = vunpack.c.h.b16 %v222
        %v280 = vunpack.c.l.b16 %v223
        %v281 = vunpack.c.h.b16 %v223
        %v282 = vunpack.c.l.b16 %v224
        %v283 = vunpack.c.h.b16 %v224
        %v284 = vunpack.c.l.b16 %v225
        %v285 = vunpack.c.h.b16 %v225
        %v286 = vunpack.c.l.b16 %v226
        %v287 = vunpack.c.h.b16 %v226
        %v288 = vunpack.c.l.b16 %v227
        %v289 = vunpack.c.h.b16 %v227
        %v290 = vunpack.c.l.b16 %v228
        %v291 = vunpack.c.h.b16 %v228
        %v292 = vunpack.c.l.b16 %v229
        %v293 = vunpack.c.h.b16 %v229
        %v294 = vunpack.c.l.b16 %v230
        %v295 = vunpack.c.h.b16 %v230
        %v296 = vunpack.c.l.b16 %v231
        %v297 = vunpack.c.h.b16 %v231
        %v298 = vunpack.c.l.b16 %v232
        %v299 = vunpack.c.h.b16 %v232
        %v300 = vunpack.c.l.b16 %v233
        %v301 = vunpack.c.h.b16 %v233
        %v302 = vunpack.c.l.b16 %v234
        %v303 = vunpack.c.h.b16 %v234
        %v304 = vunpack.c.l.b16 %v235
        %v305 = vunpack.c.h.b16 %v235
        %v306 = vunpack.c.l.b16 %v236
        %v307 = vunpack.c.h.b16 %v236
        %v308 = vunpack.c.l.b16 %v237
        %v309 = vunpack.c.h.b16 %v237
        %v310 = vpack.c.b16 %v270, %v262
        %v311 = vpack.c.b16 %v271, %v263
        %v312 = vpack.c.b16 %v272, %v264
        %v313 = vpack.c.b16 %v273, %v265
        %v314 = vpack.c.b16 %v274, %v266
        %v315 = vpack.c.b16 %v275, %v267
        %v316 = vpack.c.b16 %v276, %v268
        %v317 = vpack.c.b16 %v277, %v269
        %v318 = vpack.c.b16 %v286, %v278
        %v319 = vpack.c.b16 %v287, %v279
        %v320 = vpack.c.b16 %v288, %v280
        %v321 = vpack.c.b16 %v289, %v281
        %v322 = vpack.c.b16 %v290, %v282
        %v323 = vpack.c.b16 %v291, %v283
        %v324 = vpack.c.b16 %v292, %v284
        %v325 = vpack.c.b16 %v293, %v285
        %v326 = vpack.c.b16 %v302, %v294
        %v327 = vpack.c.b16 %v303, %v295
        %v328 = vpack.c.b16 %v304, %v296
        %v329 = vpack.c.b16 %v305, %v297
        %v330 = vpack.c.b16 %v306, %v298
        %v331 = vpack.c.b16 %v307, %v299
        %v332 = vpack.c.b16 %v308, %v300
        %v333 = vpack.c.b16 %v309, %v301
        %vm358 = vcmask 392192
        %v360 = vsel %vm358, %v213, 0
        %362 = vmatpush.bf16.msra.mxu0 0
        %363 = vmatpush.bf16.msra.mxu0 0
        %364 = vmatpush.bf16.msra.mxu0 0
        %365 = vmatpush.bf16.msra.mxu0 0
        %366 = vmatpush.bf16.msra.mxu0 0
        %367 = vmatpush.bf16.msra.mxu0 %v326
        %368 = vmatpush.bf16.msra.mxu0 %v318
        %369 = vmatpush.bf16.msra.mxu0 %v310
        %370 = vmatmul.bf16.gmra.mxu0 %v360
        %v371 = vpop.f32.mrf.mxu0
        %v372 = vadd.f32 0.0, %v371
        %v373 = vpop.f32.mrf.mxu0
        %374 = vdwg.mxu0
        %375 = vmatpush.bf16.msra.mxu0 0
        %376 = vmatpush.bf16.msra.mxu0 0
        %377 = vmatpush.bf16.msra.mxu0 0
        %378 = vmatpush.bf16.msra.mxu0 0
        %379 = vmatpush.bf16.msra.mxu0 0
        %380 = vmatpush.bf16.msra.mxu0 %v327
        %381 = vmatpush.bf16.msra.mxu0 %v319
        %382 = vmatpush.bf16.msra.mxu0 %v311
        %383 = vmatmul.bf16.gmra.mxu0 %v360
        %v384 = vpop.f32.mrf.mxu0
        %v385 = vadd.f32 0.0, %v384
        %v386 = vpop.f32.mrf.mxu0
        %387 = vdwg.mxu0
        %388 = vmatpush.bf16.msra.mxu0 0
        %389 = vmatpush.bf16.msra.mxu0 0
        %390 = vmatpush.bf16.msra.mxu0 0
        %391 = vmatpush.bf16.msra.mxu0 0
        %392 = vmatpush.bf16.msra.mxu0 0
        %393 = vmatpush.bf16.msra.mxu0 %v328
        %394 = vmatpush.bf16.msra.mxu0 %v320
        %395 = vmatpush.bf16.msra.mxu0 %v312
        %396 = vmatmul.bf16.gmra.mxu0 %v360
        %v397 = vpop.f32.mrf.mxu0
        %v398 = vadd.f32 0.0, %v397
        %v399 = vpop.f32.mrf.mxu0
        %400 = vdwg.mxu0
        %401 = vmatpush.bf16.msra.mxu0 0
        %402 = vmatpush.bf16.msra.mxu0 0
        %403 = vmatpush.bf16.msra.mxu0 0
        %404 = vmatpush.bf16.msra.mxu0 0
        %405 = vmatpush.bf16.msra.mxu0 0
        %406 = vmatpush.bf16.msra.mxu0 %v329
        %407 = vmatpush.bf16.msra.mxu0 %v321
        %408 = vmatpush.bf16.msra.mxu0 %v313
        %409 = vmatmul.bf16.gmra.mxu0 %v360
        %v410 = vpop.f32.mrf.mxu0
        %v411 = vadd.f32 0.0, %v410
        %v412 = vpop.f32.mrf.mxu0
        %413 = vdwg.mxu0
        %414 = vmatpush.bf16.msra.mxu0 0
        %415 = vmatpush.bf16.msra.mxu0 0
        %416 = vmatpush.bf16.msra.mxu0 0
        %417 = vmatpush.bf16.msra.mxu0 0
        %418 = vmatpush.bf16.msra.mxu0 0
        %419 = vmatpush.bf16.msra.mxu0 %v330
        %420 = vmatpush.bf16.msra.mxu0 %v322
        %421 = vmatpush.bf16.msra.mxu0 %v314
        %422 = vmatmul.bf16.gmra.mxu0 %v360
        %v423 = vpop.f32.mrf.mxu0
        %v424 = vadd.f32 0.0, %v423
        %v425 = vpop.f32.mrf.mxu0
        %426 = vdwg.mxu0
        %427 = vmatpush.bf16.msra.mxu0 0
        %428 = vmatpush.bf16.msra.mxu0 0
        %429 = vmatpush.bf16.msra.mxu0 0
        %430 = vmatpush.bf16.msra.mxu0 0
        %431 = vmatpush.bf16.msra.mxu0 0
        %432 = vmatpush.bf16.msra.mxu0 %v331
        %433 = vmatpush.bf16.msra.mxu0 %v323
        %434 = vmatpush.bf16.msra.mxu0 %v315
        %435 = vmatmul.bf16.gmra.mxu0 %v360
        %v436 = vpop.f32.mrf.mxu0
        %v437 = vadd.f32 0.0, %v436
        %v438 = vpop.f32.mrf.mxu0
        %439 = vdwg.mxu0
        %440 = vmatpush.bf16.msra.mxu0 0
        %441 = vmatpush.bf16.msra.mxu0 0
        %442 = vmatpush.bf16.msra.mxu0 0
        %443 = vmatpush.bf16.msra.mxu0 0
        %444 = vmatpush.bf16.msra.mxu0 0
        %445 = vmatpush.bf16.msra.mxu0 %v332
        %446 = vmatpush.bf16.msra.mxu0 %v324
        %447 = vmatpush.bf16.msra.mxu0 %v316
        %448 = vmatmul.bf16.gmra.mxu0 %v360
        %v449 = vpop.f32.mrf.mxu0
        %v450 = vadd.f32 0.0, %v449
        %v451 = vpop.f32.mrf.mxu0
        %452 = vdwg.mxu0
        %453 = vmatpush.bf16.msra.mxu0 0
        %454 = vmatpush.bf16.msra.mxu0 0
        %455 = vmatpush.bf16.msra.mxu0 0
        %456 = vmatpush.bf16.msra.mxu0 0
        %457 = vmatpush.bf16.msra.mxu0 0
        %458 = vmatpush.bf16.msra.mxu0 %v333
        %459 = vmatpush.bf16.msra.mxu0 %v325
        %460 = vmatpush.bf16.msra.mxu0 %v317
        %461 = vmatmul.bf16.gmra.mxu0 %v360
        %v462 = vpop.f32.mrf.mxu0
        %v463 = vadd.f32 0.0, %v462
        %v464 = vpop.f32.mrf.mxu0
        %465 = vdwg.mxu0
        %vm466 = vcmp.gt.f32.partialorder %v372, 0.0
        %vm467 = vcmp.gt.f32.partialorder %v385, 0.0
        %vm468 = vcmp.gt.f32.partialorder %v398, 0.0
        %vm469 = vcmp.gt.f32.partialorder %v411, 0.0
        %vm470 = vcmp.gt.f32.partialorder %v424, 0.0
        %vm471 = vcmp.gt.f32.partialorder %v437, 0.0
        %vm472 = vcmp.gt.f32.partialorder %v450, 0.0
        %vm473 = vcmp.gt.f32.partialorder %v463, 0.0
        %v474 = vmul.f32 %v372, 0.2
        %v475 = vmul.f32 %v385, 0.2
        %v476 = vmul.f32 %v398, 0.2
        %v477 = vmul.f32 %v411, 0.2
        %v478 = vmul.f32 %v424, 0.2
        %v479 = vmul.f32 %v437, 0.2
        %v480 = vmul.f32 %v450, 0.2
        %v481 = vmul.f32 %v463, 0.2
        %v482 = vsel %vm466, %v372, %v474
        %v483 = vsel %vm467, %v385, %v475
        %v484 = vsel %vm468, %v398, %v476
        %v485 = vsel %vm469, %v411, %v477
        %v486 = vsel %vm470, %v424, %v478
        %v487 = vsel %vm471, %v437, %v479
        %v488 = vsel %vm472, %v450, %v480
        %v489 = vsel %vm473, %v463, %v481
        %v490 = vpack.c.bf16 %v483, %v482
        %v491 = vpack.c.bf16 %v485, %v484
        %v492 = vpack.c.bf16 %v487, %v486
        %v493 = vpack.c.bf16 %v489, %v488
        %494 = vst [vmem:[%s210] sm:$0xff] %v490
        %495 = vst [vmem:[%s210 + $0x8] sm:$0xff] %v491
        %496 = vst [vmem:[%s210 + $0x10] sm:$0xff] %v492
        %497 = vst [vmem:[%s210 + $0x18] sm:$0xff] %v493
        %s498 = smul.u32 8, %s13
        %p499 = scmp.lt.s32.totalorder %s498, 15
        %s500 = scalar_select %p499, %s498, 15
        %s501 = smul.addr %s500, 4
        %s502 = scalar_lea.vmem %s2, %s501
        // Predicated region
        $region52: #{discriminator_forward.8} parent=46 // pred_check
          %p503 = pneg %p78
        $region53: #{discriminator_forward.8} parent=46 // pred_check_branch
          %505 = sbr.rel (%p503) target = $region55
        $region54: #{discriminator_forward.8} parent=46 // pred_region
          %s506 = smul.u32 8, %s13
        $region55: #{discriminator_forward.8} parent=46 // pred_fallthru
          _
      $region47: #{discriminator_forward.8} parent=5 // pred_fallthru
        _
      %p507 = scmp.le.s32.totalorder 2, %s8
      // Predicated region
      $region56: #{discriminator_forward.8} parent=5 // pred_check
        %p508 = pneg %p507
      $region57: #{discriminator_forward.8} parent=5 // pred_check_branch
        %510 = sbr.rel (%p508) target = $region59
      $region58: #{discriminator_forward.8} parent=5 // pred_region
        %s511 = ssub.s32 %s8, 2
        // Predicated region
        $region60: #{discriminator_forward.8} parent=58 // pred_check
          %p512 = pneg %p84
        $region61: #{discriminator_forward.8} parent=58 // pred_check_branch
          %514 = sbr.rel (%p512) target = $region63
        $region62: #{discriminator_forward.8} parent=58 // pred_region
          %s515 = smul.u32 8, %s14
          %p516 = scmp.lt.s32.totalorder %s515, 15
          %s517 = scalar_select %p516, %s515, 15
          %s518 = smul.addr %s517, 4
          %s519 = scalar_lea.vmem %s2, %s518
        $region63: #{discriminator_forward.8} parent=58 // pred_fallthru
          _
      $region59: #{discriminator_forward.8} parent=5 // pred_fallthru
        _
    $region6: #{discriminator_forward.8} parent=1 // loop_footer
      %s12 = sadd.s32 1, %s8
    $region7: #{discriminator_forward.8} parent=1 // loop_footer_branch
      %7 = sbr.rel target = $region3
    $region8: #{discriminator_forward.8} parent=1 // loop_exit
      _

// kernel: discriminator_forward.10
$region0: #{discriminator_forward.10}
  #allocation0 [shape = 'u32[]', space=smem, size = 0x4, offset = 0x4, fixed_abs, tag = 'smem constant byte address 0x4 - core index']
  #allocation1 [shape = 'u32[72,128]{1,0:T(1,128)}', space=vmem, size = 0x9000, scoped, tag = 'internal scratch']
  %s0 = inlined_call_operand.vmem [shape: bf16[16,512], index: 0, kind: input, shape index: {}]
  %s1 = inlined_call_operand.vmem [shape: f32[16,1], index: 1, kind: input, shape index: {}]
  %s2 = inlined_call_operand.vmem [shape: f32[16,1], index: 2, kind: input, shape index: {}]
  %s3 = inlined_call_operand.vmem [shape: bf16[16,512], index: 3, kind: output, shape index: {}]
  %s4 = sld [smem:[#allocation0]]
  $region22: #{discriminator_forward.10} parent=0
    _
  %s6 = ssub.s32 1, %s4
  %s7 = scalar_select 0, %s6, %s4
  // Predicated region
  $region2: #{discriminator_forward.10} parent=0 // pred_check
    _
  $region3: #{discriminator_forward.10} parent=0 // pred_check_branch
    %9 = sbr.rel (0) target = $region5
  $region4: #{discriminator_forward.10} parent=0 // pred_region
    _
  $region5: #{discriminator_forward.10} parent=0 // pred_fallthru
    _
  // Predicated region
  $region6: #{discriminator_forward.10} parent=0 // pred_check
    _
  $region7: #{discriminator_forward.10} parent=0 // pred_check_branch
    %11 = sbr.rel (0) target = $region9
  $region8: #{discriminator_forward.10} parent=0 // pred_region
    _
  $region9: #{discriminator_forward.10} parent=0 // pred_fallthru
    _
  // Predicated region
  $region10: #{discriminator_forward.10} parent=0 // pred_check
    _
  $region11: #{discriminator_forward.10} parent=0 // pred_check_branch
    %13 = sbr.rel (0) target = $region13
  $region12: #{discriminator_forward.10} parent=0 // pred_region
    _
  $region13: #{discriminator_forward.10} parent=0 // pred_fallthru
    _
  %v14 = vld [vmem:[%s0] sm:$0xff]
  %v15 = vld [vmem:[%s0 + $0x8] sm:$0xff]
  %v16 = vld [vmem:[%s0 + $0x10] sm:$0xff]
  %v17 = vld [vmem:[%s0 + $0x18] sm:$0xff]
  %v18 = vunpack.c.l.bf16 %v14
  %v19 = vunpack.c.h.bf16 %v14
  %v20 = vunpack.c.l.bf16 %v15
  %v21 = vunpack.c.h.bf16 %v15
  %v22 = vunpack.c.l.bf16 %v16
  %v23 = vunpack.c.h.bf16 %v16
  %v24 = vunpack.c.l.bf16 %v17
  %v25 = vunpack.c.h.bf16 %v17
  %v26 = vld [vmem:[%s1] sm:$0xff]
  %v27 = vld [vmem:[%s1 + $0x8] sm:$0xff]
  %29 = vset.pattern.permute.xlu0 0
  %30 = vperm.xlu0 %29, %v26
  %v31 = vpop.permute.xlu0 %30
  %34 = vset.pattern.permute.xlu0 0
  %35 = vperm.xlu0 %34, %v27
  %v36 = vpop.permute.xlu0 %35
  %v38 = vmul.f32 %v18, %v31
  %v39 = vmul.f32 %v19, %v31
  %v40 = vmul.f32 %v20, %v31
  %v41 = vmul.f32 %v21, %v31
  %v42 = vmul.f32 %v22, %v36
  %v43 = vmul.f32 %v23, %v36
  %v44 = vmul.f32 %v24, %v36
  %v45 = vmul.f32 %v25, %v36
  %v46 = vld [vmem:[%s2] sm:$0xff]
  %v47 = vld [vmem:[%s2 + $0x8] sm:$0xff]
  %49 = vset.pattern.permute.xlu0 0
  %50 = vperm.xlu0 %49, %v46
  %v51 = vpop.permute.xlu0 %50
  %54 = vset.pattern.permute.xlu0 0
  %55 = vperm.xlu0 %54, %v47
  %v56 = vpop.permute.xlu0 %55
  %v58 = vadd.f32 %v38, %v51
  %v59 = vadd.f32 %v39, %v51
  %v60 = vadd.f32 %v40, %v51
  %v61 = vadd.f32 %v41, %v51
  %v62 = vadd.f32 %v42, %v56
  %v63 = vadd.f32 %v43, %v56
  %v64 = vadd.f32 %v44, %v56
  %v65 = vadd.f32 %v45, %v56
  %vm66 = vcmp.gt.f32.partialorder %v58, 0.0
  %vm67 = vcmp.gt.f32.partialorder %v59, 0.0
  %vm68 = vcmp.gt.f32.partialorder %v60, 0.0
  %vm69 = vcmp.gt.f32.partialorder %v61, 0.0
  %vm70 = vcmp.gt.f32.partialorder %v62, 0.0
  %vm71 = vcmp.gt.f32.partialorder %v63, 0.0
  %vm72 = vcmp.gt.f32.partialorder %v64, 0.0
  %vm73 = vcmp.gt.f32.partialorder %v65, 0.0
  %v74 = vmul.f32 %v58, 0.2
  %v75 = vmul.f32 %v59, 0.2
  %v76 = vmul.f32 %v60, 0.2
  %v77 = vmul.f32 %v61, 0.2
  %v78 = vmul.f32 %v62, 0.2
  %v79 = vmul.f32 %v63, 0.2
  %v80 = vmul.f32 %v64, 0.2
  %v81 = vmul.f32 %v65, 0.2
  %v82 = vsel %vm66, %v58, %v74
  %v83 = vsel %vm67, %v59, %v75
  %v84 = vsel %vm68, %v60, %v76
  %v85 = vsel %vm69, %v61, %v77
  %v86 = vsel %vm70, %v62, %v78
  %v87 = vsel %vm71, %v63, %v79
  %v88 = vsel %vm72, %v64, %v80
  %v89 = vsel %vm73, %v65, %v81
  %v90 = vpack.c.bf16 %v83, %v82
  %v91 = vpack.c.bf16 %v85, %v84
  %v92 = vpack.c.bf16 %v87, %v86
  %v93 = vpack.c.bf16 %v89, %v88
  %94 = vst [vmem:[%s3] sm:$0xff] %v90
  %95 = vst [vmem:[%s3 + $0x8] sm:$0xff] %v91
  %96 = vst [vmem:[%s3 + $0x10] sm:$0xff] %v92
  %97 = vst [vmem:[%s3 + $0x18] sm:$0xff] %v93
  // Predicated region
  $region14: #{discriminator_forward.10} parent=0 // pred_check
    _
  $region15: #{discriminator_forward.10} parent=0 // pred_check_branch
    %99 = sbr.rel (0) target = $region17
  $region16: #{discriminator_forward.10} parent=0 // pred_region
    _
  $region17: #{discriminator_forward.10} parent=0 // pred_fallthru
    _
  // Predicated region
  $region18: #{discriminator_forward.10} parent=0 // pred_check
    _
  $region19: #{discriminator_forward.10} parent=0 // pred_check_branch
    %101 = sbr.rel (0) target = $region21
  $region20: #{discriminator_forward.10} parent=0 // pred_region
    _
  $region21: #{discriminator_forward.10} parent=0 // pred_fallthru
    _

// kernel: discriminator_forward.9
$region0: #{discriminator_forward.9}
  #allocation0 [shape = 'u32[]', space=smem, size = 0x4, offset = 0x4, fixed_abs, tag = 'smem constant byte address 0x4 - core index']
  #allocation1 [shape = 'u32[72,128]{1,0:T(1,128)}', space=vmem, size = 0x9000, scoped, tag = 'internal scratch']
  %s0 = inlined_call_operand.vmem [shape: bf16[16,128], index: 0, kind: input, shape index: {}]
  %s1 = inlined_call_operand.vmem [shape: bf16[128,512], index: 1, kind: input, shape index: {}]
  %s2 = inlined_call_operand.vmem [shape: bf16[16,512], index: 2, kind: output, shape index: {0}]
  %s3 = inlined_call_operand.vmem [shape: f32[16,1], index: 3, kind: output, shape index: {1}]
  %s4 = inlined_call_operand.vmem [shape: f32[16,1], index: 4, kind: output, shape index: {2}]
  %5 = xla_tuple %s2, %s3, %s4
  %s6 = sld [smem:[#allocation0]]
  $region38: #{discriminator_forward.9} parent=0
    _
  %s8 = ssub.s32 1, %s6
  %s9 = scalar_select 0, %s8, %s6
  // Predicated region
  $region2: #{discriminator_forward.9} parent=0 // pred_check
    _
  $region3: #{discriminator_forward.9} parent=0 // pred_check_branch
    %11 = sbr.rel (0) target = $region5
  $region4: #{discriminator_forward.9} parent=0 // pred_region
    _
  $region5: #{discriminator_forward.9} parent=0 // pred_fallthru
    _
  // Predicated region
  $region6: #{discriminator_forward.9} parent=0 // pred_check
    _
  $region7: #{discriminator_forward.9} parent=0 // pred_check_branch
    %13 = sbr.rel (0) target = $region9
  $region8: #{discriminator_forward.9} parent=0 // pred_region
    _
  $region9: #{discriminator_forward.9} parent=0 // pred_fallthru
    _
  %p14 = scmp.eq.s32.totalorder 0, 0
  // Predicated region
  $region10: #{discriminator_forward.9} parent=0 // pred_check
    %p15 = pneg %p14
  $region11: #{discriminator_forward.9} parent=0 // pred_check_branch
    %17 = sbr.rel (%p15) target = $region13
  $region12: #{discriminator_forward.9} parent=0 // pred_region
    %vm18 = vcmask 7168
    %19 = vst.msk [vmem:[%s3] sm:$0xff] %vm18, 0.0
    %20 = vst.msk [vmem:[%s3 + $0x8] sm:$0xff] %vm18, 0.0
    %21 = vst.msk [vmem:[%s4] sm:$0xff] %vm18, 0.0
    %22 = vst.msk [vmem:[%s4 + $0x8] sm:$0xff] %vm18, 0.0
  $region13: #{discriminator_forward.9} parent=0 // pred_fallthru
    _
  %v23 = vld [vmem:[%s0] sm:$0xf]
  %v24 = vld [vmem:[%s0 + $0x4] sm:$0xf]
  %v25 = vld [vmem:[%s1] sm:$0xff]
  %v26 = vld [vmem:[%s1 + $0x8] sm:$0xff]
  %v27 = vld [vmem:[%s1 + $0x10] sm:$0xff]
  %v28 = vld [vmem:[%s1 + $0x18] sm:$0xff]
  %v29 = vld [vmem:[%s1 + $0x20] sm:$0xff]
  %v30 = vld [vmem:[%s1 + $0x28] sm:$0xff]
  %v31 = vld [vmem:[%s1 + $0x30] sm:$0xff]
  %v32 = vld [vmem:[%s1 + $0x38] sm:$0xff]
  %v33 = vld [vmem:[%s1 + $0x40] sm:$0xff]
  %v34 = vld [vmem:[%s1 + $0x48] sm:$0xff]
  %v35 = vld [vmem:[%s1 + $0x50] sm:$0xff]
  %v36 = vld [vmem:[%s1 + $0x58] sm:$0xff]
  %v37 = vld [vmem:[%s1 + $0x60] sm:$0xff]
  %v38 = vld [vmem:[%s1 + $0x68] sm:$0xff]
  %v39 = vld [vmem:[%s1 + $0x70] sm:$0xff]
  %v40 = vld [vmem:[%s1 + $0x78] sm:$0xff]
  %v41 = vld [vmem:[%s1 + $0x80] sm:$0xff]
  %v42 = vld [vmem:[%s1 + $0x88] sm:$0xff]
  %v43 = vld [vmem:[%s1 + $0x90] sm:$0xff]
  %v44 = vld [vmem:[%s1 + $0x98] sm:$0xff]
  %v45 = vld [vmem:[%s1 + $0xa0] sm:$0xff]
  %v46 = vld [vmem:[%s1 + $0xa8] sm:$0xff]
  %v47 = vld [vmem:[%s1 + $0xb0] sm:$0xff]
  %v48 = vld [vmem:[%s1 + $0xb8] sm:$0xff]
  %v49 = vld [vmem:[%s1 + $0xc0] sm:$0xff]
  %v50 = vld [vmem:[%s1 + $0xc8] sm:$0xff]
  %v51 = vld [vmem:[%s1 + $0xd0] sm:$0xff]
  %v52 = vld [vmem:[%s1 + $0xd8] sm:$0xff]
  %v53 = vld [vmem:[%s1 + $0xe0] sm:$0xff]
  %v54 = vld [vmem:[%s1 + $0xe8] sm:$0xff]
  %v55 = vld [vmem:[%s1 + $0xf0] sm:$0xff]
  %v56 = vld [vmem:[%s1 + $0xf8] sm:$0xff]
  %v59 = vunpack.c.l.b16 %v23
  %v60 = vunpack.c.l.b16 %v24
  %v61 = vpack.c.b16 %v60, %v59
  %v95 = vunpack.c.l.b16 %v25
  %v96 = vunpack.c.h.b16 %v25
  %v97 = vunpack.c.l.b16 %v26
  %v98 = vunpack.c.h.b16 %v26
  %v99 = vunpack.c.l.b16 %v27
  %v100 = vunpack.c.h.b16 %v27
  %v101 = vunpack.c.l.b16 %v28
  %v102 = vunpack.c.h.b16 %v28
  %v103 = vunpack.c.l.b16 %v29
  %v104 = vunpack.c.h.b16 %v29
  %v105 = vunpack.c.l.b16 %v30
  %v106 = vunpack.c.h.b16 %v30
  %v107 = vunpack.c.l.b16 %v31
  %v108 = vunpack.c.h.b16 %v31
  %v109 = vunpack.c.l.b16 %v32
  %v110 = vunpack.c.h.b16 %v32
  %v111 = vunpack.c.l.b16 %v33
  %v112 = vunpack.c.h.b16 %v33
  %v113 = vunpack.c.l.b16 %v34
  %v114 = vunpack.c.h.b16 %v34
  %v115 = vunpack.c.l.b16 %v35
  %v116 = vunpack.c.h.b16 %v35
  %v117 = vunpack.c.l.b16 %v36
  %v118 = vunpack.c.h.b16 %v36
  %v119 = vunpack.c.l.b16 %v37
  %v120 = vunpack.c.h.b16 %v37
  %v121 = vunpack.c.l.b16 %v38
  %v122 = vunpack.c.h.b16 %v38
  %v123 = vunpack.c.l.b16 %v39
  %v124 = vunpack.c.h.b16 %v39
  %v125 = vunpack.c.l.b16 %v40
  %v126 = vunpack.c.h.b16 %v40
  %v127 = vunpack.c.l.b16 %v41
  %v128 = vunpack.c.h.b16 %v41
  %v129 = vunpack.c.l.b16 %v42
  %v130 = vunpack.c.h.b16 %v42
  %v131 = vunpack.c.l.b16 %v43
  %v132 = vunpack.c.h.b16 %v43
  %v133 = vunpack.c.l.b16 %v44
  %v134 = vunpack.c.h.b16 %v44
  %v135 = vunpack.c.l.b16 %v45
  %v136 = vunpack.c.h.b16 %v45
  %v137 = vunpack.c.l.b16 %v46
  %v138 = vunpack.c.h.b16 %v46
  %v139 = vunpack.c.l.b16 %v47
  %v140 = vunpack.c.h.b16 %v47
  %v141 = vunpack.c.l.b16 %v48
  %v142 = vunpack.c.h.b16 %v48
  %v143 = vunpack.c.l.b16 %v49
  %v144 = vunpack.c.h.b16 %v49
  %v145 = vunpack.c.l.b16 %v50
  %v146 = vunpack.c.h.b16 %v50
  %v147 = vunpack.c.l.b16 %v51
  %v148 = vunpack.c.h.b16 %v51
  %v149 = vunpack.c.l.b16 %v52
  %v150 = vunpack.c.h.b16 %v52
  %v151 = vunpack.c.l.b16 %v53
  %v152 = vunpack.c.h.b16 %v53
  %v153 = vunpack.c.l.b16 %v54
  %v154 = vunpack.c.h.b16 %v54
  %v155 = vunpack.c.l.b16 %v55
  %v156 = vunpack.c.h.b16 %v55
  %v157 = vunpack.c.l.b16 %v56
  %v158 = vunpack.c.h.b16 %v56
  %v159 = vpack.c.b16 %v99, %v95
  %v160 = vpack.c.b16 %v100, %v96
  %v161 = vpack.c.b16 %v101, %v97
  %v162 = vpack.c.b16 %v102, %v98
  %v163 = vpack.c.b16 %v107, %v103
  %v164 = vpack.c.b16 %v108, %v104
  %v165 = vpack.c.b16 %v109, %v105
  %v166 = vpack.c.b16 %v110, %v106
  %v167 = vpack.c.b16 %v115, %v111
  %v168 = vpack.c.b16 %v116, %v112
  %v169 = vpack.c.b16 %v117, %v113
  %v170 = vpack.c.b16 %v118, %v114
  %v171 = vpack.c.b16 %v123, %v119
  %v172 = vpack.c.b16 %v124, %v120
  %v173 = vpack.c.b16 %v125, %v121
  %v174 = vpack.c.b16 %v126, %v122
  %v175 = vpack.c.b16 %v131, %v127
  %v176 = vpack.c.b16 %v132, %v128
  %v177 = vpack.c.b16 %v133, %v129
  %v178 = vpack.c.b16 %v134, %v130
  %v179 = vpack.c.b16 %v139, %v135
  %v180 = vpack.c.b16 %v140, %v136
  %v181 = vpack.c.b16 %v141, %v137
  %v182 = vpack.c.b16 %v142, %v138
  %v183 = vpack.c.b16 %v147, %v143
  %v184 = vpack.c.b16 %v148, %v144
  %v185 = vpack.c.b16 %v149, %v145
  %v186 = vpack.c.b16 %v150, %v146
  %v187 = vpack.c.b16 %v155, %v151
  %v188 = vpack.c.b16 %v156, %v152
  %v189 = vpack.c.b16 %v157, %v153
  %v190 = vpack.c.b16 %v158, %v154
  %223 = vmatpush.bf16.msra.mxu0 %v187
  %224 = vmatpush.bf16.msra.mxu0 %v183
  %225 = vmatpush.bf16.msra.mxu0 %v179
  %226 = vmatpush.bf16.msra.mxu0 %v175
  %227 = vmatpush.bf16.msra.mxu0 %v171
  %228 = vmatpush.bf16.msra.mxu0 %v167
  %229 = vmatpush.bf16.msra.mxu0 %v163
  %230 = vmatpush.bf16.msra.mxu0 %v159
  %231 = vmatmul.bf16.gmra.mxu0 %v61
  %v232 = vpop.f32.mrf.mxu0
  %v233 = vadd.f32 0.0, %v232
  %v234 = vpop.f32.mrf.mxu0
  %v235 = vadd.f32 0.0, %v234
  %236 = vdwg.mxu0
  %237 = vmatpush.bf16.msra.mxu0 %v188
  %238 = vmatpush.bf16.msra.mxu0 %v184
  %239 = vmatpush.bf16.msra.mxu0 %v180
  %240 = vmatpush.bf16.msra.mxu0 %v176
  %241 = vmatpush.bf16.msra.mxu0 %v172
  %242 = vmatpush.bf16.msra.mxu0 %v168
  %243 = vmatpush.bf16.msra.mxu0 %v164
  %244 = vmatpush.bf16.msra.mxu0 %v160
  %245 = vmatmul.bf16.gmra.mxu0 %v61
  %v246 = vpop.f32.mrf.mxu0
  %v247 = vadd.f32 0.0, %v246
  %v248 = vpop.f32.mrf.mxu0
  %v249 = vadd.f32 0.0, %v248
  %250 = vdwg.mxu0
  %251 = vmatpush.bf16.msra.mxu0 %v189
  %252 = vmatpush.bf16.msra.mxu0 %v185
  %253 = vmatpush.bf16.msra.mxu0 %v181
  %254 = vmatpush.bf16.msra.mxu0 %v177
  %255 = vmatpush.bf16.msra.mxu0 %v173
  %256 = vmatpush.bf16.msra.mxu0 %v169
  %257 = vmatpush.bf16.msra.mxu0 %v165
  %258 = vmatpush.bf16.msra.mxu0 %v161
  %259 = vmatmul.bf16.gmra.mxu0 %v61
  %v260 = vpop.f32.mrf.mxu0
  %v261 = vadd.f32 0.0, %v260
  %v262 = vpop.f32.mrf.mxu0
  %v263 = vadd.f32 0.0, %v262
  %264 = vdwg.mxu0
  %265 = vmatpush.bf16.msra.mxu0 %v190
  %266 = vmatpush.bf16.msra.mxu0 %v186
  %267 = vmatpush.bf16.msra.mxu0 %v182
  %268 = vmatpush.bf16.msra.mxu0 %v178
  %269 = vmatpush.bf16.msra.mxu0 %v174
  %270 = vmatpush.bf16.msra.mxu0 %v170
  %271 = vmatpush.bf16.msra.mxu0 %v166
  %272 = vmatpush.bf16.msra.mxu0 %v162
  %273 = vmatmul.bf16.gmra.mxu0 %v61
  %v274 = vpop.f32.mrf.mxu0
  %v275 = vadd.f32 0.0, %v274
  %v276 = vpop.f32.mrf.mxu0
  %v277 = vadd.f32 0.0, %v276
  %278 = vdwg.mxu0
  %v279 = vpack.c.bf16 %v247, %v233
  %v280 = vpack.c.bf16 %v275, %v261
  %v281 = vpack.c.bf16 %v249, %v235
  %v282 = vpack.c.bf16 %v277, %v263
  %283 = vst [vmem:[%s2] sm:$0xff] %v279
  %284 = vst [vmem:[%s2 + $0x8] sm:$0xff] %v280
  %285 = vst [vmem:[%s2 + $0x10] sm:$0xff] %v281
  %286 = vst [vmem:[%s2 + $0x18] sm:$0xff] %v282
  %v287 = vld [vmem:[%s3] sm:$0xff]
  %v288 = vld [vmem:[%s3 + $0x8] sm:$0xff]
  %v289 = vadd.f32 %v233, %v247
  %v290 = vadd.f32 %v289, %v261
  %v291 = vadd.f32 %v290, %v275
  %292 = vadd.xlane.f32.xlu0 %v291
  %v293 = vpop.xlane.xlu0 %292
  %v294 = vadd.f32 %v235, %v249
  %v295 = vadd.f32 %v294, %v263
  %v296 = vadd.f32 %v295, %v277
  %297 = vadd.xlane.f32.xlu0 %v296
  %v298 = vpop.xlane.xlu0 %297
  %v299 = vadd.f32 %v287, %v293
  %v300 = vadd.f32 %v288, %v298
  %vm301 = vcmask 7168
  %302 = vst.msk [vmem:[%s3] sm:$0xff] %vm301, %v299
  %303 = vst.msk [vmem:[%s3 + $0x8] sm:$0xff] %vm301, %v300
  %v304 = vld [vmem:[%s4] sm:$0xff]
  %v305 = vld [vmem:[%s4 + $0x8] sm:$0xff]
  %v306 = vmul.f32 %v233, %v233
  %v307 = vmul.f32 %v247, %v247
  %v308 = vmul.f32 %v261, %v261
  %v309 = vmul.f32 %v275, %v275
  %v310 = vmul.f32 %v235, %v235
  %v311 = vmul.f32 %v249, %v249
  %v312 = vmul.f32 %v263, %v263
  %v313 = vmul.f32 %v277, %v277
  %v314 = vadd.f32 %v306, %v307
  %v315 = vadd.f32 %v314, %v308
  %v316 = vadd.f32 %v315, %v309
  %317 = vadd.xlane.f32.xlu0 %v316
  %v318 = vpop.xlane.xlu0 %317
  %v319 = vadd.f32 %v310, %v311
  %v320 = vadd.f32 %v319, %v312
  %v321 = vadd.f32 %v320, %v313
  %322 = vadd.xlane.f32.xlu0 %v321
  %v323 = vpop.xlane.xlu0 %322
  %v324 = vadd.f32 %v304, %v318
  %v325 = vadd.f32 %v305, %v323
  %326 = vst.msk [vmem:[%s4] sm:$0xff] %vm301, %v324
  %327 = vst.msk [vmem:[%s4 + $0x8] sm:$0xff] %vm301, %v325
  // Predicated region
  $region14: #{discriminator_forward.9} parent=0 // pred_check
    _
  $region15: #{discriminator_forward.9} parent=0 // pred_check_branch
    %329 = sbr.rel (0) target = $region17
  $region16: #{discriminator_forward.9} parent=0 // pred_region
    _
  $region17: #{discriminator_forward.9} parent=0 // pred_fallthru
    _
  // Predicated region
  $region18: #{discriminator_forward.9} parent=0 // pred_check
    _
  $region19: #{discriminator_forward.9} parent=0 // pred_check_branch
    %331 = sbr.rel (0) target = $region21
  $region20: #{discriminator_forward.9} parent=0 // pred_region
    _
  $region21: #{discriminator_forward.9} parent=0 // pred_fallthru
    _
  // Predicated region
  $region22: #{discriminator_forward.9} parent=0 // pred_check
    _
  $region23: #{discriminator_forward.9} parent=0 // pred_check_branch
    %333 = sbr.rel (0) target = $region25
  $region24: #{discriminator_forward.9} parent=0 // pred_region
    _
  $region25: #{discriminator_forward.9} parent=0 // pred_fallthru
    _
  // Predicated region
  $region26: #{discriminator_forward.9} parent=0 // pred_check
    _
  $region27: #{discriminator_forward.9} parent=0 // pred_check_branch
    %335 = sbr.rel (0) target = $region29
  $region28: #{discriminator_forward.9} parent=0 // pred_region
    _
  $region29: #{discriminator_forward.9} parent=0 // pred_fallthru
    _
  // Predicated region
  $region30: #{discriminator_forward.9} parent=0 // pred_check
    _
  $region31: #{discriminator_forward.9} parent=0 // pred_check_branch
    %337 = sbr.rel (0) target = $region33
  $region32: #{discriminator_forward.9} parent=0 // pred_region
    _
  $region33: #{discriminator_forward.9} parent=0 // pred_fallthru
    _
  // Predicated region
  $region34: #{discriminator_forward.9} parent=0 // pred_check
    _
  $region35: #{discriminator_forward.9} parent=0 // pred_check_branch
    %339 = sbr.rel (0) target = $region37
  $region36: #{discriminator_forward.9} parent=0 // pred_region
    _
  $region37: #{discriminator_forward.9} parent=0 // pred_fallthru
    _

// kernel: discriminator_forward.12
$region0: #{discriminator_forward.12}
  #allocation0 [shape = 'u32[]', space=smem, size = 0x4, offset = 0x4, fixed_abs, tag = 'smem constant byte address 0x4 - core index']
  #allocation1 [shape = 'u32[72,128]{1,0:T(1,128)}', space=vmem, size = 0x9000, scoped, tag = 'internal scratch']
  %s0 = inlined_call_operand.vmem [shape: bf16[32,128], index: 0, kind: input, shape index: {}]
  %s1 = inlined_call_operand.vmem [shape: f32[32,1], index: 1, kind: input, shape index: {}]
  %s2 = inlined_call_operand.vmem [shape: f32[32,1], index: 2, kind: input, shape index: {}]
  %s3 = inlined_call_operand.vmem [shape: bf16[32,128], index: 3, kind: output, shape index: {}]
  %s4 = sld [smem:[#allocation0]]
  $region22: #{discriminator_forward.12} parent=0
    _
  %s6 = ssub.s32 1, %s4
  %s7 = scalar_select 0, %s6, %s4
  // Predicated region
  $region2: #{discriminator_forward.12} parent=0 // pred_check
    _
  $region3: #{discriminator_forward.12} parent=0 // pred_check_branch
    %9 = sbr.rel (0) target = $region5
  $region4: #{discriminator_forward.12} parent=0 // pred_region
    _
  $region5: #{discriminator_forward.12} parent=0 // pred_fallthru
    _
  // Predicated region
  $region6: #{discriminator_forward.12} parent=0 // pred_check
    _
  $region7: #{discriminator_forward.12} parent=0 // pred_check_branch
    %11 = sbr.rel (0) target = $region9
  $region8: #{discriminator_forward.12} parent=0 // pred_region
    _
  $region9: #{discriminator_forward.12} parent=0 // pred_fallthru
    _
  // Predicated region
  $region10: #{discriminator_forward.12} parent=0 // pred_check
    _
  $region11: #{discriminator_forward.12} parent=0 // pred_check_branch
    %13 = sbr.rel (0) target = $region13
  $region12: #{discriminator_forward.12} parent=0 // pred_region
    _
  $region13: #{discriminator_forward.12} parent=0 // pred_fallthru
    _
  %v14 = vld [vmem:[%s0] sm:$0xf]
  %v15 = vld [vmem:[%s0 + $0x4] sm:$0xf]
  %v16 = vld [vmem:[%s0 + $0x8] sm:$0xf]
  %v17 = vld [vmem:[%s0 + $0xc] sm:$0xf]
  %v18 = vunpack.c.l.bf16 %v14
  %v19 = vunpack.c.l.bf16 %v15
  %v20 = vunpack.c.l.bf16 %v16
  %v21 = vunpack.c.l.bf16 %v17
  %v22 = vld [vmem:[%s1] sm:$0xff]
  %v23 = vld [vmem:[%s1 + $0x8] sm:$0xff]
  %v24 = vld [vmem:[%s1 + $0x10] sm:$0xff]
  %v25 = vld [vmem:[%s1 + $0x18] sm:$0xff]
  %27 = vset.pattern.permute.xlu0 0
  %28 = vperm.xlu0 %27, %v22
  %v29 = vpop.permute.xlu0 %28
  %32 = vset.pattern.permute.xlu0 0
  %33 = vperm.xlu0 %32, %v23
  %v34 = vpop.permute.xlu0 %33
  %37 = vset.pattern.permute.xlu0 0
  %38 = vperm.xlu0 %37, %v24
  %v39 = vpop.permute.xlu0 %38
  %42 = vset.pattern.permute.xlu0 0
  %43 = vperm.xlu0 %42, %v25
  %v44 = vpop.permute.xlu0 %43
  %v46 = vmul.f32 %v18, %v29
  %v47 = vmul.f32 %v19, %v34
  %v48 = vmul.f32 %v20, %v39
  %v49 = vmul.f32 %v21, %v44
  %v50 = vld [vmem:[%s2] sm:$0xff]
  %v51 = vld [vmem:[%s2 + $0x8] sm:$0xff]
  %v52 = vld [vmem:[%s2 + $0x10] sm:$0xff]
  %v53 = vld [vmem:[%s2 + $0x18] sm:$0xff]
  %55 = vset.pattern.permute.xlu0 0
  %56 = vperm.xlu0 %55, %v50
  %v57 = vpop.permute.xlu0 %56
  %60 = vset.pattern.permute.xlu0 0
  %61 = vperm.xlu0 %60, %v51
  %v62 = vpop.permute.xlu0 %61
  %65 = vset.pattern.permute.xlu0 0
  %66 = vperm.xlu0 %65, %v52
  %v67 = vpop.permute.xlu0 %66
  %70 = vset.pattern.permute.xlu0 0
  %71 = vperm.xlu0 %70, %v53
  %v72 = vpop.permute.xlu0 %71
  %v74 = vadd.f32 %v46, %v57
  %v75 = vadd.f32 %v47, %v62
  %v76 = vadd.f32 %v48, %v67
  %v77 = vadd.f32 %v49, %v72
  %vm78 = vcmp.gt.f32.partialorder %v74, 0.0
  %vm79 = vcmp.gt.f32.partialorder %v75, 0.0
  %vm80 = vcmp.gt.f32.partialorder %v76, 0.0
  %vm81 = vcmp.gt.f32.partialorder %v77, 0.0
  %v82 = vmul.f32 %v74, 0.2
  %v83 = vmul.f32 %v75, 0.2
  %v84 = vmul.f32 %v76, 0.2
  %v85 = vmul.f32 %v77, 0.2
  %v86 = vsel %vm78, %v74, %v82
  %v87 = vsel %vm79, %v75, %v83
  %v88 = vsel %vm80, %v76, %v84
  %v89 = vsel %vm81, %v77, %v85
  %v90 = vpack.c.bf16 %v86, %v86
  %v91 = vpack.c.bf16 %v87, %v87
  %v92 = vpack.c.bf16 %v88, %v88
  %v93 = vpack.c.bf16 %v89, %v89
  %94 = vst [vmem:[%s3] sm:$0xf] %v90
  %95 = vst [vmem:[%s3 + $0x4] sm:$0xf] %v91
  %96 = vst [vmem:[%s3 + $0x8] sm:$0xf] %v92
  %97 = vst [vmem:[%s3 + $0xc] sm:$0xf] %v93
  // Predicated region
  $region14: #{discriminator_forward.12} parent=0 // pred_check
    _
  $region15: #{discriminator_forward.12} parent=0 // pred_check_branch
    %99 = sbr.rel (0) target = $region17
  $region16: #{discriminator_forward.12} parent=0 // pred_region
    _
  $region17: #{discriminator_forward.12} parent=0 // pred_fallthru
    _
  // Predicated region
  $region18: #{discriminator_forward.12} parent=0 // pred_check
    _
  $region19: #{discriminator_forward.12} parent=0 // pred_check_branch
    %101 = sbr.rel (0) target = $region21
  $region20: #{discriminator_forward.12} parent=0 // pred_region
    _
  $region21: #{discriminator_forward.12} parent=0 // pred_fallthru
    _

// kernel: discriminator_forward.11
$region0: #{discriminator_forward.11}
  #allocation0 [shape = 'u32[]', space=smem, size = 0x4, offset = 0x4, fixed_abs, tag = 'smem constant byte address 0x4 - core index']
  #allocation1 [shape = 'u32[72,128]{1,0:T(1,128)}', space=vmem, size = 0x9000, scoped, tag = 'internal scratch']
  %s0 = inlined_call_operand.vmem [shape: bf16[32,256], index: 0, kind: input, shape index: {}]
  %s1 = inlined_call_operand.vmem [shape: bf16[256,128], index: 1, kind: input, shape index: {}]
  %s2 = inlined_call_operand.vmem [shape: bf16[32,128], index: 2, kind: output, shape index: {0}]
  %s3 = inlined_call_operand.vmem [shape: f32[32,1], index: 3, kind: output, shape index: {1}]
  %s4 = inlined_call_operand.vmem [shape: f32[32,1], index: 4, kind: output, shape index: {2}]
  %5 = xla_tuple %s2, %s3, %s4
  %s6 = sld [smem:[#allocation0]]
  $region38: #{discriminator_forward.11} parent=0
    _
  %s8 = ssub.s32 1, %s6
  %s9 = scalar_select 0, %s8, %s6
  // Predicated region
  $region2: #{discriminator_forward.11} parent=0 // pred_check
    _
  $region3: #{discriminator_forward.11} parent=0 // pred_check_branch
    %11 = sbr.rel (0) target = $region5
  $region4: #{discriminator_forward.11} parent=0 // pred_region
    _
  $region5: #{discriminator_forward.11} parent=0 // pred_fallthru
    _
  // Predicated region
  $region6: #{discriminator_forward.11} parent=0 // pred_check
    _
  $region7: #{discriminator_forward.11} parent=0 // pred_check_branch
    %13 = sbr.rel (0) target = $region9
  $region8: #{discriminator_forward.11} parent=0 // pred_region
    _
  $region9: #{discriminator_forward.11} parent=0 // pred_fallthru
    _
  %p14 = scmp.eq.s32.totalorder 0, 0
  // Predicated region
  $region10: #{discriminator_forward.11} parent=0 // pred_check
    %p15 = pneg %p14
  $region11: #{discriminator_forward.11} parent=0 // pred_check_branch
    %17 = sbr.rel (%p15) target = $region13
  $region12: #{discriminator_forward.11} parent=0 // pred_region
    %vm18 = vcmask 7168
    %19 = vst.msk [vmem:[%s3] sm:$0xff] %vm18, 0.0
    %20 = vst.msk [vmem:[%s3 + $0x8] sm:$0xff] %vm18, 0.0
    %21 = vst.msk [vmem:[%s3 + $0x10] sm:$0xff] %vm18, 0.0
    %22 = vst.msk [vmem:[%s3 + $0x18] sm:$0xff] %vm18, 0.0
    %23 = vst.msk [vmem:[%s4] sm:$0xff] %vm18, 0.0
    %24 = vst.msk [vmem:[%s4 + $0x8] sm:$0xff] %vm18, 0.0
    %25 = vst.msk [vmem:[%s4 + $0x10] sm:$0xff] %vm18, 0.0
    %26 = vst.msk [vmem:[%s4 + $0x18] sm:$0xff] %vm18, 0.0
  $region13: #{discriminator_forward.11} parent=0 // pred_fallthru
    _
  %v27 = vld [vmem:[%s0] sm:$0xff]
  %v28 = vld [vmem:[%s0 + $0x8] sm:$0xff]
  %v29 = vld [vmem:[%s0 + $0x10] sm:$0xff]
  %v30 = vld [vmem:[%s0 + $0x18] sm:$0xff]
  %v31 = vld [vmem:[%s1] sm:$0xf]
  %v32 = vld [vmem:[%s1 + $0x4] sm:$0xf]
  %v33 = vld [vmem:[%s1 + $0x8] sm:$0xf]
  %v34 = vld [vmem:[%s1 + $0xc] sm:$0xf]
  %v35 = vld [vmem:[%s1 + $0x10] sm:$0xf]
  %v36 = vld [vmem:[%s1 + $0x14] sm:$0xf]
  %v37 = vld [vmem:[%s1 + $0x18] sm:$0xf]
  %v38 = vld [vmem:[%s1 + $0x1c] sm:$0xf]
  %v39 = vld [vmem:[%s1 + $0x20] sm:$0xf]
  %v40 = vld [vmem:[%s1 + $0x24] sm:$0xf]
  %v41 = vld [vmem:[%s1 + $0x28] sm:$0xf]
  %v42 = vld [vmem:[%s1 + $0x2c] sm:$0xf]
  %v43 = vld [vmem:[%s1 + $0x30] sm:$0xf]
  %v44 = vld [vmem:[%s1 + $0x34] sm:$0xf]
  %v45 = vld [vmem:[%s1 + $0x38] sm:$0xf]
  %v46 = vld [vmem:[%s1 + $0x3c] sm:$0xf]
  %v47 = vld [vmem:[%s1 + $0x40] sm:$0xf]
  %v48 = vld [vmem:[%s1 + $0x44] sm:$0xf]
  %v49 = vld [vmem:[%s1 + $0x48] sm:$0xf]
  %v50 = vld [vmem:[%s1 + $0x4c] sm:$0xf]
  %v51 = vld [vmem:[%s1 + $0x50] sm:$0xf]
  %v52 = vld [vmem:[%s1 + $0x54] sm:$0xf]
  %v53 = vld [vmem:[%s1 + $0x58] sm:$0xf]
  %v54 = vld [vmem:[%s1 + $0x5c] sm:$0xf]
  %v55 = vld [vmem:[%s1 + $0x60] sm:$0xf]
  %v56 = vld [vmem:[%s1 + $0x64] sm:$0xf]
  %v57 = vld [vmem:[%s1 + $0x68] sm:$0xf]
  %v58 = vld [vmem:[%s1 + $0x6c] sm:$0xf]
  %v59 = vld [vmem:[%s1 + $0x70] sm:$0xf]
  %v60 = vld [vmem:[%s1 + $0x74] sm:$0xf]
  %v61 = vld [vmem:[%s1 + $0x78] sm:$0xf]
  %v62 = vld [vmem:[%s1 + $0x7c] sm:$0xf]
  %v67 = vunpack.c.l.b16 %v27
  %v68 = vunpack.c.h.b16 %v27
  %v69 = vunpack.c.l.b16 %v28
  %v70 = vunpack.c.h.b16 %v28
  %v71 = vunpack.c.l.b16 %v29
  %v72 = vunpack.c.h.b16 %v29
  %v73 = vunpack.c.l.b16 %v30
  %v74 = vunpack.c.h.b16 %v30
  %v75 = vpack.c.b16 %v69, %v67
  %v76 = vpack.c.b16 %v70, %v68
  %v77 = vpack.c.b16 %v73, %v71
  %v78 = vpack.c.b16 %v74, %v72
  %v115 = vunpack.c.l.b16 %v31
  %v116 = vunpack.c.l.b16 %v32
  %v117 = vunpack.c.l.b16 %v33
  %v118 = vunpack.c.l.b16 %v34
  %v119 = vunpack.c.l.b16 %v35
  %v120 = vunpack.c.l.b16 %v36
  %v121 = vunpack.c.l.b16 %v37
  %v122 = vunpack.c.l.b16 %v38
  %v123 = vunpack.c.l.b16 %v39
  %v124 = vunpack.c.l.b16 %v40
  %v125 = vunpack.c.l.b16 %v41
  %v126 = vunpack.c.l.b16 %v42
  %v127 = vunpack.c.l.b16 %v43
  %v128 = vunpack.c.l.b16 %v44
  %v129 = vunpack.c.l.b16 %v45
  %v130 = vunpack.c.l.b16 %v46
  %v131 = vunpack.c.l.b16 %v47
  %v132 = vunpack.c.l.b16 %v48
  %v133 = vunpack.c.l.b16 %v49
  %v134 = vunpack.c.l.b16 %v50
  %v135 = vunpack.c.l.b16 %v51
  %v136 = vunpack.c.l.b16 %v52
  %v137 = vunpack.c.l.b16 %v53
  %v138 = vunpack.c.l.b16 %v54
  %v139 = vunpack.c.l.b16 %v55
  %v140 = vunpack.c.l.b16 %v56
  %v141 = vunpack.c.l.b16 %v57
  %v142 = vunpack.c.l.b16 %v58
  %v143 = vunpack.c.l.b16 %v59
  %v144 = vunpack.c.l.b16 %v60
  %v145 = vunpack.c.l.b16 %v61
  %v146 = vunpack.c.l.b16 %v62
  %v147 = vpack.c.b16 %v116, %v115
  %v148 = vpack.c.b16 %v118, %v117
  %v149 = vpack.c.b16 %v120, %v119
  %v150 = vpack.c.b16 %v122, %v121
  %v151 = vpack.c.b16 %v124, %v123
  %v152 = vpack.c.b16 %v126, %v125
  %v153 = vpack.c.b16 %v128, %v127
  %v154 = vpack.c.b16 %v130, %v129
  %v155 = vpack.c.b16 %v132, %v131
  %v156 = vpack.c.b16 %v134, %v133
  %v157 = vpack.c.b16 %v136, %v135
  %v158 = vpack.c.b16 %v138, %v137
  %v159 = vpack.c.b16 %v140, %v139
  %v160 = vpack.c.b16 %v142, %v141
  %v161 = vpack.c.b16 %v144, %v143
  %v162 = vpack.c.b16 %v146, %v145
  %179 = vmatpush.bf16.msra.mxu0 %v154
  %180 = vmatpush.bf16.msra.mxu0 %v153
  %181 = vmatpush.bf16.msra.mxu0 %v152
  %182 = vmatpush.bf16.msra.mxu0 %v151
  %183 = vmatpush.bf16.msra.mxu0 %v150
  %184 = vmatpush.bf16.msra.mxu0 %v149
  %185 = vmatpush.bf16.msra.mxu0 %v148
  %186 = vmatpush.bf16.msra.mxu0 %v147
  %187 = vmatmul.bf16.gmra.mxu0 %v75
  %v188 = vpop.f32.mrf.mxu0
  %v189 = vadd.f32 0.0, %v188
  %v190 = vpop.f32.mrf.mxu0
  %v191 = vadd.f32 0.0, %v190
  %192 = vmatmul.bf16.gmra.mxu0 %v77
  %v193 = vpop.f32.mrf.mxu0
  %v194 = vadd.f32 0.0, %v193
  %v195 = vpop.f32.mrf.mxu0
  %v196 = vadd.f32 0.0, %v195
  %197 = vdwg.mxu0
  %198 = vmatpush.bf16.msra.mxu0 %v162
  %199 = vmatpush.bf16.msra.mxu0 %v161
  %200 = vmatpush.bf16.msra.mxu0 %v160
  %201 = vmatpush.bf16.msra.mxu0 %v159
  %202 = vmatpush.bf16.msra.mxu0 %v158
  %203 = vmatpush.bf16.msra.mxu0 %v157
  %204 = vmatpush.bf16.msra.mxu0 %v156
  %205 = vmatpush.bf16.msra.mxu0 %v155
  %206 = vmatmul.bf16.gmra.mxu0 %v76
  %v207 = vpop.f32.mrf.mxu0
  %v208 = vadd.f32 %v189, %v207
  %v209 = vpop.f32.mrf.mxu0
  %v210 = vadd.f32 %v191, %v209
  %211 = vmatmul.bf16.gmra.mxu0 %v78
  %v212 = vpop.f32.mrf.mxu0
  %v213 = vadd.f32 %v194, %v212
  %v214 = vpop.f32.mrf.mxu0
  %v215 = vadd.f32 %v196, %v214
  %216 = vdwg.mxu0
  %v217 = vpack.c.bf16 %v208, %v208
  %v218 = vpack.c.bf16 %v210, %v210
  %v219 = vpack.c.bf16 %v213, %v213
  %v220 = vpack.c.bf16 %v215, %v215
  %221 = vst [vmem:[%s2] sm:$0xf] %v217
  %222 = vst [vmem:[%s2 + $0x4] sm:$0xf] %v218
  %223 = vst [vmem:[%s2 + $0x8] sm:$0xf] %v219
  %224 = vst [vmem:[%s2 + $0xc] sm:$0xf] %v220
  %v225 = vld [vmem:[%s3] sm:$0xff]
  %v226 = vld [vmem:[%s3 + $0x8] sm:$0xff]
  %v227 = vld [vmem:[%s3 + $0x10] sm:$0xff]
  %v228 = vld [vmem:[%s3 + $0x18] sm:$0xff]
  %229 = vadd.xlane.f32.xlu0 %v208
  %v230 = vpop.xlane.xlu0 %229
  %231 = vadd.xlane.f32.xlu0 %v210
  %v232 = vpop.xlane.xlu0 %231
  %233 = vadd.xlane.f32.xlu0 %v213
  %v234 = vpop.xlane.xlu0 %233
  %235 = vadd.xlane.f32.xlu0 %v215
  %v236 = vpop.xlane.xlu0 %235
  %v237 = vadd.f32 %v225, %v230
  %v238 = vadd.f32 %v226, %v232
  %v239 = vadd.f32 %v227, %v234
  %v240 = vadd.f32 %v228, %v236
  %vm241 = vcmask 7168
  %242 = vst.msk [vmem:[%s3] sm:$0xff] %vm241, %v237
  %243 = vst.msk [vmem:[%s3 + $0x8] sm:$0xff] %vm241, %v238
  %244 = vst.msk [vmem:[%s3 + $0x10] sm:$0xff] %vm241, %v239
  %245 = vst.msk [vmem:[%s3 + $0x18] sm:$0xff] %vm241, %v240
  %v246 = vld [vmem:[%s4] sm:$0xff]
  %v247 = vld [vmem:[%s4 + $0x8] sm:$0xff]
  %v248 = vld [vmem:[%s4 + $0x10] sm:$0xff]
  %v249 = vld [vmem:[%s4 + $0x18] sm:$0xff]
  %v250 = vmul.f32 %v208, %v208
  %v251 = vmul.f32 %v210, %v210
  %v252 = vmul.f32 %v213, %v213
  %v253 = vmul.f32 %v215, %v215
  %254 = vadd.xlane.f32.xlu0 %v250
  %v255 = vpop.xlane.xlu0 %254
  %256 = vadd.xlane.f32.xlu0 %v251
  %v257 = vpop.xlane.xlu0 %256
  %258 = vadd.xlane.f32.xlu0 %v252
  %v259 = vpop.xlane.xlu0 %258
  %260 = vadd.xlane.f32.xlu0 %v253
  %v261 = vpop.xlane.xlu0 %260
  %v262 = vadd.f32 %v246, %v255
  %v263 = vadd.f32 %v247, %v257
  %v264 = vadd.f32 %v248, %v259
  %v265 = vadd.f32 %v249, %v261
  %266 = vst.msk [vmem:[%s4] sm:$0xff] %vm241, %v262
  %267 = vst.msk [vmem:[%s4 + $0x8] sm:$0xff] %vm241, %v263
  %268 = vst.msk [vmem:[%s4 + $0x10] sm:$0xff] %vm241, %v264
  %269 = vst.msk [vmem:[%s4 + $0x18] sm:$0xff] %vm241, %v265
  // Predicated region
  $region14: #{discriminator_forward.11} parent=0 // pred_check
    _
  $region15: #{discriminator_forward.11} parent=0 // pred_check_branch
    %271 = sbr.rel (0) target = $region17
  $region16: #{discriminator_forward.11} parent=0 // pred_region
    _
  $region17: #{discriminator_forward.11} parent=0 // pred_fallthru
    _
  // Predicated region
  $region18: #{discriminator_forward.11} parent=0 // pred_check
    _
  $region19: #{discriminator_forward.11} parent=0 // pred_check_branch
    %273 = sbr.rel (0) target = $region21
  $region20: #{discriminator_forward.11} parent=0 // pred_region
    _
  $region21: #{discriminator_forward.11} parent=0 // pred_fallthru
    _
  // Predicated region
  $region22: #{discriminator_forward.11} parent=0 // pred_check
    _
  $region23: #{discriminator_forward.11} parent=0 // pred_check_branch
    %275 = sbr.rel (0) target = $region25
  $region24: #{discriminator_forward.11} parent=0 // pred_region
    _
  $region25: #{discriminator_forward.11} parent=0 // pred_fallthru
    _
  // Predicated region
  $region26: #{discriminator_forward.11} parent=0 // pred_check
    _
  $region27: #{discriminator_forward.11} parent=0 // pred_check_branch
    %277 = sbr.rel (0) target = $region29
  $region28: #{discriminator_forward.11} parent=0 // pred_region
    _
  $region29: #{discriminator_forward.11} parent=0 // pred_fallthru
    _
  // Predicated region
  $region30: #{discriminator_forward.11} parent=0 // pred_check
    _
  $region31: #{discriminator_forward.11} parent=0 // pred_check_branch
    %279 = sbr.rel (0) target = $region33
  $region32: #{discriminator_forward.11} parent=0 // pred_region
    _
  $region33: #{discriminator_forward.11} parent=0 // pred_fallthru
    _
  // Predicated region
  $region34: #{discriminator_forward.11} parent=0 // pred_check
    _
  $region35: #{discriminator_forward.11} parent=0 // pred_check_branch
    %281 = sbr.rel (0) target = $region37
  $region36: #{discriminator_forward.11} parent=0 // pred_region
    _
  $region37: #{discriminator_forward.11} parent=0 // pred_fallthru
    _

// kernel: discriminator_forward.14
$region0: #{discriminator_forward.14}
  #allocation0 [shape = 'u32[]', space=smem, size = 0x4, offset = 0x4, fixed_abs, tag = 'smem constant byte address 0x4 - core index']
  #allocation1 [shape = 'u32[72,128]{1,0:T(1,128)}', space=vmem, size = 0x9000, scoped, tag = 'internal scratch']
  %s0 = inlined_call_operand.vmem [shape: bf16[64,32], index: 0, kind: input, shape index: {}]
  %s1 = inlined_call_operand.vmem [shape: f32[64,1], index: 1, kind: input, shape index: {}]
  %s2 = inlined_call_operand.vmem [shape: f32[64,1], index: 2, kind: input, shape index: {}]
  %s3 = inlined_call_operand.vmem [shape: bf16[64,32], index: 3, kind: output, shape index: {}]
  %s4 = sld [smem:[#allocation0]]
  $region22: #{discriminator_forward.14} parent=0
    _
  %s6 = ssub.s32 1, %s4
  %s7 = scalar_select 0, %s6, %s4
  // Predicated region
  $region2: #{discriminator_forward.14} parent=0 // pred_check
    _
  $region3: #{discriminator_forward.14} parent=0 // pred_check_branch
    %9 = sbr.rel (0) target = $region5
  $region4: #{discriminator_forward.14} parent=0 // pred_region
    _
  $region5: #{discriminator_forward.14} parent=0 // pred_fallthru
    _
  // Predicated region
  $region6: #{discriminator_forward.14} parent=0 // pred_check
    _
  $region7: #{discriminator_forward.14} parent=0 // pred_check_branch
    %11 = sbr.rel (0) target = $region9
  $region8: #{discriminator_forward.14} parent=0 // pred_region
    _
  $region9: #{discriminator_forward.14} parent=0 // pred_fallthru
    _
  // Predicated region
  $region10: #{discriminator_forward.14} parent=0 // pred_check
    _
  $region11: #{discriminator_forward.14} parent=0 // pred_check_branch
    %13 = sbr.rel (0) target = $region13
  $region12: #{discriminator_forward.14} parent=0 // pred_region
    _
  $region13: #{discriminator_forward.14} parent=0 // pred_fallthru
    _
  %v14 = vld [vmem:[%s0] sm:$0xf]
  %v15 = vld [vmem:[%s0 + $0x4] sm:$0xf]
  %v16 = vld [vmem:[%s0 + $0x8] sm:$0xf]
  %v17 = vld [vmem:[%s0 + $0xc] sm:$0xf]
  %v18 = vld [vmem:[%s0 + $0x10] sm:$0xf]
  %v19 = vld [vmem:[%s0 + $0x14] sm:$0xf]
  %v20 = vld [vmem:[%s0 + $0x18] sm:$0xf]
  %v21 = vld [vmem:[%s0 + $0x1c] sm:$0xf]
  %v22 = vunpack.c.l.bf16 %v14
  %v23 = vunpack.c.l.bf16 %v15
  %v24 = vunpack.c.l.bf16 %v16
  %v25 = vunpack.c.l.bf16 %v17
  %v26 = vunpack.c.l.bf16 %v18
  %v27 = vunpack.c.l.bf16 %v19
  %v28 = vunpack.c.l.bf16 %v20
  %v29 = vunpack.c.l.bf16 %v21
  %v30 = vld [vmem:[%s1] sm:$0xff]
  %v31 = vld [vmem:[%s1 + $0x8] sm:$0xff]
  %v32 = vld [vmem:[%s1 + $0x10] sm:$0xff]
  %v33 = vld [vmem:[%s1 + $0x18] sm:$0xff]
  %v34 = vld [vmem:[%s1 + $0x20] sm:$0xff]
  %v35 = vld [vmem:[%s1 + $0x28] sm:$0xff]
  %v36 = vld [vmem:[%s1 + $0x30] sm:$0xff]
  %v37 = vld [vmem:[%s1 + $0x38] sm:$0xff]
  %39 = vset.pattern.permute.xlu0 0
  %40 = vperm.xlu0 %39, %v30
  %v41 = vpop.permute.xlu0 %40
  %44 = vset.pattern.permute.xlu0 0
  %45 = vperm.xlu0 %44, %v31
  %v46 = vpop.permute.xlu0 %45
  %49 = vset.pattern.permute.xlu0 0
  %50 = vperm.xlu0 %49, %v32
  %v51 = vpop.permute.xlu0 %50
  %54 = vset.pattern.permute.xlu0 0
  %55 = vperm.xlu0 %54, %v33
  %v56 = vpop.permute.xlu0 %55
  %59 = vset.pattern.permute.xlu0 0
  %60 = vperm.xlu0 %59, %v34
  %v61 = vpop.permute.xlu0 %60
  %64 = vset.pattern.permute.xlu0 0
  %65 = vperm.xlu0 %64, %v35
  %v66 = vpop.permute.xlu0 %65
  %69 = vset.pattern.permute.xlu0 0
  %70 = vperm.xlu0 %69, %v36
  %v71 = vpop.permute.xlu0 %70
  %74 = vset.pattern.permute.xlu0 0
  %75 = vperm.xlu0 %74, %v37
  %v76 = vpop.permute.xlu0 %75
  %v78 = vmul.f32 %v22, %v41
  %v79 = vmul.f32 %v23, %v46
  %v80 = vmul.f32 %v24, %v51
  %v81 = vmul.f32 %v25, %v56
  %v82 = vmul.f32 %v26, %v61
  %v83 = vmul.f32 %v27, %v66
  %v84 = vmul.f32 %v28, %v71
  %v85 = vmul.f32 %v29, %v76
  %v86 = vld [vmem:[%s2] sm:$0xff]
  %v87 = vld [vmem:[%s2 + $0x8] sm:$0xff]
  %v88 = vld [vmem:[%s2 + $0x10] sm:$0xff]
  %v89 = vld [vmem:[%s2 + $0x18] sm:$0xff]
  %v90 = vld [vmem:[%s2 + $0x20] sm:$0xff]
  %v91 = vld [vmem:[%s2 + $0x28] sm:$0xff]
  %v92 = vld [vmem:[%s2 + $0x30] sm:$0xff]
  %v93 = vld [vmem:[%s2 + $0x38] sm:$0xff]
  %95 = vset.pattern.permute.xlu0 0
  %96 = vperm.xlu0 %95, %v86
  %v97 = vpop.permute.xlu0 %96
  %100 = vset.pattern.permute.xlu0 0
  %101 = vperm.xlu0 %100, %v87
  %v102 = vpop.permute.xlu0 %101
  %105 = vset.pattern.permute.xlu0 0
  %106 = vperm.xlu0 %105, %v88
  %v107 = vpop.permute.xlu0 %106
  %110 = vset.pattern.permute.xlu0 0
  %111 = vperm.xlu0 %110, %v89
  %v112 = vpop.permute.xlu0 %111
  %115 = vset.pattern.permute.xlu0 0
  %116 = vperm.xlu0 %115, %v90
  %v117 = vpop.permute.xlu0 %116
  %120 = vset.pattern.permute.xlu0 0
  %121 = vperm.xlu0 %120, %v91
  %v122 = vpop.permute.xlu0 %121
  %125 = vset.pattern.permute.xlu0 0
  %126 = vperm.xlu0 %125, %v92
  %v127 = vpop.permute.xlu0 %126
  %130 = vset.pattern.permute.xlu0 0
  %131 = vperm.xlu0 %130, %v93
  %v132 = vpop.permute.xlu0 %131
  %v134 = vadd.f32 %v78, %v97
  %v135 = vadd.f32 %v79, %v102
  %v136 = vadd.f32 %v80, %v107
  %v137 = vadd.f32 %v81, %v112
  %v138 = vadd.f32 %v82, %v117
  %v139 = vadd.f32 %v83, %v122
  %v140 = vadd.f32 %v84, %v127
  %v141 = vadd.f32 %v85, %v132
  %vm142 = vcmp.gt.f32.partialorder %v134, 0.0
  %vm143 = vcmp.gt.f32.partialorder %v135, 0.0
  %vm144 = vcmp.gt.f32.partialorder %v136, 0.0
  %vm145 = vcmp.gt.f32.partialorder %v137, 0.0
  %vm146 = vcmp.gt.f32.partialorder %v138, 0.0
  %vm147 = vcmp.gt.f32.partialorder %v139, 0.0
  %vm148 = vcmp.gt.f32.partialorder %v140, 0.0
  %vm149 = vcmp.gt.f32.partialorder %v141, 0.0
  %v150 = vmul.f32 %v134, 0.2
  %v151 = vmul.f32 %v135, 0.2
  %v152 = vmul.f32 %v136, 0.2
  %v153 = vmul.f32 %v137, 0.2
  %v154 = vmul.f32 %v138, 0.2
  %v155 = vmul.f32 %v139, 0.2
  %v156 = vmul.f32 %v140, 0.2
  %v157 = vmul.f32 %v141, 0.2
  %v158 = vsel %vm142, %v134, %v150
  %v159 = vsel %vm143, %v135, %v151
  %v160 = vsel %vm144, %v136, %v152
  %v161 = vsel %vm145, %v137, %v153
  %v162 = vsel %vm146, %v138, %v154
  %v163 = vsel %vm147, %v139, %v155
  %v164 = vsel %vm148, %v140, %v156
  %v165 = vsel %vm149, %v141, %v157
  %v166 = vpack.c.bf16 %v158, %v158
  %v167 = vpack.c.bf16 %v159, %v159
  %v168 = vpack.c.bf16 %v160, %v160
  %v169 = vpack.c.bf16 %v161, %v161
  %v170 = vpack.c.bf16 %v162, %v162
  %v171 = vpack.c.bf16 %v163, %v163
  %v172 = vpack.c.bf16 %v164, %v164
  %v173 = vpack.c.bf16 %v165, %v165
  %vm174 = vcmask 257024
  %175 = vst.msk [vmem:[%s3] sm:$0xf] %vm174, %v166
  %176 = vst.msk [vmem:[%s3 + $0x4] sm:$0xf] %vm174, %v167
  %177 = vst.msk [vmem:[%s3 + $0x8] sm:$0xf] %vm174, %v168
  %178 = vst.msk [vmem:[%s3 + $0xc] sm:$0xf] %vm174, %v169
  %179 = vst.msk [vmem:[%s3 + $0x10] sm:$0xf] %vm174, %v170
  %180 = vst.msk [vmem:[%s3 + $0x14] sm:$0xf] %vm174, %v171
  %181 = vst.msk [vmem:[%s3 + $0x18] sm:$0xf] %vm174, %v172
  %182 = vst.msk [vmem:[%s3 + $0x1c] sm:$0xf] %vm174, %v173
  // Predicated region
  $region14: #{discriminator_forward.14} parent=0 // pred_check
    _
  $region15: #{discriminator_forward.14} parent=0 // pred_check_branch
    %184 = sbr.rel (0) target = $region17
  $region16: #{discriminator_forward.14} parent=0 // pred_region
    _
  $region17: #{discriminator_forward.14} parent=0 // pred_fallthru
    _
  // Predicated region
  $region18: #{discriminator_forward.14} parent=0 // pred_check
    _
  $region19: #{discriminator_forward.14} parent=0 // pred_check_branch
    %186 = sbr.rel (0) target = $region21
  $region20: #{discriminator_forward.14} parent=0 // pred_region
    _
  $region21: #{discriminator_forward.14} parent=0 // pred_fallthru
    _

// kernel: discriminator_forward.13
$region0: #{discriminator_forward.13}
  #allocation0 [shape = 'u32[]', space=smem, size = 0x4, offset = 0x4, fixed_abs, tag = 'smem constant byte address 0x4 - core index']
  #allocation1 [shape = 'u32[72,128]{1,0:T(1,128)}', space=vmem, size = 0x9000, scoped, tag = 'internal scratch']
  %s0 = inlined_call_operand.vmem [shape: bf16[64,512], index: 0, kind: input, shape index: {}]
  %s1 = inlined_call_operand.vmem [shape: bf16[512,32], index: 1, kind: input, shape index: {}]
  %s2 = inlined_call_operand.vmem [shape: bf16[64,32], index: 2, kind: output, shape index: {0}]
  %s3 = inlined_call_operand.vmem [shape: f32[64,1], index: 3, kind: output, shape index: {1}]
  %s4 = inlined_call_operand.vmem [shape: f32[64,1], index: 4, kind: output, shape index: {2}]
  %5 = xla_tuple %s2, %s3, %s4
  %s6 = sld [smem:[#allocation0]]
  $region38: #{discriminator_forward.13} parent=0
    _
  %s8 = ssub.s32 1, %s6
  %s9 = scalar_select 0, %s8, %s6
  // Predicated region
  $region2: #{discriminator_forward.13} parent=0 // pred_check
    _
  $region3: #{discriminator_forward.13} parent=0 // pred_check_branch
    %11 = sbr.rel (0) target = $region5
  $region4: #{discriminator_forward.13} parent=0 // pred_region
    _
  $region5: #{discriminator_forward.13} parent=0 // pred_fallthru
    _
  // Predicated region
  $region6: #{discriminator_forward.13} parent=0 // pred_check
    _
  $region7: #{discriminator_forward.13} parent=0 // pred_check_branch
    %13 = sbr.rel (0) target = $region9
  $region8: #{discriminator_forward.13} parent=0 // pred_region
    _
  $region9: #{discriminator_forward.13} parent=0 // pred_fallthru
    _
  %p14 = scmp.eq.s32.totalorder 0, 0
  // Predicated region
  $region10: #{discriminator_forward.13} parent=0 // pred_check
    %p15 = pneg %p14
  $region11: #{discriminator_forward.13} parent=0 // pred_check_branch
    %17 = sbr.rel (%p15) target = $region13
  $region12: #{discriminator_forward.13} parent=0 // pred_region
    %vm18 = vcmask 7168
    %19 = vst.msk [vmem:[%s3] sm:$0xff] %vm18, 0.0
    %20 = vst.msk [vmem:[%s3 + $0x8] sm:$0xff] %vm18, 0.0
    %21 = vst.msk [vmem:[%s3 + $0x10] sm:$0xff] %vm18, 0.0
    %22 = vst.msk [vmem:[%s3 + $0x18] sm:$0xff] %vm18, 0.0
    %23 = vst.msk [vmem:[%s3 + $0x20] sm:$0xff] %vm18, 0.0
    %24 = vst.msk [vmem:[%s3 + $0x28] sm:$0xff] %vm18, 0.0
    %25 = vst.msk [vmem:[%s3 + $0x30] sm:$0xff] %vm18, 0.0
    %26 = vst.msk [vmem:[%s3 + $0x38] sm:$0xff] %vm18, 0.0
    %27 = vst.msk [vmem:[%s4] sm:$0xff] %vm18, 0.0
    %28 = vst.msk [vmem:[%s4 + $0x8] sm:$0xff] %vm18, 0.0
    %29 = vst.msk [vmem:[%s4 + $0x10] sm:$0xff] %vm18, 0.0
    %30 = vst.msk [vmem:[%s4 + $0x18] sm:$0xff] %vm18, 0.0
    %31 = vst.msk [vmem:[%s4 + $0x20] sm:$0xff] %vm18, 0.0
    %32 = vst.msk [vmem:[%s4 + $0x28] sm:$0xff] %vm18, 0.0
    %33 = vst.msk [vmem:[%s4 + $0x30] sm:$0xff] %vm18, 0.0
    %34 = vst.msk [vmem:[%s4 + $0x38] sm:$0xff] %vm18, 0.0
  $region13: #{discriminator_forward.13} parent=0 // pred_fallthru
    _
  %v35 = vld [vmem:[%s0] sm:$0xff]
  %v36 = vld [vmem:[%s0 + $0x8] sm:$0xff]
  %v37 = vld [vmem:[%s0 + $0x10] sm:$0xff]
  %v38 = vld [vmem:[%s0 + $0x18] sm:$0xff]
  %v39 = vld [vmem:[%s0 + $0x20] sm:$0xff]
  %v40 = vld [vmem:[%s0 + $0x28] sm:$0xff]
  %v41 = vld [vmem:[%s0 + $0x30] sm:$0xff]
  %v42 = vld [vmem:[%s0 + $0x38] sm:$0xff]
  %v43 = vld [vmem:[%s0 + $0x40] sm:$0xff]
  %v44 = vld [vmem:[%s0 + $0x48] sm:$0xff]
  %v45 = vld [vmem:[%s0 + $0x50] sm:$0xff]
  %v46 = vld [vmem:[%s0 + $0x58] sm:$0xff]
  %v47 = vld [vmem:[%s0 + $0x60] sm:$0xff]
  %v48 = vld [vmem:[%s0 + $0x68] sm:$0xff]
  %v49 = vld [vmem:[%s0 + $0x70] sm:$0xff]
  %v50 = vld [vmem:[%s0 + $0x78] sm:$0xff]
  %v51 = vld [vmem:[%s1] sm:$0xf]
  %v52 = vld [vmem:[%s1 + $0x4] sm:$0xf]
  %v53 = vld [vmem:[%s1 + $0x8] sm:$0xf]
  %v54 = vld [vmem:[%s1 + $0xc] sm:$0xf]
  %v55 = vld [vmem:[%s1 + $0x10] sm:$0xf]
  %v56 = vld [vmem:[%s1 + $0x14] sm:$0xf]
  %v57 = vld [vmem:[%s1 + $0x18] sm:$0xf]
  %v58 = vld [vmem:[%s1 + $0x1c] sm:$0xf]
  %v59 = vld [vmem:[%s1 + $0x20] sm:$0xf]
  %v60 = vld [vmem:[%s1 + $0x24] sm:$0xf]
  %v61 = vld [vmem:[%s1 + $0x28] sm:$0xf]
  %v62 = vld [vmem:[%s1 + $0x2c] sm:$0xf]
  %v63 = vld [vmem:[%s1 + $0x30] sm:$0xf]
  %v64 = vld [vmem:[%s1 + $0x34] sm:$0xf]
  %v65 = vld [vmem:[%s1 + $0x38] sm:$0xf]
  %v66 = vld [vmem:[%s1 + $0x3c] sm:$0xf]
  %v67 = vld [vmem:[%s1 + $0x40] sm:$0xf]
  %v68 = vld [vmem:[%s1 + $0x44] sm:$0xf]
  %v69 = vld [vmem:[%s1 + $0x48] sm:$0xf]
  %v70 = vld [vmem:[%s1 + $0x4c] sm:$0xf]
  %v71 = vld [vmem:[%s1 + $0x50] sm:$0xf]
  %v72 = vld [vmem:[%s1 + $0x54] sm:$0xf]
  %v73 = vld [vmem:[%s1 + $0x58] sm:$0xf]
  %v74 = vld [vmem:[%s1 + $0x5c] sm:$0xf]
  %v75 = vld [vmem:[%s1 + $0x60] sm:$0xf]
  %v76 = vld [vmem:[%s1 + $0x64] sm:$0xf]
  %v77 = vld [vmem:[%s1 + $0x68] sm:$0xf]
  %v78 = vld [vmem:[%s1 + $0x6c] sm:$0xf]
  %v79 = vld [vmem:[%s1 + $0x70] sm:$0xf]
  %v80 = vld [vmem:[%s1 + $0x74] sm:$0xf]
  %v81 = vld [vmem:[%s1 + $0x78] sm:$0xf]
  %v82 = vld [vmem:[%s1 + $0x7c] sm:$0xf]
  %v83 = vld [vmem:[%s1 + $0x80] sm:$0xf]
  %v84 = vld [vmem:[%s1 + $0x84] sm:$0xf]
  %v85 = vld [vmem:[%s1 + $0x88] sm:$0xf]
  %v86 = vld [vmem:[%s1 + $0x8c] sm:$0xf]
  %v87 = vld [vmem:[%s1 + $0x90] sm:$0xf]
  %v88 = vld [vmem:[%s1 + $0x94] sm:$0xf]
  %v89 = vld [vmem:[%s1 + $0x98] sm:$0xf]
  %v90 = vld [vmem:[%s1 + $0x9c] sm:$0xf]
  %v91 = vld [vmem:[%s1 + $0xa0] sm:$0xf]
  %v92 = vld [vmem:[%s1 + $0xa4] sm:$0xf]
  %v93 = vld [vmem:[%s1 + $0xa8] sm:$0xf]
  %v94 = vld [vmem:[%s1 + $0xac] sm:$0xf]
  %v95 = vld [vmem:[%s1 + $0xb0] sm:$0xf]
  %v96 = vld [vmem:[%s1 + $0xb4] sm:$0xf]
  %v97 = vld [vmem:[%s1 + $0xb8] sm:$0xf]
  %v98 = vld [vmem:[%s1 + $0xbc] sm:$0xf]
  %v99 = vld [vmem:[%s1 + $0xc0] sm:$0xf]
  %v100 = vld [vmem:[%s1 + $0xc4] sm:$0xf]
  %v101 = vld [vmem:[%s1 + $0xc8] sm:$0xf]
  %v102 = vld [vmem:[%s1 + $0xcc] sm:$0xf]
  %v103 = vld [vmem:[%s1 + $0xd0] sm:$0xf]
  %v104 = vld [vmem:[%s1 + $0xd4] sm:$0xf]
  %v105 = vld [vmem:[%s1 + $0xd8] sm:$0xf]
  %v106 = vld [vmem:[%s1 + $0xdc] sm:$0xf]
  %v107 = vld [vmem:[%s1 + $0xe0] sm:$0xf]
  %v108 = vld [vmem:[%s1 + $0xe4] sm:$0xf]
  %v109 = vld [vmem:[%s1 + $0xe8] sm:$0xf]
  %v110 = vld [vmem:[%s1 + $0xec] sm:$0xf]
  %v111 = vld [vmem:[%s1 + $0xf0] sm:$0xf]
  %v112 = vld [vmem:[%s1 + $0xf4] sm:$0xf]
  %v113 = vld [vmem:[%s1 + $0xf8] sm:$0xf]
  %v114 = vld [vmem:[%s1 + $0xfc] sm:$0xf]
  %v131 = vunpack.c.l.b16 %v35
  %v132 = vunpack.c.h.b16 %v35
  %v133 = vunpack.c.l.b16 %v36
  %v134 = vunpack.c.h.b16 %v36
  %v135 = vunpack.c.l.b16 %v37
  %v136 = vunpack.c.h.b16 %v37
  %v137 = vunpack.c.l.b16 %v38
  %v138 = vunpack.c.h.b16 %v38
  %v139 = vunpack.c.l.b16 %v39
  %v140 = vunpack.c.h.b16 %v39
  %v141 = vunpack.c.l.b16 %v40
  %v142 = vunpack.c.h.b16 %v40
  %v143 = vunpack.c.l.b16 %v41
  %v144 = vunpack.c.h.b16 %v41
  %v145 = vunpack.c.l.b16 %v42
  %v146 = vunpack.c.h.b16 %v42
  %v147 = vunpack.c.l.b16 %v43
  %v148 = vunpack.c.h.b16 %v43
  %v149 = vunpack.c.l.b16 %v44
  %v150 = vunpack.c.h.b16 %v44
  %v151 = vunpack.c.l.b16 %v45
  %v152 = vunpack.c.h.b16 %v45
  %v153 = vunpack.c.l.b16 %v46
  %v154 = vunpack.c.h.b16 %v46
  %v155 = vunpack.c.l.b16 %v47
  %v156 = vunpack.c.h.b16 %v47
  %v157 = vunpack.c.l.b16 %v48
  %v158 = vunpack.c.h.b16 %v48
  %v159 = vunpack.c.l.b16 %v49
  %v160 = vunpack.c.h.b16 %v49
  %v161 = vunpack.c.l.b16 %v50
  %v162 = vunpack.c.h.b16 %v50
  %v163 = vpack.c.b16 %v135, %v131
  %v164 = vpack.c.b16 %v136, %v132
  %v165 = vpack.c.b16 %v137, %v133
  %v166 = vpack.c.b16 %v138, %v134
  %v167 = vpack.c.b16 %v143, %v139
  %v168 = vpack.c.b16 %v144, %v140
  %v169 = vpack.c.b16 %v145, %v141
  %v170 = vpack.c.b16 %v146, %v142
  %v171 = vpack.c.b16 %v151, %v147
  %v172 = vpack.c.b16 %v152, %v148
  %v173 = vpack.c.b16 %v153, %v149
  %v174 = vpack.c.b16 %v154, %v150
  %v175 = vpack.c.b16 %v159, %v155
  %v176 = vpack.c.b16 %v160, %v156
  %v177 = vpack.c.b16 %v161, %v157
  %v178 = vpack.c.b16 %v162, %v158
  %v259 = vunpack.c.l.b16 %v51
  %v260 = vunpack.c.l.b16 %v52
  %v261 = vunpack.c.l.b16 %v53
  %v262 = vunpack.c.l.b16 %v54
  %v263 = vunpack.c.l.b16 %v55
  %v264 = vunpack.c.l.b16 %v56
  %v265 = vunpack.c.l.b16 %v57
  %v266 = vunpack.c.l.b16 %v58
  %v267 = vunpack.c.l.b16 %v59
  %v268 = vunpack.c.l.b16 %v60
  %v269 = vunpack.c.l.b16 %v61
  %v270 = vunpack.c.l.b16 %v62
  %v271 = vunpack.c.l.b16 %v63
  %v272 = vunpack.c.l.b16 %v64
  %v273 = vunpack.c.l.b16 %v65
  %v274 = vunpack.c.l.b16 %v66
  %v275 = vunpack.c.l.b16 %v67
  %v276 = vunpack.c.l.b16 %v68
  %v277 = vunpack.c.l.b16 %v69
  %v278 = vunpack.c.l.b16 %v70
  %v279 = vunpack.c.l.b16 %v71
  %v280 = vunpack.c.l.b16 %v72
  %v281 = vunpack.c.l.b16 %v73
  %v282 = vunpack.c.l.b16 %v74
  %v283 = vunpack.c.l.b16 %v75
  %v284 = vunpack.c.l.b16 %v76
  %v285 = vunpack.c.l.b16 %v77
  %v286 = vunpack.c.l.b16 %v78
  %v287 = vunpack.c.l.b16 %v79
  %v288 = vunpack.c.l.b16 %v80
  %v289 = vunpack.c.l.b16 %v81
  %v290 = vunpack.c.l.b16 %v82
  %v291 = vunpack.c.l.b16 %v83
  %v292 = vunpack.c.l.b16 %v84
  %v293 = vunpack.c.l.b16 %v85
  %v294 = vunpack.c.l.b16 %v86
  %v295 = vunpack.c.l.b16 %v87
  %v296 = vunpack.c.l.b16 %v88
  %v297 = vunpack.c.l.b16 %v89
  %v298 = vunpack.c.l.b16 %v90
  %v299 = vunpack.c.l.b16 %v91
  %v300 = vunpack.c.l.b16 %v92
  %v301 = vunpack.c.l.b16 %v93
  %v302 = vunpack.c.l.b16 %v94
  %v303 = vunpack.c.l.b16 %v95
  %v304 = vunpack.c.l.b16 %v96
  %v305 = vunpack.c.l.b16 %v97
  %v306 = vunpack.c.l.b16 %v98
  %v307 = vunpack.c.l.b16 %v99
  %v308 = vunpack.c.l.b16 %v100
  %v309 = vunpack.c.l.b16 %v101
  %v310 = vunpack.c.l.b16 %v102
  %v311 = vunpack.c.l.b16 %v103
  %v312 = vunpack.c.l.b16 %v104
  %v313 = vunpack.c.l.b16 %v105
  %v314 = vunpack.c.l.b16 %v106
  %v315 = vunpack.c.l.b16 %v107
  %v316 = vunpack.c.l.b16 %v108
  %v317 = vunpack.c.l.b16 %v109
  %v318 = vunpack.c.l.b16 %v110
  %v319 = vunpack.c.l.b16 %v111
  %v320 = vunpack.c.l.b16 %v112
  %v321 = vunpack.c.l.b16 %v113
  %v322 = vunpack.c.l.b16 %v114
  %v323 = vpack.c.b16 %v260, %v259
  %v324 = vpack.c.b16 %v262, %v261
  %v325 = vpack.c.b16 %v264, %v263
  %v326 = vpack.c.b16 %v266, %v265
  %v327 = vpack.c.b16 %v268, %v267
  %v328 = vpack.c.b16 %v270, %v269
  %v329 = vpack.c.b16 %v272, %v271
  %v330 = vpack.c.b16 %v274, %v273
  %v331 = vpack.c.b16 %v276, %v275
  %v332 = vpack.c.b16 %v278, %v277
  %v333 = vpack.c.b16 %v280, %v279
  %v334 = vpack.c.b16 %v282, %v281
  %v335 = vpack.c.b16 %v284, %v283
  %v336 = vpack.c.b16 %v286, %v285
  %v337 = vpack.c.b16 %v288, %v287
  %v338 = vpack.c.b16 %v290, %v289
  %v339 = vpack.c.b16 %v292, %v291
  %v340 = vpack.c.b16 %v294, %v293
  %v341 = vpack.c.b16 %v296, %v295
  %v342 = vpack.c.b16 %v298, %v297
  %v343 = vpack.c.b16 %v300, %v299
  %v344 = vpack.c.b16 %v302, %v301
  %v345 = vpack.c.b16 %v304, %v303
  %v346 = vpack.c.b16 %v306, %v305
  %v347 = vpack.c.b16 %v308, %v307
  %v348 = vpack.c.b16 %v310, %v309
  %v349 = vpack.c.b16 %v312, %v311
  %v350 = vpack.c.b16 %v314, %v313
  %v351 = vpack.c.b16 %v316, %v315
  %v352 = vpack.c.b16 %v318, %v317
  %v353 = vpack.c.b16 %v320, %v319
  %v354 = vpack.c.b16 %v322, %v321
  %387 = vmatpush.bf16.msra.mxu0 %v330
  %388 = vmatpush.bf16.msra.mxu0 %v329
  %389 = vmatpush.bf16.msra.mxu0 %v328
  %390 = vmatpush.bf16.msra.mxu0 %v327
  %391 = vmatpush.bf16.msra.mxu0 %v326
  %392 = vmatpush.bf16.msra.mxu0 %v325
  %393 = vmatpush.bf16.msra.mxu0 %v324
  %394 = vmatpush.bf16.msra.mxu0 %v323
  %395 = vmatmul.bf16.gmra.mxu0 %v163
  %v396 = vpop.f32.mrf.mxu0
  %v397 = vadd.f32 0.0, %v396
  %v398 = vpop.f32.mrf.mxu0
  %v399 = vadd.f32 0.0, %v398
  %400 = vmatmul.bf16.gmra.mxu0 %v167
  %v401 = vpop.f32.mrf.mxu0
  %v402 = vadd.f32 0.0, %v401
  %v403 = vpop.f32.mrf.mxu0
  %v404 = vadd.f32 0.0, %v403
  %405 = vmatmul.bf16.gmra.mxu0 %v171
  %v406 = vpop.f32.mrf.mxu0
  %v407 = vadd.f32 0.0, %v406
  %v408 = vpop.f32.mrf.mxu0
  %v409 = vadd.f32 0.0, %v408
  %410 = vmatmul.bf16.gmra.mxu0 %v175
  %v411 = vpop.f32.mrf.mxu0
  %v412 = vadd.f32 0.0, %v411
  %v413 = vpop.f32.mrf.mxu0
  %v414 = vadd.f32 0.0, %v413
  %415 = vdwg.mxu0
  %416 = vmatpush.bf16.msra.mxu0 %v338
  %417 = vmatpush.bf16.msra.mxu0 %v337
  %418 = vmatpush.bf16.msra.mxu0 %v336
  %419 = vmatpush.bf16.msra.mxu0 %v335
  %420 = vmatpush.bf16.msra.mxu0 %v334
  %421 = vmatpush.bf16.msra.mxu0 %v333
  %422 = vmatpush.bf16.msra.mxu0 %v332
  %423 = vmatpush.bf16.msra.mxu0 %v331
  %424 = vmatmul.bf16.gmra.mxu0 %v164
  %v425 = vpop.f32.mrf.mxu0
  %v426 = vadd.f32 %v397, %v425
  %v427 = vpop.f32.mrf.mxu0
  %v428 = vadd.f32 %v399, %v427
  %429 = vmatmul.bf16.gmra.mxu0 %v168
  %v430 = vpop.f32.mrf.mxu0
  %v431 = vadd.f32 %v402, %v430
  %v432 = vpop.f32.mrf.mxu0
  %v433 = vadd.f32 %v404, %v432
  %434 = vmatmul.bf16.gmra.mxu0 %v172
  %v435 = vpop.f32.mrf.mxu0
  %v436 = vadd.f32 %v407, %v435
  %v437 = vpop.f32.mrf.mxu0
  %v438 = vadd.f32 %v409, %v437
  %439 = vmatmul.bf16.gmra.mxu0 %v176
  %v440 = vpop.f32.mrf.mxu0
  %v441 = vadd.f32 %v412, %v440
  %v442 = vpop.f32.mrf.mxu0
  %v443 = vadd.f32 %v414, %v442
  %444 = vdwg.mxu0
  %445 = vmatpush.bf16.msra.mxu0 %v346
  %446 = vmatpush.bf16.msra.mxu0 %v345
  %447 = vmatpush.bf16.msra.mxu0 %v344
  %448 = vmatpush.bf16.msra.mxu0 %v343
  %449 = vmatpush.bf16.msra.mxu0 %v342
  %450 = vmatpush.bf16.msra.mxu0 %v341
  %451 = vmatpush.bf16.msra.mxu0 %v340
  %452 = vmatpush.bf16.msra.mxu0 %v339
  %453 = vmatmul.bf16.gmra.mxu0 %v165
  %v454 = vpop.f32.mrf.mxu0
  %v455 = vadd.f32 %v426, %v454
  %v456 = vpop.f32.mrf.mxu0
  %v457 = vadd.f32 %v428, %v456
  %458 = vmatmul.bf16.gmra.mxu0 %v169
  %v459 = vpop.f32.mrf.mxu0
  %v460 = vadd.f32 %v431, %v459
  %v461 = vpop.f32.mrf.mxu0
  %v462 = vadd.f32 %v433, %v461
  %463 = vmatmul.bf16.gmra.mxu0 %v173
  %v464 = vpop.f32.mrf.mxu0
  %v465 = vadd.f32 %v436, %v464
  %v466 = vpop.f32.mrf.mxu0
  %v467 = vadd.f32 %v438, %v466
  %468 = vmatmul.bf16.gmra.mxu0 %v177
  %v469 = vpop.f32.mrf.mxu0
  %v470 = vadd.f32 %v441, %v469
  %v471 = vpop.f32.mrf.mxu0
  %v472 = vadd.f32 %v443, %v471
  %473 = vdwg.mxu0
  %474 = vmatpush.bf16.msra.mxu0 %v354
  %475 = vmatpush.bf16.msra.mxu0 %v353
  %476 = vmatpush.bf16.msra.mxu0 %v352
  %477 = vmatpush.bf16.msra.mxu0 %v351
  %478 = vmatpush.bf16.msra.mxu0 %v350
  %479 = vmatpush.bf16.msra.mxu0 %v349
  %480 = vmatpush.bf16.msra.mxu0 %v348
  %481 = vmatpush.bf16.msra.mxu0 %v347
  %482 = vmatmul.bf16.gmra.mxu0 %v166
  %v483 = vpop.f32.mrf.mxu0
  %v484 = vadd.f32 %v455, %v483
  %v485 = vpop.f32.mrf.mxu0
  %v486 = vadd.f32 %v457, %v485
  %487 = vmatmul.bf16.gmra.mxu0 %v170
  %v488 = vpop.f32.mrf.mxu0
  %v489 = vadd.f32 %v460, %v488
  %v490 = vpop.f32.mrf.mxu0
  %v491 = vadd.f32 %v462, %v490
  %492 = vmatmul.bf16.gmra.mxu0 %v174
  %v493 = vpop.f32.mrf.mxu0
  %v494 = vadd.f32 %v465, %v493
  %v495 = vpop.f32.mrf.mxu0
  %v496 = vadd.f32 %v467, %v495
  %497 = vmatmul.bf16.gmra.mxu0 %v178
  %v498 = vpop.f32.mrf.mxu0
  %v499 = vadd.f32 %v470, %v498
  %v500 = vpop.f32.mrf.mxu0
  %v501 = vadd.f32 %v472, %v500
  %502 = vdwg.mxu0
  %v503 = vpack.c.bf16 %v484, %v484
  %v504 = vpack.c.bf16 %v486, %v486
  %v505 = vpack.c.bf16 %v489, %v489
  %v506 = vpack.c.bf16 %v491, %v491
  %v507 = vpack.c.bf16 %v494, %v494
  %v508 = vpack.c.bf16 %v496, %v496
  %v509 = vpack.c.bf16 %v499, %v499
  %v510 = vpack.c.bf16 %v501, %v501
  %vm511 = vcmask 257024
  %512 = vst.msk [vmem:[%s2] sm:$0xf] %vm511, %v503
  %513 = vst.msk [vmem:[%s2 + $0x4] sm:$0xf] %vm511, %v504
  %514 = vst.msk [vmem:[%s2 + $0x8] sm:$0xf] %vm511, %v505
  %515 = vst.msk [vmem:[%s2 + $0xc] sm:$0xf] %vm511, %v506
  %516 = vst.msk [vmem:[%s2 + $0x10] sm:$0xf] %vm511, %v507
  %517 = vst.msk [vmem:[%s2 + $0x14] sm:$0xf] %vm511, %v508
  %518 = vst.msk [vmem:[%s2 + $0x18] sm:$0xf] %vm511, %v509
  %519 = vst.msk [vmem:[%s2 + $0x1c] sm:$0xf] %vm511, %v510
  %v520 = vld [vmem:[%s3] sm:$0xff]
  %v521 = vld [vmem:[%s3 + $0x8] sm:$0xff]
  %v522 = vld [vmem:[%s3 + $0x10] sm:$0xff]
  %v523 = vld [vmem:[%s3 + $0x18] sm:$0xff]
  %v524 = vld [vmem:[%s3 + $0x20] sm:$0xff]
  %v525 = vld [vmem:[%s3 + $0x28] sm:$0xff]
  %v526 = vld [vmem:[%s3 + $0x30] sm:$0xff]
  %v527 = vld [vmem:[%s3 + $0x38] sm:$0xff]
  %vm528 = vcmask 261120
  %v529 = vsel %vm528, %v484, 0.0
  %530 = vadd.xlane.f32.xlu0 %v529
  %v531 = vpop.xlane.xlu0 %530
  %v532 = vsel %vm528, %v486, 0.0
  %533 = vadd.xlane.f32.xlu0 %v532
  %v534 = vpop.xlane.xlu0 %533
  %v535 = vsel %vm528, %v489, 0.0
  %536 = vadd.xlane.f32.xlu0 %v535
  %v537 = vpop.xlane.xlu0 %536
  %v538 = vsel %vm528, %v491, 0.0
  %539 = vadd.xlane.f32.xlu0 %v538
  %v540 = vpop.xlane.xlu0 %539
  %v541 = vsel %vm528, %v494, 0.0
  %542 = vadd.xlane.f32.xlu0 %v541
  %v543 = vpop.xlane.xlu0 %542
  %v544 = vsel %vm528, %v496, 0.0
  %545 = vadd.xlane.f32.xlu0 %v544
  %v546 = vpop.xlane.xlu0 %545
  %v547 = vsel %vm528, %v499, 0.0
  %548 = vadd.xlane.f32.xlu0 %v547
  %v549 = vpop.xlane.xlu0 %548
  %v550 = vsel %vm528, %v501, 0.0
  %551 = vadd.xlane.f32.xlu0 %v550
  %v552 = vpop.xlane.xlu0 %551
  %v553 = vadd.f32 %v520, %v531
  %v554 = vadd.f32 %v521, %v534
  %v555 = vadd.f32 %v522, %v537
  %v556 = vadd.f32 %v523, %v540
  %v557 = vadd.f32 %v524, %v543
  %v558 = vadd.f32 %v525, %v546
  %v559 = vadd.f32 %v526, %v549
  %v560 = vadd.f32 %v527, %v552
  %vm561 = vcmask 7168
  %562 = vst.msk [vmem:[%s3] sm:$0xff] %vm561, %v553
  %563 = vst.msk [vmem:[%s3 + $0x8] sm:$0xff] %vm561, %v554
  %564 = vst.msk [vmem:[%s3 + $0x10] sm:$0xff] %vm561, %v555
  %565 = vst.msk [vmem:[%s3 + $0x18] sm:$0xff] %vm561, %v556
  %566 = vst.msk [vmem:[%s3 + $0x20] sm:$0xff] %vm561, %v557
  %567 = vst.msk [vmem:[%s3 + $0x28] sm:$0xff] %vm561, %v558
  %568 = vst.msk [vmem:[%s3 + $0x30] sm:$0xff] %vm561, %v559
  %569 = vst.msk [vmem:[%s3 + $0x38] sm:$0xff] %vm561, %v560
  %v570 = vld [vmem:[%s4] sm:$0xff]
  %v571 = vld [vmem:[%s4 + $0x8] sm:$0xff]
  %v572 = vld [vmem:[%s4 + $0x10] sm:$0xff]
  %v573 = vld [vmem:[%s4 + $0x18] sm:$0xff]
  %v574 = vld [vmem:[%s4 + $0x20] sm:$0xff]
  %v575 = vld [vmem:[%s4 + $0x28] sm:$0xff]
  %v576 = vld [vmem:[%s4 + $0x30] sm:$0xff]
  %v577 = vld [vmem:[%s4 + $0x38] sm:$0xff]
  %v578 = vmul.f32 %v484, %v484
  %v579 = vmul.f32 %v486, %v486
  %v580 = vmul.f32 %v489, %v489
  %v581 = vmul.f32 %v491, %v491
  %v582 = vmul.f32 %v494, %v494
  %v583 = vmul.f32 %v496, %v496
  %v584 = vmul.f32 %v499, %v499
  %v585 = vmul.f32 %v501, %v501
  %v586 = vsel %vm528, %v578, 0.0
  %587 = vadd.xlane.f32.xlu0 %v586
  %v588 = vpop.xlane.xlu0 %587
  %v589 = vsel %vm528, %v579, 0.0
  %590 = vadd.xlane.f32.xlu0 %v589
  %v591 = vpop.xlane.xlu0 %590
  %v592 = vsel %vm528, %v580, 0.0
  %593 = vadd.xlane.f32.xlu0 %v592
  %v594 = vpop.xlane.xlu0 %593
  %v595 = vsel %vm528, %v581, 0.0
  %596 = vadd.xlane.f32.xlu0 %v595
  %v597 = vpop.xlane.xlu0 %596
  %v598 = vsel %vm528, %v582, 0.0
  %599 = vadd.xlane.f32.xlu0 %v598
  %v600 = vpop.xlane.xlu0 %599
  %v601 = vsel %vm528, %v583, 0.0
  %602 = vadd.xlane.f32.xlu0 %v601
  %v603 = vpop.xlane.xlu0 %602
  %v604 = vsel %vm528, %v584, 0.0
  %605 = vadd.xlane.f32.xlu0 %v604
  %v606 = vpop.xlane.xlu0 %605
  %v607 = vsel %vm528, %v585, 0.0
  %608 = vadd.xlane.f32.xlu0 %v607
  %v609 = vpop.xlane.xlu0 %608
  %v610 = vadd.f32 %v570, %v588
  %v611 = vadd.f32 %v571, %v591
  %v612 = vadd.f32 %v572, %v594
  %v613 = vadd.f32 %v573, %v597
  %v614 = vadd.f32 %v574, %v600
  %v615 = vadd.f32 %v575, %v603
  %v616 = vadd.f32 %v576, %v606
  %v617 = vadd.f32 %v577, %v609
  %618 = vst.msk [vmem:[%s4] sm:$0xff] %vm561, %v610
  %619 = vst.msk [vmem:[%s4 + $0x8] sm:$0xff] %vm561, %v611
  %620 = vst.msk [vmem:[%s4 + $0x10] sm:$0xff] %vm561, %v612
  %621 = vst.msk [vmem:[%s4 + $0x18] sm:$0xff] %vm561, %v613
  %622 = vst.msk [vmem:[%s4 + $0x20] sm:$0xff] %vm561, %v614
  %623 = vst.msk [vmem:[%s4 + $0x28] sm:$0xff] %vm561, %v615
  %624 = vst.msk [vmem:[%s4 + $0x30] sm:$0xff] %vm561, %v616
  %625 = vst.msk [vmem:[%s4 + $0x38] sm:$0xff] %vm561, %v617
  // Predicated region
  $region14: #{discriminator_forward.13} parent=0 // pred_check
    _
  $region15: #{discriminator_forward.13} parent=0 // pred_check_branch
    %627 = sbr.rel (0) target = $region17
  $region16: #{discriminator_forward.13} parent=0 // pred_region
    _
  $region17: #{discriminator_forward.13} parent=0 // pred_fallthru
    _
  // Predicated region
  $region18: #{discriminator_forward.13} parent=0 // pred_check
    _
  $region19: #{discriminator_forward.13} parent=0 // pred_check_branch
    %629 = sbr.rel (0) target = $region21
  $region20: #{discriminator_forward.13} parent=0 // pred_region
    _
  $region21: #{discriminator_forward.13} parent=0 // pred_fallthru
    _
  // Predicated region
  $region22: #{discriminator_forward.13} parent=0 // pred_check
    _
  $region23: #{discriminator_forward.13} parent=0 // pred_check_branch
    %631 = sbr.rel (0) target = $region25
  $region24: #{discriminator_forward.13} parent=0 // pred_region
    _
  $region25: #{discriminator_forward.13} parent=0 // pred_fallthru
    _
  // Predicated region
  $region26: #{discriminator_forward.13} parent=0 // pred_check
    _
  $region27: #{discriminator_forward.13} parent=0 // pred_check_branch
    %633 = sbr.rel (0) target = $region29
  $region28: #{discriminator_forward.13} parent=0 // pred_region
    _
  $region29: #{discriminator_forward.13} parent=0 // pred_fallthru
    _
  // Predicated region
  $region30: #{discriminator_forward.13} parent=0 // pred_check
    _
  $region31: #{discriminator_forward.13} parent=0 // pred_check_branch
    %635 = sbr.rel (0) target = $region33
  $region32: #{discriminator_forward.13} parent=0 // pred_region
    _
  $region33: #{discriminator_forward.13} parent=0 // pred_fallthru
    _
  // Predicated region
  $region34: #{discriminator_forward.13} parent=0 // pred_check
    _
  $region35: #{discriminator_forward.13} parent=0 // pred_check_branch
    %637 = sbr.rel (0) target = $region37
  $region36: #{discriminator_forward.13} parent=0 // pred_region
    _
  $region37: #{discriminator_forward.13} parent=0 // pred_fallthru
    _

// kernel: discriminator_forward.15
$region0: #{discriminator_forward.15}
  #allocation0 [shape = 'u32[]', space=smem, size = 0x4, offset = 0x4, fixed_abs, tag = 'smem constant byte address 0x4 - core index']
  #allocation1 [shape = 'u32[72,128]{1,0:T(1,128)}', space=vmem, size = 0x9000, scoped, tag = 'internal scratch']
  %s0 = inlined_call_operand.vmem [shape: bf16[1,1024], index: 0, kind: input, shape index: {}]
  %s1 = inlined_call_operand.vmem [shape: bf16[1024,2], index: 1, kind: input, shape index: {}]
  %s2 = inlined_call_operand.hbm [shape: f32[1,2], index: 2, kind: output, shape index: {}]
  %s3 = sld [smem:[#allocation0]]
  $region18: #{discriminator_forward.15} parent=0
    _
  %s5 = ssub.s32 1, %s3
  %s6 = scalar_select 0, %s5, %s3
  $region1: #{discriminator_forward.15} parent=0
    #allocation2 [shape = 'u8[512]{0}', space=vmem, size = 0x400, scoped, tag = 'output window, operand 0, single buffered']
    #allocation3 [shape = 's32[1]{0}', space=sflag, size = 0x4, scoped, tag = 'scoped memory for discriminator_forward.15']
    %7 = vsyncpa [#allocation3], 0
    // Predicated region
    $region2: #{discriminator_forward.15} parent=1 // pred_check
      _
    $region3: #{discriminator_forward.15} parent=1 // pred_check_branch
      %9 = sbr.rel (0) target = $region5
    $region4: #{discriminator_forward.15} parent=1 // pred_region
      _
    $region5: #{discriminator_forward.15} parent=1 // pred_fallthru
      _
    // Predicated region
    $region6: #{discriminator_forward.15} parent=1 // pred_check
      _
    $region7: #{discriminator_forward.15} parent=1 // pred_check_branch
      %11 = sbr.rel (0) target = $region9
    $region8: #{discriminator_forward.15} parent=1 // pred_region
      _
    $region9: #{discriminator_forward.15} parent=1 // pred_fallthru
      _
    %v12 = vld [vmem:[%s0] sm:$0xff]
    %v13 = vld [vmem:[%s1] sm:$0xf]
    %v14 = vld [vmem:[%s1 + $0x4] sm:$0xf]
    %v15 = vld [vmem:[%s1 + $0x8] sm:$0xf]
    %v16 = vld [vmem:[%s1 + $0xc] sm:$0xf]
    %v17 = vld [vmem:[%s1 + $0x10] sm:$0xf]
    %v18 = vld [vmem:[%s1 + $0x14] sm:$0xf]
    %v19 = vld [vmem:[%s1 + $0x18] sm:$0xf]
    %v20 = vld [vmem:[%s1 + $0x1c] sm:$0xf]
    %v21 = vld [vmem:[%s1 + $0x20] sm:$0xf]
    %v22 = vld [vmem:[%s1 + $0x24] sm:$0xf]
    %v23 = vld [vmem:[%s1 + $0x28] sm:$0xf]
    %v24 = vld [vmem:[%s1 + $0x2c] sm:$0xf]
    %v25 = vld [vmem:[%s1 + $0x30] sm:$0xf]
    %v26 = vld [vmem:[%s1 + $0x34] sm:$0xf]
    %v27 = vld [vmem:[%s1 + $0x38] sm:$0xf]
    %v28 = vld [vmem:[%s1 + $0x3c] sm:$0xf]
    %v29 = vld [vmem:[%s1 + $0x40] sm:$0xf]
    %v30 = vld [vmem:[%s1 + $0x44] sm:$0xf]
    %v31 = vld [vmem:[%s1 + $0x48] sm:$0xf]
    %v32 = vld [vmem:[%s1 + $0x4c] sm:$0xf]
    %v33 = vld [vmem:[%s1 + $0x50] sm:$0xf]
    %v34 = vld [vmem:[%s1 + $0x54] sm:$0xf]
    %v35 = vld [vmem:[%s1 + $0x58] sm:$0xf]
    %v36 = vld [vmem:[%s1 + $0x5c] sm:$0xf]
    %v37 = vld [vmem:[%s1 + $0x60] sm:$0xf]
    %v38 = vld [vmem:[%s1 + $0x64] sm:$0xf]
    %v39 = vld [vmem:[%s1 + $0x68] sm:$0xf]
    %v40 = vld [vmem:[%s1 + $0x6c] sm:$0xf]
    %v41 = vld [vmem:[%s1 + $0x70] sm:$0xf]
    %v42 = vld [vmem:[%s1 + $0x74] sm:$0xf]
    %v43 = vld [vmem:[%s1 + $0x78] sm:$0xf]
    %v44 = vld [vmem:[%s1 + $0x7c] sm:$0xf]
    %v45 = vld [vmem:[%s1 + $0x80] sm:$0xf]
    %v46 = vld [vmem:[%s1 + $0x84] sm:$0xf]
    %v47 = vld [vmem:[%s1 + $0x88] sm:$0xf]
    %v48 = vld [vmem:[%s1 + $0x8c] sm:$0xf]
    %v49 = vld [vmem:[%s1 + $0x90] sm:$0xf]
    %v50 = vld [vmem:[%s1 + $0x94] sm:$0xf]
    %v51 = vld [vmem:[%s1 + $0x98] sm:$0xf]
    %v52 = vld [vmem:[%s1 + $0x9c] sm:$0xf]
    %v53 = vld [vmem:[%s1 + $0xa0] sm:$0xf]
    %v54 = vld [vmem:[%s1 + $0xa4] sm:$0xf]
    %v55 = vld [vmem:[%s1 + $0xa8] sm:$0xf]
    %v56 = vld [vmem:[%s1 + $0xac] sm:$0xf]
    %v57 = vld [vmem:[%s1 + $0xb0] sm:$0xf]
    %v58 = vld [vmem:[%s1 + $0xb4] sm:$0xf]
    %v59 = vld [vmem:[%s1 + $0xb8] sm:$0xf]
    %v60 = vld [vmem:[%s1 + $0xbc] sm:$0xf]
    %v61 = vld [vmem:[%s1 + $0xc0] sm:$0xf]
    %v62 = vld [vmem:[%s1 + $0xc4] sm:$0xf]
    %v63 = vld [vmem:[%s1 + $0xc8] sm:$0xf]
    %v64 = vld [vmem:[%s1 + $0xcc] sm:$0xf]
    %v65 = vld [vmem:[%s1 + $0xd0] sm:$0xf]
    %v66 = vld [vmem:[%s1 + $0xd4] sm:$0xf]
    %v67 = vld [vmem:[%s1 + $0xd8] sm:$0xf]
    %v68 = vld [vmem:[%s1 + $0xdc] sm:$0xf]
    %v69 = vld [vmem:[%s1 + $0xe0] sm:$0xf]
    %v70 = vld [vmem:[%s1 + $0xe4] sm:$0xf]
    %v71 = vld [vmem:[%s1 + $0xe8] sm:$0xf]
    %v72 = vld [vmem:[%s1 + $0xec] sm:$0xf]
    %v73 = vld [vmem:[%s1 + $0xf0] sm:$0xf]
    %v74 = vld [vmem:[%s1 + $0xf4] sm:$0xf]
    %v75 = vld [vmem:[%s1 + $0xf8] sm:$0xf]
    %v76 = vld [vmem:[%s1 + $0xfc] sm:$0xf]
    %v77 = vld [vmem:[%s1 + $0x100] sm:$0xf]
    %v78 = vld [vmem:[%s1 + $0x104] sm:$0xf]
    %v79 = vld [vmem:[%s1 + $0x108] sm:$0xf]
    %v80 = vld [vmem:[%s1 + $0x10c] sm:$0xf]
    %v81 = vld [vmem:[%s1 + $0x110] sm:$0xf]
    %v82 = vld [vmem:[%s1 + $0x114] sm:$0xf]
    %v83 = vld [vmem:[%s1 + $0x118] sm:$0xf]
    %v84 = vld [vmem:[%s1 + $0x11c] sm:$0xf]
    %v85 = vld [vmem:[%s1 + $0x120] sm:$0xf]
    %v86 = vld [vmem:[%s1 + $0x124] sm:$0xf]
    %v87 = vld [vmem:[%s1 + $0x128] sm:$0xf]
    %v88 = vld [vmem:[%s1 + $0x12c] sm:$0xf]
    %v89 = vld [vmem:[%s1 + $0x130] sm:$0xf]
    %v90 = vld [vmem:[%s1 + $0x134] sm:$0xf]
    %v91 = vld [vmem:[%s1 + $0x138] sm:$0xf]
    %v92 = vld [vmem:[%s1 + $0x13c] sm:$0xf]
    %v93 = vld [vmem:[%s1 + $0x140] sm:$0xf]
    %v94 = vld [vmem:[%s1 + $0x144] sm:$0xf]
    %v95 = vld [vmem:[%s1 + $0x148] sm:$0xf]
    %v96 = vld [vmem:[%s1 + $0x14c] sm:$0xf]
    %v97 = vld [vmem:[%s1 + $0x150] sm:$0xf]
    %v98 = vld [vmem:[%s1 + $0x154] sm:$0xf]
    %v99 = vld [vmem:[%s1 + $0x158] sm:$0xf]
    %v100 = vld [vmem:[%s1 + $0x15c] sm:$0xf]
    %v101 = vld [vmem:[%s1 + $0x160] sm:$0xf]
    %v102 = vld [vmem:[%s1 + $0x164] sm:$0xf]
    %v103 = vld [vmem:[%s1 + $0x168] sm:$0xf]
    %v104 = vld [vmem:[%s1 + $0x16c] sm:$0xf]
    %v105 = vld [vmem:[%s1 + $0x170] sm:$0xf]
    %v106 = vld [vmem:[%s1 + $0x174] sm:$0xf]
    %v107 = vld [vmem:[%s1 + $0x178] sm:$0xf]
    %v108 = vld [vmem:[%s1 + $0x17c] sm:$0xf]
    %v109 = vld [vmem:[%s1 + $0x180] sm:$0xf]
    %v110 = vld [vmem:[%s1 + $0x184] sm:$0xf]
    %v111 = vld [vmem:[%s1 + $0x188] sm:$0xf]
    %v112 = vld [vmem:[%s1 + $0x18c] sm:$0xf]
    %v113 = vld [vmem:[%s1 + $0x190] sm:$0xf]
    %v114 = vld [vmem:[%s1 + $0x194] sm:$0xf]
    %v115 = vld [vmem:[%s1 + $0x198] sm:$0xf]
    %v116 = vld [vmem:[%s1 + $0x19c] sm:$0xf]
    %v117 = vld [vmem:[%s1 + $0x1a0] sm:$0xf]
    %v118 = vld [vmem:[%s1 + $0x1a4] sm:$0xf]
    %v119 = vld [vmem:[%s1 + $0x1a8] sm:$0xf]
    %v120 = vld [vmem:[%s1 + $0x1ac] sm:$0xf]
    %v121 = vld [vmem:[%s1 + $0x1b0] sm:$0xf]
    %v122 = vld [vmem:[%s1 + $0x1b4] sm:$0xf]
    %v123 = vld [vmem:[%s1 + $0x1b8] sm:$0xf]
    %v124 = vld [vmem:[%s1 + $0x1bc] sm:$0xf]
    %v125 = vld [vmem:[%s1 + $0x1c0] sm:$0xf]
    %v126 = vld [vmem:[%s1 + $0x1c4] sm:$0xf]
    %v127 = vld [vmem:[%s1 + $0x1c8] sm:$0xf]
    %v128 = vld [vmem:[%s1 + $0x1cc] sm:$0xf]
    %v129 = vld [vmem:[%s1 + $0x1d0] sm:$0xf]
    %v130 = vld [vmem:[%s1 + $0x1d4] sm:$0xf]
    %v131 = vld [vmem:[%s1 + $0x1d8] sm:$0xf]
    %v132 = vld [vmem:[%s1 + $0x1dc] sm:$0xf]
    %v133 = vld [vmem:[%s1 + $0x1e0] sm:$0xf]
    %v134 = vld [vmem:[%s1 + $0x1e4] sm:$0xf]
    %v135 = vld [vmem:[%s1 + $0x1e8] sm:$0xf]
    %v136 = vld [vmem:[%s1 + $0x1ec] sm:$0xf]
    %v137 = vld [vmem:[%s1 + $0x1f0] sm:$0xf]
    %v138 = vld [vmem:[%s1 + $0x1f4] sm:$0xf]
    %v139 = vld [vmem:[%s1 + $0x1f8] sm:$0xf]
    %v140 = vld [vmem:[%s1 + $0x1fc] sm:$0xf]
    %142 = vst [vmem:[#allocation1] ss:$9 sm:$0xff] %v12
    %v143 = vld [vmem:[#allocation1] sm:$0xff]
    %v144 = vld [vmem:[#allocation1 + $0x9] sm:$0xff]
    %v145 = vld [vmem:[#allocation1 + $0x12] sm:$0xff]
    %v146 = vld [vmem:[#allocation1 + $0x1b] sm:$0xff]
    %v147 = vld [vmem:[#allocation1 + $0x24] sm:$0xff]
    %v148 = vld [vmem:[#allocation1 + $0x2d] sm:$0xff]
    %v149 = vld [vmem:[#allocation1 + $0x36] sm:$0xff]
    %v150 = vld [vmem:[#allocation1 + $0x3f] sm:$0xff]
    %v287 = vunpack.c.l.b16 %v13
    %v288 = vunpack.c.l.b16 %v14
    %v289 = vunpack.c.l.b16 %v15
    %v290 = vunpack.c.l.b16 %v16
    %v291 = vunpack.c.l.b16 %v17
    %v292 = vunpack.c.l.b16 %v18
    %v293 = vunpack.c.l.b16 %v19
    %v294 = vunpack.c.l.b16 %v20
    %v295 = vunpack.c.l.b16 %v21
    %v296 = vunpack.c.l.b16 %v22
    %v297 = vunpack.c.l.b16 %v23
    %v298 = vunpack.c.l.b16 %v24
    %v299 = vunpack.c.l.b16 %v25
    %v300 = vunpack.c.l.b16 %v26
    %v301 = vunpack.c.l.b16 %v27
    %v302 = vunpack.c.l.b16 %v28
    %v303 = vunpack.c.l.b16 %v29
    %v304 = vunpack.c.l.b16 %v30
    %v305 = vunpack.c.l.b16 %v31
    %v306 = vunpack.c.l.b16 %v32
    %v307 = vunpack.c.l.b16 %v33
    %v308 = vunpack.c.l.b16 %v34
    %v309 = vunpack.c.l.b16 %v35
    %v310 = vunpack.c.l.b16 %v36
    %v311 = vunpack.c.l.b16 %v37
    %v312 = vunpack.c.l.b16 %v38
    %v313 = vunpack.c.l.b16 %v39
    %v314 = vunpack.c.l.b16 %v40
    %v315 = vunpack.c.l.b16 %v41
    %v316 = vunpack.c.l.b16 %v42
    %v317 = vunpack.c.l.b16 %v43
    %v318 = vunpack.c.l.b16 %v44
    %v319 = vunpack.c.l.b16 %v45
    %v320 = vunpack.c.l.b16 %v46
    %v321 = vunpack.c.l.b16 %v47
    %v322 = vunpack.c.l.b16 %v48
    %v323 = vunpack.c.l.b16 %v49
    %v324 = vunpack.c.l.b16 %v50
    %v325 = vunpack.c.l.b16 %v51
    %v326 = vunpack.c.l.b16 %v52
    %v327 = vunpack.c.l.b16 %v53
    %v328 = vunpack.c.l.b16 %v54
    %v329 = vunpack.c.l.b16 %v55
    %v330 = vunpack.c.l.b16 %v56
    %v331 = vunpack.c.l.b16 %v57
    %v332 = vunpack.c.l.b16 %v58
    %v333 = vunpack.c.l.b16 %v59
    %v334 = vunpack.c.l.b16 %v60
    %v335 = vunpack.c.l.b16 %v61
    %v336 = vunpack.c.l.b16 %v62
    %v337 = vunpack.c.l.b16 %v63
    %v338 = vunpack.c.l.b16 %v64
    %v339 = vunpack.c.l.b16 %v65
    %v340 = vunpack.c.l.b16 %v66
    %v341 = vunpack.c.l.b16 %v67
    %v342 = vunpack.c.l.b16 %v68
    %v343 = vunpack.c.l.b16 %v69
    %v344 = vunpack.c.l.b16 %v70
    %v345 = vunpack.c.l.b16 %v71
    %v346 = vunpack.c.l.b16 %v72
    %v347 = vunpack.c.l.b16 %v73
    %v348 = vunpack.c.l.b16 %v74
    %v349 = vunpack.c.l.b16 %v75
    %v350 = vunpack.c.l.b16 %v76
    %v351 = vunpack.c.l.b16 %v77
    %v352 = vunpack.c.l.b16 %v78
    %v353 = vunpack.c.l.b16 %v79
    %v354 = vunpack.c.l.b16 %v80
    %v355 = vunpack.c.l.b16 %v81
    %v356 = vunpack.c.l.b16 %v82
    %v357 = vunpack.c.l.b16 %v83
    %v358 = vunpack.c.l.b16 %v84
    %v359 = vunpack.c.l.b16 %v85
    %v360 = vunpack.c.l.b16 %v86
    %v361 = vunpack.c.l.b16 %v87
    %v362 = vunpack.c.l.b16 %v88
    %v363 = vunpack.c.l.b16 %v89
    %v364 = vunpack.c.l.b16 %v90
    %v365 = vunpack.c.l.b16 %v91
    %v366 = vunpack.c.l.b16 %v92
    %v367 = vunpack.c.l.b16 %v93
    %v368 = vunpack.c.l.b16 %v94
    %v369 = vunpack.c.l.b16 %v95
    %v370 = vunpack.c.l.b16 %v96
    %v371 = vunpack.c.l.b16 %v97
    %v372 = vunpack.c.l.b16 %v98
    %v373 = vunpack.c.l.b16 %v99
    %v374 = vunpack.c.l.b16 %v100
    %v375 = vunpack.c.l.b16 %v101
    %v376 = vunpack.c.l.b16 %v102
    %v377 = vunpack.c.l.b16 %v103
    %v378 = vunpack.c.l.b16 %v104
    %v379 = vunpack.c.l.b16 %v105
    %v380 = vunpack.c.l.b16 %v106
    %v381 = vunpack.c.l.b16 %v107
    %v382 = vunpack.c.l.b16 %v108
    %v383 = vunpack.c.l.b16 %v109
    %v384 = vunpack.c.l.b16 %v110
    %v385 = vunpack.c.l.b16 %v111
    %v386 = vunpack.c.l.b16 %v112
    %v387 = vunpack.c.l.b16 %v113
    %v388 = vunpack.c.l.b16 %v114
    %v389 = vunpack.c.l.b16 %v115
    %v390 = vunpack.c.l.b16 %v116
    %v391 = vunpack.c.l.b16 %v117
    %v392 = vunpack.c.l.b16 %v118
    %v393 = vunpack.c.l.b16 %v119
    %v394 = vunpack.c.l.b16 %v120
    %v395 = vunpack.c.l.b16 %v121
    %v396 = vunpack.c.l.b16 %v122
    %v397 = vunpack.c.l.b16 %v123
    %v398 = vunpack.c.l.b16 %v124
    %v399 = vunpack.c.l.b16 %v125
    %v400 = vunpack.c.l.b16 %v126
    %v401 = vunpack.c.l.b16 %v127
    %v402 = vunpack.c.l.b16 %v128
    %v403 = vunpack.c.l.b16 %v129
    %v404 = vunpack.c.l.b16 %v130
    %v405 = vunpack.c.l.b16 %v131
    %v406 = vunpack.c.l.b16 %v132
    %v407 = vunpack.c.l.b16 %v133
    %v408 = vunpack.c.l.b16 %v134
    %v409 = vunpack.c.l.b16 %v135
    %v410 = vunpack.c.l.b16 %v136
    %v411 = vunpack.c.l.b16 %v137
    %v412 = vunpack.c.l.b16 %v138
    %v413 = vunpack.c.l.b16 %v139
    %v414 = vunpack.c.l.b16 %v140
    %v415 = vpack.c.b16 %v288, %v287
    %v416 = vpack.c.b16 %v290, %v289
    %v417 = vpack.c.b16 %v292, %v291
    %v418 = vpack.c.b16 %v294, %v293
    %v419 = vpack.c.b16 %v296, %v295
    %v420 = vpack.c.b16 %v298, %v297
    %v421 = vpack.c.b16 %v300, %v299
    %v422 = vpack.c.b16 %v302, %v301
    %v423 = vpack.c.b16 %v304, %v303
    %v424 = vpack.c.b16 %v306, %v305
    %v425 = vpack.c.b16 %v308, %v307
    %v426 = vpack.c.b16 %v310, %v309
    %v427 = vpack.c.b16 %v312, %v311
    %v428 = vpack.c.b16 %v314, %v313
    %v429 = vpack.c.b16 %v316, %v315
    %v430 = vpack.c.b16 %v318, %v317
    %v431 = vpack.c.b16 %v320, %v319
    %v432 = vpack.c.b16 %v322, %v321
    %v433 = vpack.c.b16 %v324, %v323
    %v434 = vpack.c.b16 %v326, %v325
    %v435 = vpack.c.b16 %v328, %v327
    %v436 = vpack.c.b16 %v330, %v329
    %v437 = vpack.c.b16 %v332, %v331
    %v438 = vpack.c.b16 %v334, %v333
    %v439 = vpack.c.b16 %v336, %v335
    %v440 = vpack.c.b16 %v338, %v337
    %v441 = vpack.c.b16 %v340, %v339
    %v442 = vpack.c.b16 %v342, %v341
    %v443 = vpack.c.b16 %v344, %v343
    %v444 = vpack.c.b16 %v346, %v345
    %v445 = vpack.c.b16 %v348, %v347
    %v446 = vpack.c.b16 %v350, %v349
    %v447 = vpack.c.b16 %v352, %v351
    %v448 = vpack.c.b16 %v354, %v353
    %v449 = vpack.c.b16 %v356, %v355
    %v450 = vpack.c.b16 %v358, %v357
    %v451 = vpack.c.b16 %v360, %v359
    %v452 = vpack.c.b16 %v362, %v361
    %v453 = vpack.c.b16 %v364, %v363
    %v454 = vpack.c.b16 %v366, %v365
    %v455 = vpack.c.b16 %v368, %v367
    %v456 = vpack.c.b16 %v370, %v369
    %v457 = vpack.c.b16 %v372, %v371
    %v458 = vpack.c.b16 %v374, %v373
    %v459 = vpack.c.b16 %v376, %v375
    %v460 = vpack.c.b16 %v378, %v377
    %v461 = vpack.c.b16 %v380, %v379
    %v462 = vpack.c.b16 %v382, %v381
    %v463 = vpack.c.b16 %v384, %v383
    %v464 = vpack.c.b16 %v386, %v385
    %v465 = vpack.c.b16 %v388, %v387
    %v466 = vpack.c.b16 %v390, %v389
    %v467 = vpack.c.b16 %v392, %v391
    %v468 = vpack.c.b16 %v394, %v393
    %v469 = vpack.c.b16 %v396, %v395
    %v470 = vpack.c.b16 %v398, %v397
    %v471 = vpack.c.b16 %v400, %v399
    %v472 = vpack.c.b16 %v402, %v401
    %v473 = vpack.c.b16 %v404, %v403
    %v474 = vpack.c.b16 %v406, %v405
    %v475 = vpack.c.b16 %v408, %v407
    %v476 = vpack.c.b16 %v410, %v409
    %v477 = vpack.c.b16 %v412, %v411
    %v478 = vpack.c.b16 %v414, %v413
    %543 = vmatpush.bf16.msra.mxu0 %v422
    %544 = vmatpush.bf16.msra.mxu0 %v421
    %545 = vmatpush.bf16.msra.mxu0 %v420
    %546 = vmatpush.bf16.msra.mxu0 %v419
    %547 = vmatpush.bf16.msra.mxu0 %v418
    %548 = vmatpush.bf16.msra.mxu0 %v417
    %549 = vmatpush.bf16.msra.mxu0 %v416
    %550 = vmatpush.bf16.msra.mxu0 %v415
    %551 = vmatmul.bf16.gmra.mxu0 %v143
    %v552 = vpop.f32.mrf.mxu0
    %v553 = vadd.f32 0.0, %v552
    %v554 = vpop.f32.mrf.mxu0
    %555 = vdwg.mxu0
    %556 = vmatpush.bf16.msra.mxu0 %v430
    %557 = vmatpush.bf16.msra.mxu0 %v429
    %558 = vmatpush.bf16.msra.mxu0 %v428
    %559 = vmatpush.bf16.msra.mxu0 %v427
    %560 = vmatpush.bf16.msra.mxu0 %v426
    %561 = vmatpush.bf16.msra.mxu0 %v425
    %562 = vmatpush.bf16.msra.mxu0 %v424
    %563 = vmatpush.bf16.msra.mxu0 %v423
    %564 = vmatmul.bf16.gmra.mxu0 %v144
    %v565 = vpop.f32.mrf.mxu0
    %v566 = vadd.f32 %v553, %v565
    %v567 = vpop.f32.mrf.mxu0
    %568 = vdwg.mxu0
    %569 = vmatpush.bf16.msra.mxu0 %v438
    %570 = vmatpush.bf16.msra.mxu0 %v437
    %571 = vmatpush.bf16.msra.mxu0 %v436
    %572 = vmatpush.bf16.msra.mxu0 %v435
    %573 = vmatpush.bf16.msra.mxu0 %v434
    %574 = vmatpush.bf16.msra.mxu0 %v433
    %575 = vmatpush.bf16.msra.mxu0 %v432
    %576 = vmatpush.bf16.msra.mxu0 %v431
    %577 = vmatmul.bf16.gmra.mxu0 %v145
    %v578 = vpop.f32.mrf.mxu0
    %v579 = vadd.f32 %v566, %v578
    %v580 = vpop.f32.mrf.mxu0
    %581 = vdwg.mxu0
    %582 = vmatpush.bf16.msra.mxu0 %v446
    %583 = vmatpush.bf16.msra.mxu0 %v445
    %584 = vmatpush.bf16.msra.mxu0 %v444
    %585 = vmatpush.bf16.msra.mxu0 %v443
    %586 = vmatpush.bf16.msra.mxu0 %v442
    %587 = vmatpush.bf16.msra.mxu0 %v441
    %588 = vmatpush.bf16.msra.mxu0 %v440
    %589 = vmatpush.bf16.msra.mxu0 %v439
    %590 = vmatmul.bf16.gmra.mxu0 %v146
    %v591 = vpop.f32.mrf.mxu0
    %v592 = vadd.f32 %v579, %v591
    %v593 = vpop.f32.mrf.mxu0
    %594 = vdwg.mxu0
    %595 = vmatpush.bf16.msra.mxu0 %v454
    %596 = vmatpush.bf16.msra.mxu0 %v453
    %597 = vmatpush.bf16.msra.mxu0 %v452
    %598 = vmatpush.bf16.msra.mxu0 %v451
    %599 = vmatpush.bf16.msra.mxu0 %v450
    %600 = vmatpush.bf16.msra.mxu0 %v449
    %601 = vmatpush.bf16.msra.mxu0 %v448
    %602 = vmatpush.bf16.msra.mxu0 %v447
    %603 = vmatmul.bf16.gmra.mxu0 %v147
    %v604 = vpop.f32.mrf.mxu0
    %v605 = vadd.f32 %v592, %v604
    %v606 = vpop.f32.mrf.mxu0
    %607 = vdwg.mxu0
    %608 = vmatpush.bf16.msra.mxu0 %v462
    %609 = vmatpush.bf16.msra.mxu0 %v461
    %610 = vmatpush.bf16.msra.mxu0 %v460
    %611 = vmatpush.bf16.msra.mxu0 %v459
    %612 = vmatpush.bf16.msra.mxu0 %v458
    %613 = vmatpush.bf16.msra.mxu0 %v457
    %614 = vmatpush.bf16.msra.mxu0 %v456
    %615 = vmatpush.bf16.msra.mxu0 %v455
    %616 = vmatmul.bf16.gmra.mxu0 %v148
    %v617 = vpop.f32.mrf.mxu0
    %v618 = vadd.f32 %v605, %v617
    %v619 = vpop.f32.mrf.mxu0
    %620 = vdwg.mxu0
    %621 = vmatpush.bf16.msra.mxu0 %v470
    %622 = vmatpush.bf16.msra.mxu0 %v469
    %623 = vmatpush.bf16.msra.mxu0 %v468
    %624 = vmatpush.bf16.msra.mxu0 %v467
    %625 = vmatpush.bf16.msra.mxu0 %v466
    %626 = vmatpush.bf16.msra.mxu0 %v465
    %627 = vmatpush.bf16.msra.mxu0 %v464
    %628 = vmatpush.bf16.msra.mxu0 %v463
    %629 = vmatmul.bf16.gmra.mxu0 %v149
    %v630 = vpop.f32.mrf.mxu0
    %v631 = vadd.f32 %v618, %v630
    %v632 = vpop.f32.mrf.mxu0
    %633 = vdwg.mxu0
    %634 = vmatpush.bf16.msra.mxu0 %v478
    %635 = vmatpush.bf16.msra.mxu0 %v477
    %636 = vmatpush.bf16.msra.mxu0 %v476
    %637 = vmatpush.bf16.msra.mxu0 %v475
    %638 = vmatpush.bf16.msra.mxu0 %v474
    %639 = vmatpush.bf16.msra.mxu0 %v473
    %640 = vmatpush.bf16.msra.mxu0 %v472
    %641 = vmatpush.bf16.msra.mxu0 %v471
    %642 = vmatmul.bf16.gmra.mxu0 %v150
    %v643 = vpop.f32.mrf.mxu0
    %v644 = vadd.f32 %v631, %v643
    %v645 = vpop.f32.mrf.mxu0
    %646 = vdwg.mxu0
    %v647 = vsub.f32 0.0, %v644
    %v648 = vmul.f32 %v647, 1.442695
    %v649 = vpow.pop %v648
    %v650 = vadd.f32 %v649, 1.0
    %v651 = vrcp.pop %v650
    %v652 = vmul.f32 %v650, %v651
    %v653 = vsub.f32 1.0, %v652
    %v654 = vmul.f32 %v651, %v653
    %v655 = vadd.f32 %v651, %v654
    %vm656 = vweird.f32 %v650
    %vm657 = vweird.f32 %v651
    %vm658 = vmor %vm656, %vm657
    %v659 = vsel %vm658, %v651, %v655
    %v660 = vand.u32 2147483647, %v650
    %vm661 = vcmp.eq.f32.partialorder %v660, 8.507059e+37
    %v662 = vand.u32 %v650, 2147483648
    %v663 = vor.u32 1.1754944e-38, %v662
    %v664 = vsel %vm661, %v663, %v659
    %v665 = vmul.f32 1.0, %v664
    %vm666 = vcmask 8192
    %667 = vst.msk [vmem:[#allocation2] sm:$0x1] %vm666, %v665
    // Predicated region
    $region10: #{discriminator_forward.15} parent=1 // pred_check
      _
    $region11: #{discriminator_forward.15} parent=1 // pred_check_branch
      %669 = sbr.rel (0) target = $region13
    $region12: #{discriminator_forward.15} parent=1 // pred_region
      %671 = vsyncadd [#allocation3], 0
      %s673 = sshll.u32 [#allocation2], 4
      %s674 = int_to_ptr.vmem [resolvable:$true] %s673
      %s675 = sshll.u32 %s2, 4
      %s676 = int_to_ptr.hbm [resolvable:$true] %s675
      %678 = dma.vmem_to_hbm [thread:$0]  %s674, 16, %s676, [#allocation3]
    $region13: #{discriminator_forward.15} parent=1 // pred_fallthru
      _
    // Predicated region
    $region14: #{discriminator_forward.15} parent=1 // pred_check
      _
    $region15: #{discriminator_forward.15} parent=1 // pred_check_branch
      %680 = sbr.rel (0) target = $region17
    $region16: #{discriminator_forward.15} parent=1 // pred_region
      %682 = dma.done [#allocation3], 16
    $region17: #{discriminator_forward.15} parent=1 // pred_fallthru
      _
    %683 = vsyncpa [#allocation3], 1

</llo_original>
